<compile_context>
chip_gen: v7x
topology: tpu7x:2x2x1
jax: 0.10.0
libtpu: 0.0.40
codegen_flags: <defaults>
</compile_context>

<pallas_src>
import math

import jax
import jax.numpy as jnp
import numpy as np
from jax.experimental import pallas as pl
from jax.experimental.pallas import tpu as pltpu

EXPAND = 8          # expand_size in the PyTorch module
BN_CHANNELS = 12    # BatchNorm2d(12)
EPS = 1e-5
PARAM_PAD = 16      # sublane padding for the packed parameter array


def _relation_kernel(feat_ref, params_ref, out_ref):
    # feat_ref  : (B, C, E, H) f32 VMEM -- E on sublanes (contraction), H on lanes
    # params_ref: (4, 16, 1)   f32 VMEM -- rows: a1 | a2 | gamma | beta (zero padded)
    # out_ref   : (B, C, H*H)  f32 VMEM -- lane-dense, flat index = i*H + j
    B_, C_, E_, H_ = feat_ref.shape

    f = feat_ref[...]                                   # (B, C, E, H)
    p = params_ref[...]                                 # (4, 16, 1)
    a1 = p[0, :E_]                                      # (E, 1) sublane vector
    a2 = p[1, :E_]                                      # (E, 1)
    gamma = p[2, :C_]                                   # (C, 1)
    beta = p[3, :C_]                                    # (C, 1)

    # Contraction over E as a sublane reduce on the VPU (MXU would waste a full
    # systolic pass on a K=8, N=1 "matmul").
    h1 = jnp.sum(f * a1, axis=2)                        # (B, C, H)
    h2 = jnp.sum(f * a2, axis=2)                        # (B, C, H)

    # Per-channel training-mode BN statistics, analytic for e = h1_i + h2_j:
    #   mean(e) = mean(h1) + mean(h2)
    #   var(e)  = var(h1) + var(h2) + 2 * cov_b(mean_i h1[b,:], mean_j h2[b,:])
    def mean_bh(x):                                     # mean over batch+spatial
        return jnp.mean(jnp.mean(x, axis=2, keepdims=True), axis=0, keepdims=True)

    m1 = mean_bh(h1)                                    # (1, C, 1)
    m2 = mean_bh(h2)
    d1 = h1 - m1
    d2 = h2 - m2
    v1 = mean_bh(d1 * d1)
    v2 = mean_bh(d2 * d2)
    d1b = jnp.mean(d1, axis=2, keepdims=True)           # (B, C, 1)
    d2b = jnp.mean(d2, axis=2, keepdims=True)
    cross = jnp.mean(d1b * d2b, axis=0, keepdims=True)  # (1, C, 1)

    mean_e = m1 + m2
    var_e = jnp.maximum(v1 + v2 + 2.0 * cross, 0.0)     # guard fp32 cancellation
    inv = jax.lax.rsqrt(var_e + EPS)                    # EUP slot

    # Fold normalization + affine into h1/h2 once (not per output row).
    scale = gamma * inv                                 # (1, C, 1)
    shift = beta - mean_e * scale                       # (1, C, 1)
    h1s = h1 * scale + shift                            # (B, C, H)
    h2s = h2 * scale                                    # (B, C, H)

    # Assemble the lane-dense result in registers and store once, unmasked:
    #   e_flat[b, c, i*H + j] = h1s[b, c, i] + h2s[b, c, j]
    # Each row is a single lane-broadcast + vadd; the concat places the 16-lane
    # chunks in-register instead of 16 masked lane-offset stores.
    rows = [h1s[:, :, i:i + 1] + h2s for i in range(H_)]   # H x (B, C, H)
    out_ref[...] = jnp.concatenate(rows, axis=-1)           # (B, C, H*H)


@jax.jit
def relation_awareness(feature, a, gamma, beta):
    """feature: (B, C, H, E) f32; a: (2*E, 1); gamma/beta: (C,). Returns (B, C, H, H)."""
    B, C, H, E = feature.shape
    assert E == EXPAND and C == BN_CHANNELS

    # Layout plumbing (tiny XLA ops, fused): E onto sublanes / H onto lanes.
    feat_t = jnp.swapaxes(feature, -1, -2).astype(jnp.float32)        # (B, C, E, H)

    # Pack a1, a2, gamma, beta into ONE small parameter operand -> one DMA.
    params = jnp.stack(
        [
            jnp.pad(a[:EXPAND, 0].astype(jnp.float32), (0, PARAM_PAD - EXPAND)),
            jnp.pad(a[EXPAND:, 0].astype(jnp.float32), (0, PARAM_PAD - EXPAND)),
            jnp.pad(gamma.astype(jnp.float32), (0, PARAM_PAD - C)),
            jnp.pad(beta.astype(jnp.float32), (0, PARAM_PAD - C)),
        ],
        axis=0,
    )[:, :, None]                                                      # (4, 16, 1)

    # Whole problem is ~50 KiB -> single kernel invocation, all operands in VMEM.
    # (If B/H ever scale, re-tile over C and budget 2x-double-buffered blocks
    #  against v7x's 64 MiB physical / 32 MiB default-scoped VMEM via
    #  pltpu.CompilerParams(vmem_limit_bytes=...).)
    out_flat = pl.pallas_call(
        _relation_kernel,
        out_shape=jax.ShapeDtypeStruct((B, C, H * H), jnp.float32),
        in_specs=[
            pl.BlockSpec(memory_space=pltpu.MemorySpace.VMEM),   # feature (B,C,E,H)
            pl.BlockSpec(memory_space=pltpu.MemorySpace.VMEM),   # packed params
        ],
        out_specs=pl.BlockSpec(memory_space=pltpu.MemorySpace.VMEM),
    )(feat_t, params)

    return out_flat.reshape(B, C, H, H)                 # pure reshape, free


def _reference(feature, a, gamma, beta):
    """Pure-JAX reference mirroring the PyTorch forward (training-mode BN)."""
    a1 = a[:EXPAND, :]                                  # (8, 1)
    a2 = a[EXPAND:, :]                                  # (8, 1)
    h1 = jnp.matmul(feature, a1)                        # (B, C, H, 1)
    h2 = jnp.matmul(feature, a2)                        # (B, C, H, 1)
    e = h1 + jnp.swapaxes(h2, -1, -2)                   # (B, C, H, H)
    mean = jnp.mean(e, axis=(0, 2, 3), keepdims=True)
    var = jnp.mean((e - mean) ** 2, axis=(0, 2, 3), keepdims=True)
    e = (e - mean) / jnp.sqrt(var + EPS)
    return e * gamma[None, :, None, None] + beta[None, :, None, None]


if __name__ == "__main__":
    key = jax.random.PRNGKey(0)
    k_feat, k_a, k_g, k_b = jax.random.split(key, 4)

    B, C, H, E = 2, 12, 16, EXPAND                      # C fixed by BatchNorm2d(12)
    feature = jax.random.normal(k_feat, (B, C, H, E), dtype=jnp.float32)

    # Deterministic xavier_uniform_(gain=1.414) style init for a: shape (2*E, 1).
    fan_out, fan_in = 2 * EXPAND, 1
    bound = 1.414 * math.sqrt(2.0 / (fan_in + fan_out)) * math.sqrt(3.0)
    a = jax.random.uniform(k_a, (2 * EXPAND, 1), dtype=jnp.float32,
                           minval=-bound, maxval=bound)

    # Non-trivial BN affine parameters to exercise the folded scale/shift path.
    gamma = 1.0 + 0.1 * jax.random.normal(k_g, (C,), dtype=jnp.float32)
    beta = 0.1 * jax.random.normal(k_b, (C,), dtype=jnp.float32)

    out = jax.block_until_ready(relation_awareness(feature, a, gamma, beta))
    ref = jax.block_until_ready(_reference(feature, a, gamma, beta))

    assert out.shape == (B, C, H, H)
    np.testing.assert_allclose(np.asarray(out), np.asarray(ref), atol=1e-4, rtol=1e-4)

    print("KERNEL_OK")
</pallas_src>

<mosaic_0001>
module attributes {stable_mosaic.version = 11 : i64} {
  func.func @_relation_kernel(%arg0: memref<2x12x8x16xf32, #tpu.memory_space<vmem>>, %arg1: memref<4x16x1xf32, #tpu.memory_space<vmem>>, %arg2: memref<2x12x256xf32, #tpu.memory_space<vmem>>) attributes {dimension_semantics = [], scalar_prefetch = 0 : i64, scratch_operands = 0 : i64, tpu.core_type = #tpu.core_type<tc>} {
    %c0 = arith.constant 0 : index
    %c0_0 = arith.constant 0 : index
    %c0_1 = arith.constant 0 : index
    %c0_2 = arith.constant 0 : index
    %0 = vector.load %arg0[%c0, %c0_0, %c0_1, %c0_2] : memref<2x12x8x16xf32, #tpu.memory_space<vmem>>, vector<2x12x8x16xf32>
    %c0_3 = arith.constant 0 : index
    %c0_4 = arith.constant 0 : index
    %c0_5 = arith.constant 0 : index
    %1 = vector.load %arg1[%c0_3, %c0_4, %c0_5] : memref<4x16x1xf32, #tpu.memory_space<vmem>>, vector<4x16x1xf32>
    %2 = vector.extract_strided_slice %1 {offsets = [0, 0, 0], sizes = [1, 8, 1], strides = [1, 1, 1]} : vector<4x16x1xf32> to vector<1x8x1xf32>
    %3 = vector.shape_cast %2 : vector<1x8x1xf32> to vector<8x1xf32>
    %4 = vector.extract_strided_slice %1 {offsets = [1, 0, 0], sizes = [1, 8, 1], strides = [1, 1, 1]} : vector<4x16x1xf32> to vector<1x8x1xf32>
    %5 = vector.shape_cast %4 : vector<1x8x1xf32> to vector<8x1xf32>
    %6 = vector.extract_strided_slice %1 {offsets = [2, 0, 0], sizes = [1, 12, 1], strides = [1, 1, 1]} : vector<4x16x1xf32> to vector<1x12x1xf32>
    %7 = vector.shape_cast %6 : vector<1x12x1xf32> to vector<12x1xf32>
    %8 = vector.extract_strided_slice %1 {offsets = [3, 0, 0], sizes = [1, 12, 1], strides = [1, 1, 1]} : vector<4x16x1xf32> to vector<1x12x1xf32>
    %9 = vector.shape_cast %8 : vector<1x12x1xf32> to vector<12x1xf32>
    %10 = vector.shape_cast %3 : vector<8x1xf32> to vector<1x1x8x1xf32>
    %11 = vector.broadcast %10 : vector<1x1x8x1xf32> to vector<2x12x8x16xf32>
    %12 = arith.mulf %0, %11 : vector<2x12x8x16xf32>
    %cst = arith.constant dense<0.000000e+00> : vector<2x12x16xf32>
    %13 = vector.multi_reduction <add>, %12, %cst [2] : vector<2x12x8x16xf32> to vector<2x12x16xf32>
    %14 = vector.shape_cast %5 : vector<8x1xf32> to vector<1x1x8x1xf32>
    %15 = vector.broadcast %14 : vector<1x1x8x1xf32> to vector<2x12x8x16xf32>
    %16 = arith.mulf %0, %15 : vector<2x12x8x16xf32>
    %cst_6 = arith.constant dense<0.000000e+00> : vector<2x12x16xf32>
    %17 = vector.multi_reduction <add>, %16, %cst_6 [2] : vector<2x12x8x16xf32> to vector<2x12x16xf32>
    %cst_7 = arith.constant dense<0.000000e+00> : vector<2x12xf32>
    %18 = vector.multi_reduction <add>, %13, %cst_7 [2] : vector<2x12x16xf32> to vector<2x12xf32>
    %19 = vector.shape_cast %18 : vector<2x12xf32> to vector<2x12x1xf32>
    %cst_8 = arith.constant 1.600000e+01 : f32
    %20 = vector.broadcast %cst_8 : f32 to vector<2x12x1xf32>
    %21 = arith.divf %19, %20 : vector<2x12x1xf32>
    %cst_9 = arith.constant dense<0.000000e+00> : vector<12x1xf32>
    %22 = vector.multi_reduction <add>, %21, %cst_9 [0] : vector<2x12x1xf32> to vector<12x1xf32>
    %23 = vector.shape_cast %22 : vector<12x1xf32> to vector<1x12x1xf32>
    %cst_10 = arith.constant 2.000000e+00 : f32
    %24 = vector.broadcast %cst_10 : f32 to vector<1x12x1xf32>
    %25 = arith.divf %23, %24 : vector<1x12x1xf32>
    %cst_11 = arith.constant dense<0.000000e+00> : vector<2x12xf32>
    %26 = vector.multi_reduction <add>, %17, %cst_11 [2] : vector<2x12x16xf32> to vector<2x12xf32>
    %27 = vector.shape_cast %26 : vector<2x12xf32> to vector<2x12x1xf32>
    %cst_12 = arith.constant 1.600000e+01 : f32
    %28 = vector.broadcast %cst_12 : f32 to vector<2x12x1xf32>
    %29 = arith.divf %27, %28 : vector<2x12x1xf32>
    %cst_13 = arith.constant dense<0.000000e+00> : vector<12x1xf32>
    %30 = vector.multi_reduction <add>, %29, %cst_13 [0] : vector<2x12x1xf32> to vector<12x1xf32>
    %31 = vector.shape_cast %30 : vector<12x1xf32> to vector<1x12x1xf32>
    %cst_14 = arith.constant 2.000000e+00 : f32
    %32 = vector.broadcast %cst_14 : f32 to vector<1x12x1xf32>
    %33 = arith.divf %31, %32 : vector<1x12x1xf32>
    %34 = vector.broadcast %25 : vector<1x12x1xf32> to vector<2x12x16xf32>
    %35 = arith.subf %13, %34 : vector<2x12x16xf32>
    %36 = vector.broadcast %33 : vector<1x12x1xf32> to vector<2x12x16xf32>
    %37 = arith.subf %17, %36 : vector<2x12x16xf32>
    %38 = arith.mulf %35, %35 : vector<2x12x16xf32>
    %cst_15 = arith.constant dense<0.000000e+00> : vector<2x12xf32>
    %39 = vector.multi_reduction <add>, %38, %cst_15 [2] : vector<2x12x16xf32> to vector<2x12xf32>
    %40 = vector.shape_cast %39 : vector<2x12xf32> to vector<2x12x1xf32>
    %cst_16 = arith.constant 1.600000e+01 : f32
    %41 = vector.broadcast %cst_16 : f32 to vector<2x12x1xf32>
    %42 = arith.divf %40, %41 : vector<2x12x1xf32>
    %cst_17 = arith.constant dense<0.000000e+00> : vector<12x1xf32>
    %43 = vector.multi_reduction <add>, %42, %cst_17 [0] : vector<2x12x1xf32> to vector<12x1xf32>
    %44 = vector.shape_cast %43 : vector<12x1xf32> to vector<1x12x1xf32>
    %cst_18 = arith.constant 2.000000e+00 : f32
    %45 = vector.broadcast %cst_18 : f32 to vector<1x12x1xf32>
    %46 = arith.divf %44, %45 : vector<1x12x1xf32>
    %47 = arith.mulf %37, %37 : vector<2x12x16xf32>
    %cst_19 = arith.constant dense<0.000000e+00> : vector<2x12xf32>
    %48 = vector.multi_reduction <add>, %47, %cst_19 [2] : vector<2x12x16xf32> to vector<2x12xf32>
    %49 = vector.shape_cast %48 : vector<2x12xf32> to vector<2x12x1xf32>
    %cst_20 = arith.constant 1.600000e+01 : f32
    %50 = vector.broadcast %cst_20 : f32 to vector<2x12x1xf32>
    %51 = arith.divf %49, %50 : vector<2x12x1xf32>
    %cst_21 = arith.constant dense<0.000000e+00> : vector<12x1xf32>
    %52 = vector.multi_reduction <add>, %51, %cst_21 [0] : vector<2x12x1xf32> to vector<12x1xf32>
    %53 = vector.shape_cast %52 : vector<12x1xf32> to vector<1x12x1xf32>
    %cst_22 = arith.constant 2.000000e+00 : f32
    %54 = vector.broadcast %cst_22 : f32 to vector<1x12x1xf32>
    %55 = arith.divf %53, %54 : vector<1x12x1xf32>
    %cst_23 = arith.constant dense<0.000000e+00> : vector<2x12xf32>
    %56 = vector.multi_reduction <add>, %35, %cst_23 [2] : vector<2x12x16xf32> to vector<2x12xf32>
    %57 = vector.shape_cast %56 : vector<2x12xf32> to vector<2x12x1xf32>
    %cst_24 = arith.constant 1.600000e+01 : f32
    %58 = vector.broadcast %cst_24 : f32 to vector<2x12x1xf32>
    %59 = arith.divf %57, %58 : vector<2x12x1xf32>
    %cst_25 = arith.constant dense<0.000000e+00> : vector<2x12xf32>
    %60 = vector.multi_reduction <add>, %37, %cst_25 [2] : vector<2x12x16xf32> to vector<2x12xf32>
    %61 = vector.shape_cast %60 : vector<2x12xf32> to vector<2x12x1xf32>
    %cst_26 = arith.constant 1.600000e+01 : f32
    %62 = vector.broadcast %cst_26 : f32 to vector<2x12x1xf32>
    %63 = arith.divf %61, %62 : vector<2x12x1xf32>
    %64 = arith.mulf %59, %63 : vector<2x12x1xf32>
    %cst_27 = arith.constant dense<0.000000e+00> : vector<12x1xf32>
    %65 = vector.multi_reduction <add>, %64, %cst_27 [0] : vector<2x12x1xf32> to vector<12x1xf32>
    %66 = vector.shape_cast %65 : vector<12x1xf32> to vector<1x12x1xf32>
    %cst_28 = arith.constant 2.000000e+00 : f32
    %67 = vector.broadcast %cst_28 : f32 to vector<1x12x1xf32>
    %68 = arith.divf %66, %67 : vector<1x12x1xf32>
    %69 = arith.addf %25, %33 : vector<1x12x1xf32>
    %70 = arith.addf %46, %55 : vector<1x12x1xf32>
    %cst_29 = arith.constant 2.000000e+00 : f32
    %71 = vector.broadcast %cst_29 : f32 to vector<1x12x1xf32>
    %72 = arith.mulf %71, %68 : vector<1x12x1xf32>
    %73 = arith.addf %70, %72 : vector<1x12x1xf32>
    %cst_30 = arith.constant 0.000000e+00 : f32
    %74 = vector.broadcast %cst_30 : f32 to vector<1x12x1xf32>
    %75 = arith.maximumf %73, %74 : vector<1x12x1xf32>
    %cst_31 = arith.constant 9.99999974E-6 : f32
    %76 = vector.broadcast %cst_31 : f32 to vector<1x12x1xf32>
    %77 = arith.addf %75, %76 : vector<1x12x1xf32>
    %78 = math.rsqrt %77 : vector<1x12x1xf32>
    %79 = vector.shape_cast %7 : vector<12x1xf32> to vector<1x12x1xf32>
    %80 = arith.mulf %79, %78 : vector<1x12x1xf32>
    %81 = arith.mulf %69, %80 : vector<1x12x1xf32>
    %82 = vector.shape_cast %9 : vector<12x1xf32> to vector<1x12x1xf32>
    %83 = arith.subf %82, %81 : vector<1x12x1xf32>
    %84 = vector.broadcast %80 : vector<1x12x1xf32> to vector<2x12x16xf32>
    %85 = arith.mulf %13, %84 : vector<2x12x16xf32>
    %86 = vector.broadcast %83 : vector<1x12x1xf32> to vector<2x12x16xf32>
    %87 = arith.addf %85, %86 : vector<2x12x16xf32>
    %88 = vector.broadcast %80 : vector<1x12x1xf32> to vector<2x12x16xf32>
    %89 = arith.mulf %17, %88 : vector<2x12x16xf32>
    %90 = vector.extract_strided_slice %87 {offsets = [0, 0, 0], sizes = [2, 12, 1], strides = [1, 1, 1]} : vector<2x12x16xf32> to vector<2x12x1xf32>
    %91 = vector.broadcast %90 : vector<2x12x1xf32> to vector<2x12x16xf32>
    %92 = arith.addf %91, %89 : vector<2x12x16xf32>
    %93 = vector.extract_strided_slice %87 {offsets = [0, 0, 1], sizes = [2, 12, 1], strides = [1, 1, 1]} : vector<2x12x16xf32> to vector<2x12x1xf32>
    %94 = vector.broadcast %93 : vector<2x12x1xf32> to vector<2x12x16xf32>
    %95 = arith.addf %94, %89 : vector<2x12x16xf32>
    %96 = vector.extract_strided_slice %87 {offsets = [0, 0, 2], sizes = [2, 12, 1], strides = [1, 1, 1]} : vector<2x12x16xf32> to vector<2x12x1xf32>
    %97 = vector.broadcast %96 : vector<2x12x1xf32> to vector<2x12x16xf32>
    %98 = arith.addf %97, %89 : vector<2x12x16xf32>
    %99 = vector.extract_strided_slice %87 {offsets = [0, 0, 3], sizes = [2, 12, 1], strides = [1, 1, 1]} : vector<2x12x16xf32> to vector<2x12x1xf32>
    %100 = vector.broadcast %99 : vector<2x12x1xf32> to vector<2x12x16xf32>
    %101 = arith.addf %100, %89 : vector<2x12x16xf32>
    %102 = vector.extract_strided_slice %87 {offsets = [0, 0, 4], sizes = [2, 12, 1], strides = [1, 1, 1]} : vector<2x12x16xf32> to vector<2x12x1xf32>
    %103 = vector.broadcast %102 : vector<2x12x1xf32> to vector<2x12x16xf32>
    %104 = arith.addf %103, %89 : vector<2x12x16xf32>
    %105 = vector.extract_strided_slice %87 {offsets = [0, 0, 5], sizes = [2, 12, 1], strides = [1, 1, 1]} : vector<2x12x16xf32> to vector<2x12x1xf32>
    %106 = vector.broadcast %105 : vector<2x12x1xf32> to vector<2x12x16xf32>
    %107 = arith.addf %106, %89 : vector<2x12x16xf32>
    %108 = vector.extract_strided_slice %87 {offsets = [0, 0, 6], sizes = [2, 12, 1], strides = [1, 1, 1]} : vector<2x12x16xf32> to vector<2x12x1xf32>
    %109 = vector.broadcast %108 : vector<2x12x1xf32> to vector<2x12x16xf32>
    %110 = arith.addf %109, %89 : vector<2x12x16xf32>
    %111 = vector.extract_strided_slice %87 {offsets = [0, 0, 7], sizes = [2, 12, 1], strides = [1, 1, 1]} : vector<2x12x16xf32> to vector<2x12x1xf32>
    %112 = vector.broadcast %111 : vector<2x12x1xf32> to vector<2x12x16xf32>
    %113 = arith.addf %112, %89 : vector<2x12x16xf32>
    %114 = vector.extract_strided_slice %87 {offsets = [0, 0, 8], sizes = [2, 12, 1], strides = [1, 1, 1]} : vector<2x12x16xf32> to vector<2x12x1xf32>
    %115 = vector.broadcast %114 : vector<2x12x1xf32> to vector<2x12x16xf32>
    %116 = arith.addf %115, %89 : vector<2x12x16xf32>
    %117 = vector.extract_strided_slice %87 {offsets = [0, 0, 9], sizes = [2, 12, 1], strides = [1, 1, 1]} : vector<2x12x16xf32> to vector<2x12x1xf32>
    %118 = vector.broadcast %117 : vector<2x12x1xf32> to vector<2x12x16xf32>
    %119 = arith.addf %118, %89 : vector<2x12x16xf32>
    %120 = vector.extract_strided_slice %87 {offsets = [0, 0, 10], sizes = [2, 12, 1], strides = [1, 1, 1]} : vector<2x12x16xf32> to vector<2x12x1xf32>
    %121 = vector.broadcast %120 : vector<2x12x1xf32> to vector<2x12x16xf32>
    %122 = arith.addf %121, %89 : vector<2x12x16xf32>
    %123 = vector.extract_strided_slice %87 {offsets = [0, 0, 11], sizes = [2, 12, 1], strides = [1, 1, 1]} : vector<2x12x16xf32> to vector<2x12x1xf32>
    %124 = vector.broadcast %123 : vector<2x12x1xf32> to vector<2x12x16xf32>
    %125 = arith.addf %124, %89 : vector<2x12x16xf32>
    %126 = vector.extract_strided_slice %87 {offsets = [0, 0, 12], sizes = [2, 12, 1], strides = [1, 1, 1]} : vector<2x12x16xf32> to vector<2x12x1xf32>
    %127 = vector.broadcast %126 : vector<2x12x1xf32> to vector<2x12x16xf32>
    %128 = arith.addf %127, %89 : vector<2x12x16xf32>
    %129 = vector.extract_strided_slice %87 {offsets = [0, 0, 13], sizes = [2, 12, 1], strides = [1, 1, 1]} : vector<2x12x16xf32> to vector<2x12x1xf32>
    %130 = vector.broadcast %129 : vector<2x12x1xf32> to vector<2x12x16xf32>
    %131 = arith.addf %130, %89 : vector<2x12x16xf32>
    %132 = vector.extract_strided_slice %87 {offsets = [0, 0, 14], sizes = [2, 12, 1], strides = [1, 1, 1]} : vector<2x12x16xf32> to vector<2x12x1xf32>
    %133 = vector.broadcast %132 : vector<2x12x1xf32> to vector<2x12x16xf32>
    %134 = arith.addf %133, %89 : vector<2x12x16xf32>
    %135 = vector.extract_strided_slice %87 {offsets = [0, 0, 15], sizes = [2, 12, 1], strides = [1, 1, 1]} : vector<2x12x16xf32> to vector<2x12x1xf32>
    %136 = vector.broadcast %135 : vector<2x12x1xf32> to vector<2x12x16xf32>
    %137 = arith.addf %136, %89 : vector<2x12x16xf32>
    %138 = tpu.concatenate %92, %95, %98, %101, %104, %107, %110, %113, %116, %119, %122, %125, %128, %131, %134, %137 in 2 : vector<2x12x16xf32>, vector<2x12x16xf32>, vector<2x12x16xf32>, vector<2x12x16xf32>, vector<2x12x16xf32>, vector<2x12x16xf32>, vector<2x12x16xf32>, vector<2x12x16xf32>, vector<2x12x16xf32>, vector<2x12x16xf32>, vector<2x12x16xf32>, vector<2x12x16xf32>, vector<2x12x16xf32>, vector<2x12x16xf32>, vector<2x12x16xf32>, vector<2x12x16xf32> -> vector<2x12x256xf32>
    %c0_32 = arith.constant 0 : index
    %c0_33 = arith.constant 0 : index
    %c0_34 = arith.constant 0 : index
    %139 = vector.load %arg2[%c0_32, %c0_33, %c0_34] : memref<2x12x256xf32, #tpu.memory_space<vmem>>, vector<2x12x256xf32>
    tpu.vector_store %arg2[%c0_32, %c0_33, %c0_34], %138 {strides = array<i32>} : memref<2x12x256xf32, #tpu.memory_space<vmem>>, vector<2x12x256xf32>,
    return
  }
}

</mosaic_0001>

<llo_original>
// kernel: relation_awareness.1
$region0: #{relation_awareness.1}
  #allocation0 [shape = 'u32[]', space=smem, size = 0x4, offset = 0x4, fixed_abs, tag = 'smem constant byte address 0x4 - core index']
  #allocation1 [shape = 'u32[144,128]{1,0:T(1,128)}', space=vmem, size = 0x12000, scoped, tag = 'internal scratch']
  %s0 = inlined_call_operand.hbm [shape: f32[2,12,8,16], index: 0, kind: input, shape index: {}]
  %s1 = inlined_call_operand.vmem [shape: f32[4,16,1], index: 1, kind: input, shape index: {}]
  %s2 = inlined_call_operand.vmem [shape: f32[2,12,256], index: 2, kind: output, shape index: {}]
  %s3 = sld [smem:[#allocation0]]
  $region22: #{relation_awareness.1} parent=0
    _
  %s5 = ssub.s32 1, %s3
  %s6 = scalar_select 0, %s5, %s3
  $region1: #{relation_awareness.1} parent=0
    #allocation2 [shape = 'u8[98304]{0}', space=vmem, size = 0x18000, scoped, tag = 'input window, operand 0, single buffered']
    #allocation3 [shape = 's32[1]{0}', space=sflag, size = 0x4, scoped, tag = 'scoped memory for relation_awareness.1']
    %7 = vsyncpa [#allocation3], 0
    // Predicated region
    $region2: #{relation_awareness.1} parent=1 // pred_check
      _
    $region3: #{relation_awareness.1} parent=1 // pred_check_branch
      %9 = sbr.rel (0) target = $region5
    $region4: #{relation_awareness.1} parent=1 // pred_region
      %s11 = ssub.s32 3072, 3072
      %12 = vsyncadd [#allocation3], %s11
      %s13 = sshll.u32 [#allocation2], 4
      %s14 = int_to_ptr.vmem [resolvable:$true] %s13
      %19 = dma.hbm_to_vmem [thread:$0]  %s0, 3072, %s14, [#allocation3], 128, 128, 8
    $region5: #{relation_awareness.1} parent=1 // pred_fallthru
      _
    // Predicated region
    $region6: #{relation_awareness.1} parent=1 // pred_check
      _
    $region7: #{relation_awareness.1} parent=1 // pred_check_branch
      %21 = sbr.rel (0) target = $region9
    $region8: #{relation_awareness.1} parent=1 // pred_region
      _
    $region9: #{relation_awareness.1} parent=1 // pred_fallthru
      _
    // Predicated region
    $region10: #{relation_awareness.1} parent=1 // pred_check
      _
    $region11: #{relation_awareness.1} parent=1 // pred_check_branch
      %23 = sbr.rel (0) target = $region13
    $region12: #{relation_awareness.1} parent=1 // pred_region
      %24 = dma.done [#allocation3], 3072
    $region13: #{relation_awareness.1} parent=1 // pred_fallthru
      _
    %v25 = vld [vmem:[#allocation2] sm:$0xff]
    %v26 = vld [vmem:[#allocation2 + $0x8] sm:$0xff]
    %v27 = vld [vmem:[#allocation2 + $0x10] sm:$0xff]
    %v28 = vld [vmem:[#allocation2 + $0x18] sm:$0xff]
    %v29 = vld [vmem:[#allocation2 + $0x20] sm:$0xff]
    %v30 = vld [vmem:[#allocation2 + $0x28] sm:$0xff]
    %v31 = vld [vmem:[#allocation2 + $0x30] sm:$0xff]
    %v32 = vld [vmem:[#allocation2 + $0x38] sm:$0xff]
    %v33 = vld [vmem:[#allocation2 + $0x40] sm:$0xff]
    %v34 = vld [vmem:[#allocation2 + $0x48] sm:$0xff]
    %v35 = vld [vmem:[#allocation2 + $0x50] sm:$0xff]
    %v36 = vld [vmem:[#allocation2 + $0x58] sm:$0xff]
    %v37 = vld [vmem:[#allocation2 + $0x60] sm:$0xff]
    %v38 = vld [vmem:[#allocation2 + $0x68] sm:$0xff]
    %v39 = vld [vmem:[#allocation2 + $0x70] sm:$0xff]
    %v40 = vld [vmem:[#allocation2 + $0x78] sm:$0xff]
    %v41 = vld [vmem:[#allocation2 + $0x80] sm:$0xff]
    %v42 = vld [vmem:[#allocation2 + $0x88] sm:$0xff]
    %v43 = vld [vmem:[#allocation2 + $0x90] sm:$0xff]
    %v44 = vld [vmem:[#allocation2 + $0x98] sm:$0xff]
    %v45 = vld [vmem:[#allocation2 + $0xa0] sm:$0xff]
    %v46 = vld [vmem:[#allocation2 + $0xa8] sm:$0xff]
    %v47 = vld [vmem:[#allocation2 + $0xb0] sm:$0xff]
    %v48 = vld [vmem:[#allocation2 + $0xb8] sm:$0xff]
    %v49 = vld [vmem:[%s1] sm:$0xff]
    %v50 = vld [vmem:[%s1 + $0x10] sm:$0xff]
    %v51 = vld [vmem:[%s1 + $0x20] sm:$0xff]
    %v52 = vld [vmem:[%s1 + $0x28] sm:$0xff]
    %v53 = vld [vmem:[%s1 + $0x30] sm:$0xff]
    %v54 = vld [vmem:[%s1 + $0x38] sm:$0xff]
    %56 = vset.pattern.permute.xlu0 0
    %57 = vperm.xlu0 %56, %v49
    %v58 = vpop.permute.xlu0 %57
    %v60 = vmul.f32 %v25, %v58
    %v61 = vmul.f32 %v26, %v58
    %v62 = vmul.f32 %v27, %v58
    %v63 = vmul.f32 %v28, %v58
    %v64 = vmul.f32 %v29, %v58
    %v65 = vmul.f32 %v30, %v58
    %v66 = vmul.f32 %v31, %v58
    %v67 = vmul.f32 %v32, %v58
    %v68 = vmul.f32 %v33, %v58
    %v69 = vmul.f32 %v34, %v58
    %v70 = vmul.f32 %v35, %v58
    %v71 = vmul.f32 %v36, %v58
    %v72 = vmul.f32 %v37, %v58
    %v73 = vmul.f32 %v38, %v58
    %v74 = vmul.f32 %v39, %v58
    %v75 = vmul.f32 %v40, %v58
    %v76 = vmul.f32 %v41, %v58
    %v77 = vmul.f32 %v42, %v58
    %v78 = vmul.f32 %v43, %v58
    %v79 = vmul.f32 %v44, %v58
    %v80 = vmul.f32 %v45, %v58
    %v81 = vmul.f32 %v46, %v58
    %v82 = vmul.f32 %v47, %v58
    %v83 = vmul.f32 %v48, %v58
    %vm84 = vcmask 130048
    %v85 = vsel %vm84, %v60, 0.0
    %v86 = vrot.slane %v85, 4
    %v87 = vadd.f32 %v85, %v86
    %v88 = vrot.slane %v87, 2
    %v89 = vadd.f32 %v87, %v88
    %v90 = vrot.slane %v89, 1
    %v91 = vadd.f32 %v89, %v90
    %v92 = vsel %vm84, %v61, 0.0
    %v93 = vrot.slane %v92, 4
    %v94 = vadd.f32 %v92, %v93
    %v95 = vrot.slane %v94, 2
    %v96 = vadd.f32 %v94, %v95
    %v97 = vrot.slane %v96, 1
    %v98 = vadd.f32 %v96, %v97
    %v99 = vsel %vm84, %v62, 0.0
    %v100 = vrot.slane %v99, 4
    %v101 = vadd.f32 %v99, %v100
    %v102 = vrot.slane %v101, 2
    %v103 = vadd.f32 %v101, %v102
    %v104 = vrot.slane %v103, 1
    %v105 = vadd.f32 %v103, %v104
    %v106 = vsel %vm84, %v63, 0.0
    %v107 = vrot.slane %v106, 4
    %v108 = vadd.f32 %v106, %v107
    %v109 = vrot.slane %v108, 2
    %v110 = vadd.f32 %v108, %v109
    %v111 = vrot.slane %v110, 1
    %v112 = vadd.f32 %v110, %v111
    %v113 = vsel %vm84, %v64, 0.0
    %v114 = vrot.slane %v113, 4
    %v115 = vadd.f32 %v113, %v114
    %v116 = vrot.slane %v115, 2
    %v117 = vadd.f32 %v115, %v116
    %v118 = vrot.slane %v117, 1
    %v119 = vadd.f32 %v117, %v118
    %v120 = vsel %vm84, %v65, 0.0
    %v121 = vrot.slane %v120, 4
    %v122 = vadd.f32 %v120, %v121
    %v123 = vrot.slane %v122, 2
    %v124 = vadd.f32 %v122, %v123
    %v125 = vrot.slane %v124, 1
    %v126 = vadd.f32 %v124, %v125
    %v127 = vsel %vm84, %v66, 0.0
    %v128 = vrot.slane %v127, 4
    %v129 = vadd.f32 %v127, %v128
    %v130 = vrot.slane %v129, 2
    %v131 = vadd.f32 %v129, %v130
    %v132 = vrot.slane %v131, 1
    %v133 = vadd.f32 %v131, %v132
    %v134 = vsel %vm84, %v67, 0.0
    %v135 = vrot.slane %v134, 4
    %v136 = vadd.f32 %v134, %v135
    %v137 = vrot.slane %v136, 2
    %v138 = vadd.f32 %v136, %v137
    %v139 = vrot.slane %v138, 1
    %v140 = vadd.f32 %v138, %v139
    %v141 = vsel %vm84, %v68, 0.0
    %v142 = vrot.slane %v141, 4
    %v143 = vadd.f32 %v141, %v142
    %v144 = vrot.slane %v143, 2
    %v145 = vadd.f32 %v143, %v144
    %v146 = vrot.slane %v145, 1
    %v147 = vadd.f32 %v145, %v146
    %v148 = vsel %vm84, %v69, 0.0
    %v149 = vrot.slane %v148, 4
    %v150 = vadd.f32 %v148, %v149
    %v151 = vrot.slane %v150, 2
    %v152 = vadd.f32 %v150, %v151
    %v153 = vrot.slane %v152, 1
    %v154 = vadd.f32 %v152, %v153
    %v155 = vsel %vm84, %v70, 0.0
    %v156 = vrot.slane %v155, 4
    %v157 = vadd.f32 %v155, %v156
    %v158 = vrot.slane %v157, 2
    %v159 = vadd.f32 %v157, %v158
    %v160 = vrot.slane %v159, 1
    %v161 = vadd.f32 %v159, %v160
    %v162 = vsel %vm84, %v71, 0.0
    %v163 = vrot.slane %v162, 4
    %v164 = vadd.f32 %v162, %v163
    %v165 = vrot.slane %v164, 2
    %v166 = vadd.f32 %v164, %v165
    %v167 = vrot.slane %v166, 1
    %v168 = vadd.f32 %v166, %v167
    %v169 = vsel %vm84, %v72, 0.0
    %v170 = vrot.slane %v169, 4
    %v171 = vadd.f32 %v169, %v170
    %v172 = vrot.slane %v171, 2
    %v173 = vadd.f32 %v171, %v172
    %v174 = vrot.slane %v173, 1
    %v175 = vadd.f32 %v173, %v174
    %v176 = vsel %vm84, %v73, 0.0
    %v177 = vrot.slane %v176, 4
    %v178 = vadd.f32 %v176, %v177
    %v179 = vrot.slane %v178, 2
    %v180 = vadd.f32 %v178, %v179
    %v181 = vrot.slane %v180, 1
    %v182 = vadd.f32 %v180, %v181
    %v183 = vsel %vm84, %v74, 0.0
    %v184 = vrot.slane %v183, 4
    %v185 = vadd.f32 %v183, %v184
    %v186 = vrot.slane %v185, 2
    %v187 = vadd.f32 %v185, %v186
    %v188 = vrot.slane %v187, 1
    %v189 = vadd.f32 %v187, %v188
    %v190 = vsel %vm84, %v75, 0.0
    %v191 = vrot.slane %v190, 4
    %v192 = vadd.f32 %v190, %v191
    %v193 = vrot.slane %v192, 2
    %v194 = vadd.f32 %v192, %v193
    %v195 = vrot.slane %v194, 1
    %v196 = vadd.f32 %v194, %v195
    %v197 = vsel %vm84, %v76, 0.0
    %v198 = vrot.slane %v197, 4
    %v199 = vadd.f32 %v197, %v198
    %v200 = vrot.slane %v199, 2
    %v201 = vadd.f32 %v199, %v200
    %v202 = vrot.slane %v201, 1
    %v203 = vadd.f32 %v201, %v202
    %v204 = vsel %vm84, %v77, 0.0
    %v205 = vrot.slane %v204, 4
    %v206 = vadd.f32 %v204, %v205
    %v207 = vrot.slane %v206, 2
    %v208 = vadd.f32 %v206, %v207
    %v209 = vrot.slane %v208, 1
    %v210 = vadd.f32 %v208, %v209
    %v211 = vsel %vm84, %v78, 0.0
    %v212 = vrot.slane %v211, 4
    %v213 = vadd.f32 %v211, %v212
    %v214 = vrot.slane %v213, 2
    %v215 = vadd.f32 %v213, %v214
    %v216 = vrot.slane %v215, 1
    %v217 = vadd.f32 %v215, %v216
    %v218 = vsel %vm84, %v79, 0.0
    %v219 = vrot.slane %v218, 4
    %v220 = vadd.f32 %v218, %v219
    %v221 = vrot.slane %v220, 2
    %v222 = vadd.f32 %v220, %v221
    %v223 = vrot.slane %v222, 1
    %v224 = vadd.f32 %v222, %v223
    %v225 = vsel %vm84, %v80, 0.0
    %v226 = vrot.slane %v225, 4
    %v227 = vadd.f32 %v225, %v226
    %v228 = vrot.slane %v227, 2
    %v229 = vadd.f32 %v227, %v228
    %v230 = vrot.slane %v229, 1
    %v231 = vadd.f32 %v229, %v230
    %v232 = vsel %vm84, %v81, 0.0
    %v233 = vrot.slane %v232, 4
    %v234 = vadd.f32 %v232, %v233
    %v235 = vrot.slane %v234, 2
    %v236 = vadd.f32 %v234, %v235
    %v237 = vrot.slane %v236, 1
    %v238 = vadd.f32 %v236, %v237
    %v239 = vsel %vm84, %v82, 0.0
    %v240 = vrot.slane %v239, 4
    %v241 = vadd.f32 %v239, %v240
    %v242 = vrot.slane %v241, 2
    %v243 = vadd.f32 %v241, %v242
    %v244 = vrot.slane %v243, 1
    %v245 = vadd.f32 %v243, %v244
    %v246 = vsel %vm84, %v83, 0.0
    %v247 = vrot.slane %v246, 4
    %v248 = vadd.f32 %v246, %v247
    %v249 = vrot.slane %v248, 2
    %v250 = vadd.f32 %v248, %v249
    %v251 = vrot.slane %v250, 1
    %v252 = vadd.f32 %v250, %v251
    %254 = vset.pattern.permute.xlu0 0
    %255 = vperm.xlu0 %254, %v50
    %v256 = vpop.permute.xlu0 %255
    %v258 = vmul.f32 %v25, %v256
    %v259 = vmul.f32 %v26, %v256
    %v260 = vmul.f32 %v27, %v256
    %v261 = vmul.f32 %v28, %v256
    %v262 = vmul.f32 %v29, %v256
    %v263 = vmul.f32 %v30, %v256
    %v264 = vmul.f32 %v31, %v256
    %v265 = vmul.f32 %v32, %v256
    %v266 = vmul.f32 %v33, %v256
    %v267 = vmul.f32 %v34, %v256
    %v268 = vmul.f32 %v35, %v256
    %v269 = vmul.f32 %v36, %v256
    %v270 = vmul.f32 %v37, %v256
    %v271 = vmul.f32 %v38, %v256
    %v272 = vmul.f32 %v39, %v256
    %v273 = vmul.f32 %v40, %v256
    %v274 = vmul.f32 %v41, %v256
    %v275 = vmul.f32 %v42, %v256
    %v276 = vmul.f32 %v43, %v256
    %v277 = vmul.f32 %v44, %v256
    %v278 = vmul.f32 %v45, %v256
    %v279 = vmul.f32 %v46, %v256
    %v280 = vmul.f32 %v47, %v256
    %v281 = vmul.f32 %v48, %v256
    %v282 = vsel %vm84, %v258, 0.0
    %v283 = vrot.slane %v282, 4
    %v284 = vadd.f32 %v282, %v283
    %v285 = vrot.slane %v284, 2
    %v286 = vadd.f32 %v284, %v285
    %v287 = vrot.slane %v286, 1
    %v288 = vadd.f32 %v286, %v287
    %v289 = vsel %vm84, %v259, 0.0
    %v290 = vrot.slane %v289, 4
    %v291 = vadd.f32 %v289, %v290
    %v292 = vrot.slane %v291, 2
    %v293 = vadd.f32 %v291, %v292
    %v294 = vrot.slane %v293, 1
    %v295 = vadd.f32 %v293, %v294
    %v296 = vsel %vm84, %v260, 0.0
    %v297 = vrot.slane %v296, 4
    %v298 = vadd.f32 %v296, %v297
    %v299 = vrot.slane %v298, 2
    %v300 = vadd.f32 %v298, %v299
    %v301 = vrot.slane %v300, 1
    %v302 = vadd.f32 %v300, %v301
    %v303 = vsel %vm84, %v261, 0.0
    %v304 = vrot.slane %v303, 4
    %v305 = vadd.f32 %v303, %v304
    %v306 = vrot.slane %v305, 2
    %v307 = vadd.f32 %v305, %v306
    %v308 = vrot.slane %v307, 1
    %v309 = vadd.f32 %v307, %v308
    %v310 = vsel %vm84, %v262, 0.0
    %v311 = vrot.slane %v310, 4
    %v312 = vadd.f32 %v310, %v311
    %v313 = vrot.slane %v312, 2
    %v314 = vadd.f32 %v312, %v313
    %v315 = vrot.slane %v314, 1
    %v316 = vadd.f32 %v314, %v315
    %v317 = vsel %vm84, %v263, 0.0
    %v318 = vrot.slane %v317, 4
    %v319 = vadd.f32 %v317, %v318
    %v320 = vrot.slane %v319, 2
    %v321 = vadd.f32 %v319, %v320
    %v322 = vrot.slane %v321, 1
    %v323 = vadd.f32 %v321, %v322
    %v324 = vsel %vm84, %v264, 0.0
    %v325 = vrot.slane %v324, 4
    %v326 = vadd.f32 %v324, %v325
    %v327 = vrot.slane %v326, 2
    %v328 = vadd.f32 %v326, %v327
    %v329 = vrot.slane %v328, 1
    %v330 = vadd.f32 %v328, %v329
    %v331 = vsel %vm84, %v265, 0.0
    %v332 = vrot.slane %v331, 4
    %v333 = vadd.f32 %v331, %v332
    %v334 = vrot.slane %v333, 2
    %v335 = vadd.f32 %v333, %v334
    %v336 = vrot.slane %v335, 1
    %v337 = vadd.f32 %v335, %v336
    %v338 = vsel %vm84, %v266, 0.0
    %v339 = vrot.slane %v338, 4
    %v340 = vadd.f32 %v338, %v339
    %v341 = vrot.slane %v340, 2
    %v342 = vadd.f32 %v340, %v341
    %v343 = vrot.slane %v342, 1
    %v344 = vadd.f32 %v342, %v343
    %v345 = vsel %vm84, %v267, 0.0
    %v346 = vrot.slane %v345, 4
    %v347 = vadd.f32 %v345, %v346
    %v348 = vrot.slane %v347, 2
    %v349 = vadd.f32 %v347, %v348
    %v350 = vrot.slane %v349, 1
    %v351 = vadd.f32 %v349, %v350
    %v352 = vsel %vm84, %v268, 0.0
    %v353 = vrot.slane %v352, 4
    %v354 = vadd.f32 %v352, %v353
    %v355 = vrot.slane %v354, 2
    %v356 = vadd.f32 %v354, %v355
    %v357 = vrot.slane %v356, 1
    %v358 = vadd.f32 %v356, %v357
    %v359 = vsel %vm84, %v269, 0.0
    %v360 = vrot.slane %v359, 4
    %v361 = vadd.f32 %v359, %v360
    %v362 = vrot.slane %v361, 2
    %v363 = vadd.f32 %v361, %v362
    %v364 = vrot.slane %v363, 1
    %v365 = vadd.f32 %v363, %v364
    %v366 = vsel %vm84, %v270, 0.0
    %v367 = vrot.slane %v366, 4
    %v368 = vadd.f32 %v366, %v367
    %v369 = vrot.slane %v368, 2
    %v370 = vadd.f32 %v368, %v369
    %v371 = vrot.slane %v370, 1
    %v372 = vadd.f32 %v370, %v371
    %v373 = vsel %vm84, %v271, 0.0
    %v374 = vrot.slane %v373, 4
    %v375 = vadd.f32 %v373, %v374
    %v376 = vrot.slane %v375, 2
    %v377 = vadd.f32 %v375, %v376
    %v378 = vrot.slane %v377, 1
    %v379 = vadd.f32 %v377, %v378
    %v380 = vsel %vm84, %v272, 0.0
    %v381 = vrot.slane %v380, 4
    %v382 = vadd.f32 %v380, %v381
    %v383 = vrot.slane %v382, 2
    %v384 = vadd.f32 %v382, %v383
    %v385 = vrot.slane %v384, 1
    %v386 = vadd.f32 %v384, %v385
    %v387 = vsel %vm84, %v273, 0.0
    %v388 = vrot.slane %v387, 4
    %v389 = vadd.f32 %v387, %v388
    %v390 = vrot.slane %v389, 2
    %v391 = vadd.f32 %v389, %v390
    %v392 = vrot.slane %v391, 1
    %v393 = vadd.f32 %v391, %v392
    %v394 = vsel %vm84, %v274, 0.0
    %v395 = vrot.slane %v394, 4
    %v396 = vadd.f32 %v394, %v395
    %v397 = vrot.slane %v396, 2
    %v398 = vadd.f32 %v396, %v397
    %v399 = vrot.slane %v398, 1
    %v400 = vadd.f32 %v398, %v399
    %v401 = vsel %vm84, %v275, 0.0
    %v402 = vrot.slane %v401, 4
    %v403 = vadd.f32 %v401, %v402
    %v404 = vrot.slane %v403, 2
    %v405 = vadd.f32 %v403, %v404
    %v406 = vrot.slane %v405, 1
    %v407 = vadd.f32 %v405, %v406
    %v408 = vsel %vm84, %v276, 0.0
    %v409 = vrot.slane %v408, 4
    %v410 = vadd.f32 %v408, %v409
    %v411 = vrot.slane %v410, 2
    %v412 = vadd.f32 %v410, %v411
    %v413 = vrot.slane %v412, 1
    %v414 = vadd.f32 %v412, %v413
    %v415 = vsel %vm84, %v277, 0.0
    %v416 = vrot.slane %v415, 4
    %v417 = vadd.f32 %v415, %v416
    %v418 = vrot.slane %v417, 2
    %v419 = vadd.f32 %v417, %v418
    %v420 = vrot.slane %v419, 1
    %v421 = vadd.f32 %v419, %v420
    %v422 = vsel %vm84, %v278, 0.0
    %v423 = vrot.slane %v422, 4
    %v424 = vadd.f32 %v422, %v423
    %v425 = vrot.slane %v424, 2
    %v426 = vadd.f32 %v424, %v425
    %v427 = vrot.slane %v426, 1
    %v428 = vadd.f32 %v426, %v427
    %v429 = vsel %vm84, %v279, 0.0
    %v430 = vrot.slane %v429, 4
    %v431 = vadd.f32 %v429, %v430
    %v432 = vrot.slane %v431, 2
    %v433 = vadd.f32 %v431, %v432
    %v434 = vrot.slane %v433, 1
    %v435 = vadd.f32 %v433, %v434
    %v436 = vsel %vm84, %v280, 0.0
    %v437 = vrot.slane %v436, 4
    %v438 = vadd.f32 %v436, %v437
    %v439 = vrot.slane %v438, 2
    %v440 = vadd.f32 %v438, %v439
    %v441 = vrot.slane %v440, 1
    %v442 = vadd.f32 %v440, %v441
    %v443 = vsel %vm84, %v281, 0.0
    %v444 = vrot.slane %v443, 4
    %v445 = vadd.f32 %v443, %v444
    %v446 = vrot.slane %v445, 2
    %v447 = vadd.f32 %v445, %v446
    %v448 = vrot.slane %v447, 1
    %v449 = vadd.f32 %v447, %v448
    %vm474 = vcmask 1041409
    %v475 = vsel %vm474, %v98, %v91
    %vm476 = vcmask 1042434
    %v477 = vsel %vm476, %v105, %v475
    %vm478 = vcmask 1043459
    %v479 = vsel %vm478, %v112, %v477
    %vm480 = vcmask 1044484
    %v481 = vsel %vm480, %v119, %v479
    %vm482 = vcmask 1045509
    %v483 = vsel %vm482, %v126, %v481
    %vm484 = vcmask 1046534
    %v485 = vsel %vm484, %v133, %v483
    %vm486 = vcmask 1047559
    %v487 = vsel %vm486, %v140, %v485
    %v488 = vsel %vm474, %v154, %v147
    %v489 = vsel %vm476, %v161, %v488
    %v490 = vsel %vm478, %v168, %v489
    %v491 = vsel %vm474, %v182, %v175
    %v492 = vsel %vm476, %v189, %v491
    %v493 = vsel %vm478, %v196, %v492
    %v494 = vsel %vm480, %v203, %v493
    %v495 = vsel %vm482, %v210, %v494
    %v496 = vsel %vm484, %v217, %v495
    %v497 = vsel %vm486, %v224, %v496
    %v498 = vsel %vm474, %v238, %v231
    %v499 = vsel %vm476, %v245, %v498
    %v500 = vsel %vm478, %v252, %v499
    %v505 = vsel %vm84, %v487, 0.0
    %506 = vadd.xlane.f32.xlu0 %v505
    %v507 = vpop.xlane.xlu0 %506
    %vm508 = vcmask 125952
    %v509 = vsel %vm508, %v490, 0.0
    %510 = vadd.xlane.f32.xlu0 %v509
    %v511 = vpop.xlane.xlu0 %510
    %v512 = vsel %vm84, %v497, 0.0
    %513 = vadd.xlane.f32.xlu0 %v512
    %v514 = vpop.xlane.xlu0 %513
    %v515 = vsel %vm508, %v500, 0.0
    %516 = vadd.xlane.f32.xlu0 %v515
    %v517 = vpop.xlane.xlu0 %516
    %v518 = vrcp.pop 16.0
    %v519 = vmul.f32 %v507, %v518
    %v520 = vmul.f32 %v511, %v518
    %v521 = vmul.f32 %v514, %v518
    %v522 = vmul.f32 %v517, %v518
    %v523 = vadd.f32 %v519, %v521
    %vm524 = vcmask 1043456
    %v525 = vsel %vm524, %v520, 0.0
    %v526 = vsel %vm524, %v522, 0.0
    %v527 = vadd.f32 %v525, %v526
    %v528 = vrcp.pop 2.0
    %v529 = vmul.f32 %v523, %v528
    %v530 = vmul.f32 %v527, %v528
    %v555 = vsel %vm474, %v295, %v288
    %v556 = vsel %vm476, %v302, %v555
    %v557 = vsel %vm478, %v309, %v556
    %v558 = vsel %vm480, %v316, %v557
    %v559 = vsel %vm482, %v323, %v558
    %v560 = vsel %vm484, %v330, %v559
    %v561 = vsel %vm486, %v337, %v560
    %v562 = vsel %vm474, %v351, %v344
    %v563 = vsel %vm476, %v358, %v562
    %v564 = vsel %vm478, %v365, %v563
    %v565 = vsel %vm474, %v379, %v372
    %v566 = vsel %vm476, %v386, %v565
    %v567 = vsel %vm478, %v393, %v566
    %v568 = vsel %vm480, %v400, %v567
    %v569 = vsel %vm482, %v407, %v568
    %v570 = vsel %vm484, %v414, %v569
    %v571 = vsel %vm486, %v421, %v570
    %v572 = vsel %vm474, %v435, %v428
    %v573 = vsel %vm476, %v442, %v572
    %v574 = vsel %vm478, %v449, %v573
    %v579 = vsel %vm84, %v561, 0.0
    %580 = vadd.xlane.f32.xlu0 %v579
    %v581 = vpop.xlane.xlu0 %580
    %v582 = vsel %vm508, %v564, 0.0
    %583 = vadd.xlane.f32.xlu0 %v582
    %v584 = vpop.xlane.xlu0 %583
    %v585 = vsel %vm84, %v571, 0.0
    %586 = vadd.xlane.f32.xlu0 %v585
    %v587 = vpop.xlane.xlu0 %586
    %v588 = vsel %vm508, %v574, 0.0
    %589 = vadd.xlane.f32.xlu0 %v588
    %v590 = vpop.xlane.xlu0 %589
    %v591 = vmul.f32 %v581, %v518
    %v592 = vmul.f32 %v584, %v518
    %v593 = vmul.f32 %v587, %v518
    %v594 = vmul.f32 %v590, %v518
    %v595 = vadd.f32 %v591, %v593
    %v596 = vsel %vm524, %v592, 0.0
    %v597 = vsel %vm524, %v594, 0.0
    %v598 = vadd.f32 %v596, %v597
    %v599 = vmul.f32 %v595, %v528
    %v600 = vmul.f32 %v598, %v528
    %v603 = vrot.slane %v529, 1
    %v604 = vrot.slane %v529, 2
    %v605 = vrot.slane %v529, 3
    %v606 = vrot.slane %v529, 4
    %v607 = vrot.slane %v529, 5
    %v608 = vrot.slane %v529, 6
    %v609 = vrot.slane %v529, 7
    %v610 = vrot.slane %v530, 1
    %v611 = vrot.slane %v530, 2
    %v612 = vrot.slane %v530, 3
    %v625 = vsub.f32 %v91, %v529
    %v626 = vsub.f32 %v98, %v603
    %v627 = vsub.f32 %v105, %v604
    %v628 = vsub.f32 %v112, %v605
    %v629 = vsub.f32 %v119, %v606
    %v630 = vsub.f32 %v126, %v607
    %v631 = vsub.f32 %v133, %v608
    %v632 = vsub.f32 %v140, %v609
    %v633 = vsub.f32 %v147, %v530
    %v634 = vsub.f32 %v154, %v610
    %v635 = vsub.f32 %v161, %v611
    %v636 = vsub.f32 %v168, %v612
    %v637 = vsub.f32 %v175, %v529
    %v638 = vsub.f32 %v182, %v603
    %v639 = vsub.f32 %v189, %v604
    %v640 = vsub.f32 %v196, %v605
    %v641 = vsub.f32 %v203, %v606
    %v642 = vsub.f32 %v210, %v607
    %v643 = vsub.f32 %v217, %v608
    %v644 = vsub.f32 %v224, %v609
    %v645 = vsub.f32 %v231, %v530
    %v646 = vsub.f32 %v238, %v610
    %v647 = vsub.f32 %v245, %v611
    %v648 = vsub.f32 %v252, %v612
    %v651 = vrot.slane %v599, 1
    %v652 = vrot.slane %v599, 2
    %v653 = vrot.slane %v599, 3
    %v654 = vrot.slane %v599, 4
    %v655 = vrot.slane %v599, 5
    %v656 = vrot.slane %v599, 6
    %v657 = vrot.slane %v599, 7
    %v658 = vrot.slane %v600, 1
    %v659 = vrot.slane %v600, 2
    %v660 = vrot.slane %v600, 3
    %v673 = vsub.f32 %v288, %v599
    %v674 = vsub.f32 %v295, %v651
    %v675 = vsub.f32 %v302, %v652
    %v676 = vsub.f32 %v309, %v653
    %v677 = vsub.f32 %v316, %v654
    %v678 = vsub.f32 %v323, %v655
    %v679 = vsub.f32 %v330, %v656
    %v680 = vsub.f32 %v337, %v657
    %v681 = vsub.f32 %v344, %v600
    %v682 = vsub.f32 %v351, %v658
    %v683 = vsub.f32 %v358, %v659
    %v684 = vsub.f32 %v365, %v660
    %v685 = vsub.f32 %v372, %v599
    %v686 = vsub.f32 %v379, %v651
    %v687 = vsub.f32 %v386, %v652
    %v688 = vsub.f32 %v393, %v653
    %v689 = vsub.f32 %v400, %v654
    %v690 = vsub.f32 %v407, %v655
    %v691 = vsub.f32 %v414, %v656
    %v692 = vsub.f32 %v421, %v657
    %v693 = vsub.f32 %v428, %v600
    %v694 = vsub.f32 %v435, %v658
    %v695 = vsub.f32 %v442, %v659
    %v696 = vsub.f32 %v449, %v660
    %v697 = vmul.f32 %v625, %v625
    %v698 = vmul.f32 %v626, %v626
    %v699 = vmul.f32 %v627, %v627
    %v700 = vmul.f32 %v628, %v628
    %v701 = vmul.f32 %v629, %v629
    %v702 = vmul.f32 %v630, %v630
    %v703 = vmul.f32 %v631, %v631
    %v704 = vmul.f32 %v632, %v632
    %v705 = vmul.f32 %v633, %v633
    %v706 = vmul.f32 %v634, %v634
    %v707 = vmul.f32 %v635, %v635
    %v708 = vmul.f32 %v636, %v636
    %v709 = vmul.f32 %v637, %v637
    %v710 = vmul.f32 %v638, %v638
    %v711 = vmul.f32 %v639, %v639
    %v712 = vmul.f32 %v640, %v640
    %v713 = vmul.f32 %v641, %v641
    %v714 = vmul.f32 %v642, %v642
    %v715 = vmul.f32 %v643, %v643
    %v716 = vmul.f32 %v644, %v644
    %v717 = vmul.f32 %v645, %v645
    %v718 = vmul.f32 %v646, %v646
    %v719 = vmul.f32 %v647, %v647
    %v720 = vmul.f32 %v648, %v648
    %v745 = vrot.slane %v698, 7
    %v746 = vsel %vm474, %v745, %v697
    %v747 = vrot.slane %v699, 6
    %v748 = vsel %vm476, %v747, %v746
    %v749 = vrot.slane %v700, 5
    %v750 = vsel %vm478, %v749, %v748
    %v751 = vrot.slane %v701, 4
    %v752 = vsel %vm480, %v751, %v750
    %v753 = vrot.slane %v702, 3
    %v754 = vsel %vm482, %v753, %v752
    %v755 = vrot.slane %v703, 2
    %v756 = vsel %vm484, %v755, %v754
    %v757 = vrot.slane %v704, 1
    %v758 = vsel %vm486, %v757, %v756
    %v759 = vrot.slane %v706, 7
    %v760 = vsel %vm474, %v759, %v705
    %v761 = vrot.slane %v707, 6
    %v762 = vsel %vm476, %v761, %v760
    %v763 = vrot.slane %v708, 5
    %v764 = vsel %vm478, %v763, %v762
    %v765 = vrot.slane %v710, 7
    %v766 = vsel %vm474, %v765, %v709
    %v767 = vrot.slane %v711, 6
    %v768 = vsel %vm476, %v767, %v766
    %v769 = vrot.slane %v712, 5
    %v770 = vsel %vm478, %v769, %v768
    %v771 = vrot.slane %v713, 4
    %v772 = vsel %vm480, %v771, %v770
    %v773 = vrot.slane %v714, 3
    %v774 = vsel %vm482, %v773, %v772
    %v775 = vrot.slane %v715, 2
    %v776 = vsel %vm484, %v775, %v774
    %v777 = vrot.slane %v716, 1
    %v778 = vsel %vm486, %v777, %v776
    %v779 = vrot.slane %v718, 7
    %v780 = vsel %vm474, %v779, %v717
    %v781 = vrot.slane %v719, 6
    %v782 = vsel %vm476, %v781, %v780
    %v783 = vrot.slane %v720, 5
    %v784 = vsel %vm478, %v783, %v782
    %v789 = vsel %vm84, %v758, 0.0
    %790 = vadd.xlane.f32.xlu0 %v789
    %v791 = vpop.xlane.xlu0 %790
    %v792 = vsel %vm508, %v764, 0.0
    %793 = vadd.xlane.f32.xlu0 %v792
    %v794 = vpop.xlane.xlu0 %793
    %v795 = vsel %vm84, %v778, 0.0
    %796 = vadd.xlane.f32.xlu0 %v795
    %v797 = vpop.xlane.xlu0 %796
    %v798 = vsel %vm508, %v784, 0.0
    %799 = vadd.xlane.f32.xlu0 %v798
    %v800 = vpop.xlane.xlu0 %799
    %v801 = vmul.f32 %v791, %v518
    %v802 = vmul.f32 %v794, %v518
    %v803 = vmul.f32 %v797, %v518
    %v804 = vmul.f32 %v800, %v518
    %v805 = vadd.f32 %v801, %v803
    %v806 = vsel %vm524, %v802, 0.0
    %v807 = vsel %vm524, %v804, 0.0
    %v808 = vadd.f32 %v806, %v807
    %v809 = vmul.f32 %v805, %v528
    %v810 = vmul.f32 %v808, %v528
    %v811 = vmul.f32 %v673, %v673
    %v812 = vmul.f32 %v674, %v674
    %v813 = vmul.f32 %v675, %v675
    %v814 = vmul.f32 %v676, %v676
    %v815 = vmul.f32 %v677, %v677
    %v816 = vmul.f32 %v678, %v678
    %v817 = vmul.f32 %v679, %v679
    %v818 = vmul.f32 %v680, %v680
    %v819 = vmul.f32 %v681, %v681
    %v820 = vmul.f32 %v682, %v682
    %v821 = vmul.f32 %v683, %v683
    %v822 = vmul.f32 %v684, %v684
    %v823 = vmul.f32 %v685, %v685
    %v824 = vmul.f32 %v686, %v686
    %v825 = vmul.f32 %v687, %v687
    %v826 = vmul.f32 %v688, %v688
    %v827 = vmul.f32 %v689, %v689
    %v828 = vmul.f32 %v690, %v690
    %v829 = vmul.f32 %v691, %v691
    %v830 = vmul.f32 %v692, %v692
    %v831 = vmul.f32 %v693, %v693
    %v832 = vmul.f32 %v694, %v694
    %v833 = vmul.f32 %v695, %v695
    %v834 = vmul.f32 %v696, %v696
    %v859 = vrot.slane %v812, 7
    %v860 = vsel %vm474, %v859, %v811
    %v861 = vrot.slane %v813, 6
    %v862 = vsel %vm476, %v861, %v860
    %v863 = vrot.slane %v814, 5
    %v864 = vsel %vm478, %v863, %v862
    %v865 = vrot.slane %v815, 4
    %v866 = vsel %vm480, %v865, %v864
    %v867 = vrot.slane %v816, 3
    %v868 = vsel %vm482, %v867, %v866
    %v869 = vrot.slane %v817, 2
    %v870 = vsel %vm484, %v869, %v868
    %v871 = vrot.slane %v818, 1
    %v872 = vsel %vm486, %v871, %v870
    %v873 = vrot.slane %v820, 7
    %v874 = vsel %vm474, %v873, %v819
    %v875 = vrot.slane %v821, 6
    %v876 = vsel %vm476, %v875, %v874
    %v877 = vrot.slane %v822, 5
    %v878 = vsel %vm478, %v877, %v876
    %v879 = vrot.slane %v824, 7
    %v880 = vsel %vm474, %v879, %v823
    %v881 = vrot.slane %v825, 6
    %v882 = vsel %vm476, %v881, %v880
    %v883 = vrot.slane %v826, 5
    %v884 = vsel %vm478, %v883, %v882
    %v885 = vrot.slane %v827, 4
    %v886 = vsel %vm480, %v885, %v884
    %v887 = vrot.slane %v828, 3
    %v888 = vsel %vm482, %v887, %v886
    %v889 = vrot.slane %v829, 2
    %v890 = vsel %vm484, %v889, %v888
    %v891 = vrot.slane %v830, 1
    %v892 = vsel %vm486, %v891, %v890
    %v893 = vrot.slane %v832, 7
    %v894 = vsel %vm474, %v893, %v831
    %v895 = vrot.slane %v833, 6
    %v896 = vsel %vm476, %v895, %v894
    %v897 = vrot.slane %v834, 5
    %v898 = vsel %vm478, %v897, %v896
    %v903 = vsel %vm84, %v872, 0.0
    %904 = vadd.xlane.f32.xlu0 %v903
    %v905 = vpop.xlane.xlu0 %904
    %v906 = vsel %vm508, %v878, 0.0
    %907 = vadd.xlane.f32.xlu0 %v906
    %v908 = vpop.xlane.xlu0 %907
    %v909 = vsel %vm84, %v892, 0.0
    %910 = vadd.xlane.f32.xlu0 %v909
    %v911 = vpop.xlane.xlu0 %910
    %v912 = vsel %vm508, %v898, 0.0
    %913 = vadd.xlane.f32.xlu0 %v912
    %v914 = vpop.xlane.xlu0 %913
    %v915 = vmul.f32 %v905, %v518
    %v916 = vmul.f32 %v908, %v518
    %v917 = vmul.f32 %v911, %v518
    %v918 = vmul.f32 %v914, %v518
    %v919 = vadd.f32 %v915, %v917
    %v920 = vsel %vm524, %v916, 0.0
    %v921 = vsel %vm524, %v918, 0.0
    %v922 = vadd.f32 %v920, %v921
    %v923 = vmul.f32 %v919, %v528
    %v924 = vmul.f32 %v922, %v528
    %v949 = vrot.slane %v626, 7
    %v950 = vsel %vm474, %v949, %v625
    %v951 = vrot.slane %v627, 6
    %v952 = vsel %vm476, %v951, %v950
    %v953 = vrot.slane %v628, 5
    %v954 = vsel %vm478, %v953, %v952
    %v955 = vrot.slane %v629, 4
    %v956 = vsel %vm480, %v955, %v954
    %v957 = vrot.slane %v630, 3
    %v958 = vsel %vm482, %v957, %v956
    %v959 = vrot.slane %v631, 2
    %v960 = vsel %vm484, %v959, %v958
    %v961 = vrot.slane %v632, 1
    %v962 = vsel %vm486, %v961, %v960
    %v963 = vrot.slane %v634, 7
    %v964 = vsel %vm474, %v963, %v633
    %v965 = vrot.slane %v635, 6
    %v966 = vsel %vm476, %v965, %v964
    %v967 = vrot.slane %v636, 5
    %v968 = vsel %vm478, %v967, %v966
    %v969 = vrot.slane %v638, 7
    %v970 = vsel %vm474, %v969, %v637
    %v971 = vrot.slane %v639, 6
    %v972 = vsel %vm476, %v971, %v970
    %v973 = vrot.slane %v640, 5
    %v974 = vsel %vm478, %v973, %v972
    %v975 = vrot.slane %v641, 4
    %v976 = vsel %vm480, %v975, %v974
    %v977 = vrot.slane %v642, 3
    %v978 = vsel %vm482, %v977, %v976
    %v979 = vrot.slane %v643, 2
    %v980 = vsel %vm484, %v979, %v978
    %v981 = vrot.slane %v644, 1
    %v982 = vsel %vm486, %v981, %v980
    %v983 = vrot.slane %v646, 7
    %v984 = vsel %vm474, %v983, %v645
    %v985 = vrot.slane %v647, 6
    %v986 = vsel %vm476, %v985, %v984
    %v987 = vrot.slane %v648, 5
    %v988 = vsel %vm478, %v987, %v986
    %v993 = vsel %vm84, %v962, 0.0
    %994 = vadd.xlane.f32.xlu0 %v993
    %v995 = vpop.xlane.xlu0 %994
    %v996 = vsel %vm508, %v968, 0.0
    %997 = vadd.xlane.f32.xlu0 %v996
    %v998 = vpop.xlane.xlu0 %997
    %v999 = vsel %vm84, %v982, 0.0
    %1000 = vadd.xlane.f32.xlu0 %v999
    %v1001 = vpop.xlane.xlu0 %1000
    %v1002 = vsel %vm508, %v988, 0.0
    %1003 = vadd.xlane.f32.xlu0 %v1002
    %v1004 = vpop.xlane.xlu0 %1003
    %v1005 = vmul.f32 %v995, %v518
    %v1006 = vmul.f32 %v998, %v518
    %v1007 = vmul.f32 %v1001, %v518
    %v1008 = vmul.f32 %v1004, %v518
    %v1033 = vrot.slane %v674, 7
    %v1034 = vsel %vm474, %v1033, %v673
    %v1035 = vrot.slane %v675, 6
    %v1036 = vsel %vm476, %v1035, %v1034
    %v1037 = vrot.slane %v676, 5
    %v1038 = vsel %vm478, %v1037, %v1036
    %v1039 = vrot.slane %v677, 4
    %v1040 = vsel %vm480, %v1039, %v1038
    %v1041 = vrot.slane %v678, 3
    %v1042 = vsel %vm482, %v1041, %v1040
    %v1043 = vrot.slane %v679, 2
    %v1044 = vsel %vm484, %v1043, %v1042
    %v1045 = vrot.slane %v680, 1
    %v1046 = vsel %vm486, %v1045, %v1044
    %v1047 = vrot.slane %v682, 7
    %v1048 = vsel %vm474, %v1047, %v681
    %v1049 = vrot.slane %v683, 6
    %v1050 = vsel %vm476, %v1049, %v1048
    %v1051 = vrot.slane %v684, 5
    %v1052 = vsel %vm478, %v1051, %v1050
    %v1053 = vrot.slane %v686, 7
    %v1054 = vsel %vm474, %v1053, %v685
    %v1055 = vrot.slane %v687, 6
    %v1056 = vsel %vm476, %v1055, %v1054
    %v1057 = vrot.slane %v688, 5
    %v1058 = vsel %vm478, %v1057, %v1056
    %v1059 = vrot.slane %v689, 4
    %v1060 = vsel %vm480, %v1059, %v1058
    %v1061 = vrot.slane %v690, 3
    %v1062 = vsel %vm482, %v1061, %v1060
    %v1063 = vrot.slane %v691, 2
    %v1064 = vsel %vm484, %v1063, %v1062
    %v1065 = vrot.slane %v692, 1
    %v1066 = vsel %vm486, %v1065, %v1064
    %v1067 = vrot.slane %v694, 7
    %v1068 = vsel %vm474, %v1067, %v693
    %v1069 = vrot.slane %v695, 6
    %v1070 = vsel %vm476, %v1069, %v1068
    %v1071 = vrot.slane %v696, 5
    %v1072 = vsel %vm478, %v1071, %v1070
    %v1077 = vsel %vm84, %v1046, 0.0
    %1078 = vadd.xlane.f32.xlu0 %v1077
    %v1079 = vpop.xlane.xlu0 %1078
    %v1080 = vsel %vm508, %v1052, 0.0
    %1081 = vadd.xlane.f32.xlu0 %v1080
    %v1082 = vpop.xlane.xlu0 %1081
    %v1083 = vsel %vm84, %v1066, 0.0
    %1084 = vadd.xlane.f32.xlu0 %v1083
    %v1085 = vpop.xlane.xlu0 %1084
    %v1086 = vsel %vm508, %v1072, 0.0
    %1087 = vadd.xlane.f32.xlu0 %v1086
    %v1088 = vpop.xlane.xlu0 %1087
    %v1089 = vmul.f32 %v1079, %v518
    %v1090 = vmul.f32 %v1082, %v518
    %v1091 = vmul.f32 %v1085, %v518
    %v1092 = vmul.f32 %v1088, %v518
    %v1093 = vmul.f32 %v1005, %v1089
    %v1094 = vmul.f32 %v1006, %v1090
    %v1095 = vmul.f32 %v1007, %v1091
    %v1096 = vmul.f32 %v1008, %v1092
    %v1097 = vadd.f32 %v1093, %v1095
    %v1098 = vsel %vm524, %v1094, 0.0
    %v1099 = vsel %vm524, %v1096, 0.0
    %v1100 = vadd.f32 %v1098, %v1099
    %v1101 = vmul.f32 %v1097, %v528
    %v1102 = vmul.f32 %v1100, %v528
    %v1103 = vadd.f32 %v529, %v599
    %v1104 = vadd.f32 %v530, %v600
    %v1105 = vadd.f32 %v809, %v923
    %v1106 = vadd.f32 %v810, %v924
    %v1107 = vmul.f32 %v1101, 2.0
    %v1108 = vmul.f32 %v1102, 2.0
    %v1109 = vadd.f32 %v1105, %v1107
    %v1110 = vadd.f32 %v1106, %v1108
    %v1111 = vmax.f32 %v1109, 0.0
    %v1112 = vmax.f32 %v1110, 0.0
    %v1113 = vadd.f32 %v1111, 1e-05
    %v1114 = vadd.f32 %v1112, 1e-05
    %v1115 = vrsqrt.pop %v1113
    %v1116 = vrsqrt.pop %v1114
    %v1117 = vmul.f32 %v51, %v1115
    %v1118 = vmul.f32 %v52, %v1116
    %v1119 = vmul.f32 %v1103, %v1117
    %v1120 = vmul.f32 %v1104, %v1118
    %v1121 = vsub.f32 %v53, %v1119
    %v1122 = vsub.f32 %v54, %v1120
    %1124 = vset.pattern.permute.xlu0 0
    %1125 = vperm.xlu0 %1124, %v1117
    %v1126 = vpop.permute.xlu0 %1125
    %1128 = vset.pattern.permute.xlu0 0
    %1129 = vperm.xlu0 %1128, %v1118
    %v1130 = vpop.permute.xlu0 %1129
    %v1131 = vrot.slane %v1126, 1
    %v1132 = vrot.slane %v1126, 2
    %v1133 = vrot.slane %v1126, 3
    %v1134 = vrot.slane %v1126, 4
    %v1135 = vrot.slane %v1126, 5
    %v1136 = vrot.slane %v1126, 6
    %v1137 = vrot.slane %v1126, 7
    %v1138 = vrot.slane %v1130, 1
    %v1139 = vrot.slane %v1130, 2
    %v1140 = vrot.slane %v1130, 3
    %v1153 = vmul.f32 %v91, %v1126
    %v1154 = vmul.f32 %v98, %v1131
    %v1155 = vmul.f32 %v105, %v1132
    %v1156 = vmul.f32 %v112, %v1133
    %v1157 = vmul.f32 %v119, %v1134
    %v1158 = vmul.f32 %v126, %v1135
    %v1159 = vmul.f32 %v133, %v1136
    %v1160 = vmul.f32 %v140, %v1137
    %v1161 = vmul.f32 %v147, %v1130
    %v1162 = vmul.f32 %v154, %v1138
    %v1163 = vmul.f32 %v161, %v1139
    %v1164 = vmul.f32 %v168, %v1140
    %v1165 = vmul.f32 %v175, %v1126
    %v1166 = vmul.f32 %v182, %v1131
    %v1167 = vmul.f32 %v189, %v1132
    %v1168 = vmul.f32 %v196, %v1133
    %v1169 = vmul.f32 %v203, %v1134
    %v1170 = vmul.f32 %v210, %v1135
    %v1171 = vmul.f32 %v217, %v1136
    %v1172 = vmul.f32 %v224, %v1137
    %v1173 = vmul.f32 %v231, %v1130
    %v1174 = vmul.f32 %v238, %v1138
    %v1175 = vmul.f32 %v245, %v1139
    %v1176 = vmul.f32 %v252, %v1140
    %1178 = vset.pattern.permute.xlu0 0
    %1179 = vperm.xlu0 %1178, %v1121
    %v1180 = vpop.permute.xlu0 %1179
    %1182 = vset.pattern.permute.xlu0 0
    %1183 = vperm.xlu0 %1182, %v1122
    %v1184 = vpop.permute.xlu0 %1183
    %v1185 = vrot.slane %v1180, 1
    %v1186 = vrot.slane %v1180, 2
    %v1187 = vrot.slane %v1180, 3
    %v1188 = vrot.slane %v1180, 4
    %v1189 = vrot.slane %v1180, 5
    %v1190 = vrot.slane %v1180, 6
    %v1191 = vrot.slane %v1180, 7
    %v1192 = vrot.slane %v1184, 1
    %v1193 = vrot.slane %v1184, 2
    %v1194 = vrot.slane %v1184, 3
    %v1207 = vadd.f32 %v1153, %v1180
    %v1208 = vadd.f32 %v1154, %v1185
    %v1209 = vadd.f32 %v1155, %v1186
    %v1210 = vadd.f32 %v1156, %v1187
    %v1211 = vadd.f32 %v1157, %v1188
    %v1212 = vadd.f32 %v1158, %v1189
    %v1213 = vadd.f32 %v1159, %v1190
    %v1214 = vadd.f32 %v1160, %v1191
    %v1215 = vadd.f32 %v1161, %v1184
    %v1216 = vadd.f32 %v1162, %v1192
    %v1217 = vadd.f32 %v1163, %v1193
    %v1218 = vadd.f32 %v1164, %v1194
    %v1219 = vadd.f32 %v1165, %v1180
    %v1220 = vadd.f32 %v1166, %v1185
    %v1221 = vadd.f32 %v1167, %v1186
    %v1222 = vadd.f32 %v1168, %v1187
    %v1223 = vadd.f32 %v1169, %v1188
    %v1224 = vadd.f32 %v1170, %v1189
    %v1225 = vadd.f32 %v1171, %v1190
    %v1226 = vadd.f32 %v1172, %v1191
    %v1227 = vadd.f32 %v1173, %v1184
    %v1228 = vadd.f32 %v1174, %v1192
    %v1229 = vadd.f32 %v1175, %v1193
    %v1230 = vadd.f32 %v1176, %v1194
    %v1231 = vmul.f32 %v288, %v1126
    %v1232 = vmul.f32 %v295, %v1131
    %v1233 = vmul.f32 %v302, %v1132
    %v1234 = vmul.f32 %v309, %v1133
    %v1235 = vmul.f32 %v316, %v1134
    %v1236 = vmul.f32 %v323, %v1135
    %v1237 = vmul.f32 %v330, %v1136
    %v1238 = vmul.f32 %v337, %v1137
    %v1239 = vmul.f32 %v344, %v1130
    %v1240 = vmul.f32 %v351, %v1138
    %v1241 = vmul.f32 %v358, %v1139
    %v1242 = vmul.f32 %v365, %v1140
    %v1243 = vmul.f32 %v372, %v1126
    %v1244 = vmul.f32 %v379, %v1131
    %v1245 = vmul.f32 %v386, %v1132
    %v1246 = vmul.f32 %v393, %v1133
    %v1247 = vmul.f32 %v400, %v1134
    %v1248 = vmul.f32 %v407, %v1135
    %v1249 = vmul.f32 %v414, %v1136
    %v1250 = vmul.f32 %v421, %v1137
    %v1251 = vmul.f32 %v428, %v1130
    %v1252 = vmul.f32 %v435, %v1138
    %v1253 = vmul.f32 %v442, %v1139
    %v1254 = vmul.f32 %v449, %v1140
    %1256 = vset.pattern.permute.xlu0 0
    %1257 = vperm.xlu0 %1256, %v1207
    %v1258 = vpop.permute.xlu0 %1257
    %1261 = vset.pattern.permute.xlu0 0
    %1262 = vperm.xlu0 %1261, %v1208
    %v1263 = vpop.permute.xlu0 %1262
    %1266 = vset.pattern.permute.xlu0 0
    %1267 = vperm.xlu0 %1266, %v1209
    %v1268 = vpop.permute.xlu0 %1267
    %1271 = vset.pattern.permute.xlu0 0
    %1272 = vperm.xlu0 %1271, %v1210
    %v1273 = vpop.permute.xlu0 %1272
    %1276 = vset.pattern.permute.xlu0 0
    %1277 = vperm.xlu0 %1276, %v1211
    %v1278 = vpop.permute.xlu0 %1277
    %1281 = vset.pattern.permute.xlu0 0
    %1282 = vperm.xlu0 %1281, %v1212
    %v1283 = vpop.permute.xlu0 %1282
    %1286 = vset.pattern.permute.xlu0 0
    %1287 = vperm.xlu0 %1286, %v1213
    %v1288 = vpop.permute.xlu0 %1287
    %1291 = vset.pattern.permute.xlu0 0
    %1292 = vperm.xlu0 %1291, %v1214
    %v1293 = vpop.permute.xlu0 %1292
    %1296 = vset.pattern.permute.xlu0 0
    %1297 = vperm.xlu0 %1296, %v1215
    %v1298 = vpop.permute.xlu0 %1297
    %1301 = vset.pattern.permute.xlu0 0
    %1302 = vperm.xlu0 %1301, %v1216
    %v1303 = vpop.permute.xlu0 %1302
    %1306 = vset.pattern.permute.xlu0 0
    %1307 = vperm.xlu0 %1306, %v1217
    %v1308 = vpop.permute.xlu0 %1307
    %1311 = vset.pattern.permute.xlu0 0
    %1312 = vperm.xlu0 %1311, %v1218
    %v1313 = vpop.permute.xlu0 %1312
    %1316 = vset.pattern.permute.xlu0 0
    %1317 = vperm.xlu0 %1316, %v1219
    %v1318 = vpop.permute.xlu0 %1317
    %1321 = vset.pattern.permute.xlu0 0
    %1322 = vperm.xlu0 %1321, %v1220
    %v1323 = vpop.permute.xlu0 %1322
    %1326 = vset.pattern.permute.xlu0 0
    %1327 = vperm.xlu0 %1326, %v1221
    %v1328 = vpop.permute.xlu0 %1327
    %1331 = vset.pattern.permute.xlu0 0
    %1332 = vperm.xlu0 %1331, %v1222
    %v1333 = vpop.permute.xlu0 %1332
    %1336 = vset.pattern.permute.xlu0 0
    %1337 = vperm.xlu0 %1336, %v1223
    %v1338 = vpop.permute.xlu0 %1337
    %1341 = vset.pattern.permute.xlu0 0
    %1342 = vperm.xlu0 %1341, %v1224
    %v1343 = vpop.permute.xlu0 %1342
    %1346 = vset.pattern.permute.xlu0 0
    %1347 = vperm.xlu0 %1346, %v1225
    %v1348 = vpop.permute.xlu0 %1347
    %1351 = vset.pattern.permute.xlu0 0
    %1352 = vperm.xlu0 %1351, %v1226
    %v1353 = vpop.permute.xlu0 %1352
    %1356 = vset.pattern.permute.xlu0 0
    %1357 = vperm.xlu0 %1356, %v1227
    %v1358 = vpop.permute.xlu0 %1357
    %1361 = vset.pattern.permute.xlu0 0
    %1362 = vperm.xlu0 %1361, %v1228
    %v1363 = vpop.permute.xlu0 %1362
    %1366 = vset.pattern.permute.xlu0 0
    %1367 = vperm.xlu0 %1366, %v1229
    %v1368 = vpop.permute.xlu0 %1367
    %1371 = vset.pattern.permute.xlu0 0
    %1372 = vperm.xlu0 %1371, %v1230
    %v1373 = vpop.permute.xlu0 %1372
    %v1375 = vadd.f32 %v1258, %v1231
    %v1376 = vadd.f32 %v1263, %v1232
    %v1377 = vadd.f32 %v1268, %v1233
    %v1378 = vadd.f32 %v1273, %v1234
    %v1379 = vadd.f32 %v1278, %v1235
    %v1380 = vadd.f32 %v1283, %v1236
    %v1381 = vadd.f32 %v1288, %v1237
    %v1382 = vadd.f32 %v1293, %v1238
    %v1383 = vadd.f32 %v1298, %v1239
    %v1384 = vadd.f32 %v1303, %v1240
    %v1385 = vadd.f32 %v1308, %v1241
    %v1386 = vadd.f32 %v1313, %v1242
    %v1387 = vadd.f32 %v1318, %v1243
    %v1388 = vadd.f32 %v1323, %v1244
    %v1389 = vadd.f32 %v1328, %v1245
    %v1390 = vadd.f32 %v1333, %v1246
    %v1391 = vadd.f32 %v1338, %v1247
    %v1392 = vadd.f32 %v1343, %v1248
    %v1393 = vadd.f32 %v1348, %v1249
    %v1394 = vadd.f32 %v1353, %v1250
    %v1395 = vadd.f32 %v1358, %v1251
    %v1396 = vadd.f32 %v1363, %v1252
    %v1397 = vadd.f32 %v1368, %v1253
    %v1398 = vadd.f32 %v1373, %v1254
    %1399 = vset.pattern.permute.xlu0 1
    %1400 = vperm.xlu0 %1399, %v1207
    %v1401 = vpop.permute.xlu0 %1400
    %1403 = vset.pattern.permute.xlu0 1
    %1404 = vperm.xlu0 %1403, %v1208
    %v1405 = vpop.permute.xlu0 %1404
    %1407 = vset.pattern.permute.xlu0 1
    %1408 = vperm.xlu0 %1407, %v1209
    %v1409 = vpop.permute.xlu0 %1408
    %1411 = vset.pattern.permute.xlu0 1
    %1412 = vperm.xlu0 %1411, %v1210
    %v1413 = vpop.permute.xlu0 %1412
    %1415 = vset.pattern.permute.xlu0 1
    %1416 = vperm.xlu0 %1415, %v1211
    %v1417 = vpop.permute.xlu0 %1416
    %1419 = vset.pattern.permute.xlu0 1
    %1420 = vperm.xlu0 %1419, %v1212
    %v1421 = vpop.permute.xlu0 %1420
    %1423 = vset.pattern.permute.xlu0 1
    %1424 = vperm.xlu0 %1423, %v1213
    %v1425 = vpop.permute.xlu0 %1424
    %1427 = vset.pattern.permute.xlu0 1
    %1428 = vperm.xlu0 %1427, %v1214
    %v1429 = vpop.permute.xlu0 %1428
    %1431 = vset.pattern.permute.xlu0 1
    %1432 = vperm.xlu0 %1431, %v1215
    %v1433 = vpop.permute.xlu0 %1432
    %1435 = vset.pattern.permute.xlu0 1
    %1436 = vperm.xlu0 %1435, %v1216
    %v1437 = vpop.permute.xlu0 %1436
    %1439 = vset.pattern.permute.xlu0 1
    %1440 = vperm.xlu0 %1439, %v1217
    %v1441 = vpop.permute.xlu0 %1440
    %1443 = vset.pattern.permute.xlu0 1
    %1444 = vperm.xlu0 %1443, %v1218
    %v1445 = vpop.permute.xlu0 %1444
    %1447 = vset.pattern.permute.xlu0 1
    %1448 = vperm.xlu0 %1447, %v1219
    %v1449 = vpop.permute.xlu0 %1448
    %1451 = vset.pattern.permute.xlu0 1
    %1452 = vperm.xlu0 %1451, %v1220
    %v1453 = vpop.permute.xlu0 %1452
    %1455 = vset.pattern.permute.xlu0 1
    %1456 = vperm.xlu0 %1455, %v1221
    %v1457 = vpop.permute.xlu0 %1456
    %1459 = vset.pattern.permute.xlu0 1
    %1460 = vperm.xlu0 %1459, %v1222
    %v1461 = vpop.permute.xlu0 %1460
    %1463 = vset.pattern.permute.xlu0 1
    %1464 = vperm.xlu0 %1463, %v1223
    %v1465 = vpop.permute.xlu0 %1464
    %1467 = vset.pattern.permute.xlu0 1
    %1468 = vperm.xlu0 %1467, %v1224
    %v1469 = vpop.permute.xlu0 %1468
    %1471 = vset.pattern.permute.xlu0 1
    %1472 = vperm.xlu0 %1471, %v1225
    %v1473 = vpop.permute.xlu0 %1472
    %1475 = vset.pattern.permute.xlu0 1
    %1476 = vperm.xlu0 %1475, %v1226
    %v1477 = vpop.permute.xlu0 %1476
    %1479 = vset.pattern.permute.xlu0 1
    %1480 = vperm.xlu0 %1479, %v1227
    %v1481 = vpop.permute.xlu0 %1480
    %1483 = vset.pattern.permute.xlu0 1
    %1484 = vperm.xlu0 %1483, %v1228
    %v1485 = vpop.permute.xlu0 %1484
    %1487 = vset.pattern.permute.xlu0 1
    %1488 = vperm.xlu0 %1487, %v1229
    %v1489 = vpop.permute.xlu0 %1488
    %1491 = vset.pattern.permute.xlu0 1
    %1492 = vperm.xlu0 %1491, %v1230
    %v1493 = vpop.permute.xlu0 %1492
    %v1495 = vadd.f32 %v1401, %v1231
    %v1496 = vadd.f32 %v1405, %v1232
    %v1497 = vadd.f32 %v1409, %v1233
    %v1498 = vadd.f32 %v1413, %v1234
    %v1499 = vadd.f32 %v1417, %v1235
    %v1500 = vadd.f32 %v1421, %v1236
    %v1501 = vadd.f32 %v1425, %v1237
    %v1502 = vadd.f32 %v1429, %v1238
    %v1503 = vadd.f32 %v1433, %v1239
    %v1504 = vadd.f32 %v1437, %v1240
    %v1505 = vadd.f32 %v1441, %v1241
    %v1506 = vadd.f32 %v1445, %v1242
    %v1507 = vadd.f32 %v1449, %v1243
    %v1508 = vadd.f32 %v1453, %v1244
    %v1509 = vadd.f32 %v1457, %v1245
    %v1510 = vadd.f32 %v1461, %v1246
    %v1511 = vadd.f32 %v1465, %v1247
    %v1512 = vadd.f32 %v1469, %v1248
    %v1513 = vadd.f32 %v1473, %v1249
    %v1514 = vadd.f32 %v1477, %v1250
    %v1515 = vadd.f32 %v1481, %v1251
    %v1516 = vadd.f32 %v1485, %v1252
    %v1517 = vadd.f32 %v1489, %v1253
    %v1518 = vadd.f32 %v1493, %v1254
    %1519 = vset.pattern.permute.xlu0 2
    %1520 = vperm.xlu0 %1519, %v1207
    %v1521 = vpop.permute.xlu0 %1520
    %1523 = vset.pattern.permute.xlu0 2
    %1524 = vperm.xlu0 %1523, %v1208
    %v1525 = vpop.permute.xlu0 %1524
    %1527 = vset.pattern.permute.xlu0 2
    %1528 = vperm.xlu0 %1527, %v1209
    %v1529 = vpop.permute.xlu0 %1528
    %1531 = vset.pattern.permute.xlu0 2
    %1532 = vperm.xlu0 %1531, %v1210
    %v1533 = vpop.permute.xlu0 %1532
    %1535 = vset.pattern.permute.xlu0 2
    %1536 = vperm.xlu0 %1535, %v1211
    %v1537 = vpop.permute.xlu0 %1536
    %1539 = vset.pattern.permute.xlu0 2
    %1540 = vperm.xlu0 %1539, %v1212
    %v1541 = vpop.permute.xlu0 %1540
    %1543 = vset.pattern.permute.xlu0 2
    %1544 = vperm.xlu0 %1543, %v1213
    %v1545 = vpop.permute.xlu0 %1544
    %1547 = vset.pattern.permute.xlu0 2
    %1548 = vperm.xlu0 %1547, %v1214
    %v1549 = vpop.permute.xlu0 %1548
    %1551 = vset.pattern.permute.xlu0 2
    %1552 = vperm.xlu0 %1551, %v1215
    %v1553 = vpop.permute.xlu0 %1552
    %1555 = vset.pattern.permute.xlu0 2
    %1556 = vperm.xlu0 %1555, %v1216
    %v1557 = vpop.permute.xlu0 %1556
    %1559 = vset.pattern.permute.xlu0 2
    %1560 = vperm.xlu0 %1559, %v1217
    %v1561 = vpop.permute.xlu0 %1560
    %1563 = vset.pattern.permute.xlu0 2
    %1564 = vperm.xlu0 %1563, %v1218
    %v1565 = vpop.permute.xlu0 %1564
    %1567 = vset.pattern.permute.xlu0 2
    %1568 = vperm.xlu0 %1567, %v1219
    %v1569 = vpop.permute.xlu0 %1568
    %1571 = vset.pattern.permute.xlu0 2
    %1572 = vperm.xlu0 %1571, %v1220
    %v1573 = vpop.permute.xlu0 %1572
    %1575 = vset.pattern.permute.xlu0 2
    %1576 = vperm.xlu0 %1575, %v1221
    %v1577 = vpop.permute.xlu0 %1576
    %1579 = vset.pattern.permute.xlu0 2
    %1580 = vperm.xlu0 %1579, %v1222
    %v1581 = vpop.permute.xlu0 %1580
    %1583 = vset.pattern.permute.xlu0 2
    %1584 = vperm.xlu0 %1583, %v1223
    %v1585 = vpop.permute.xlu0 %1584
    %1587 = vset.pattern.permute.xlu0 2
    %1588 = vperm.xlu0 %1587, %v1224
    %v1589 = vpop.permute.xlu0 %1588
    %1591 = vset.pattern.permute.xlu0 2
    %1592 = vperm.xlu0 %1591, %v1225
    %v1593 = vpop.permute.xlu0 %1592
    %1595 = vset.pattern.permute.xlu0 2
    %1596 = vperm.xlu0 %1595, %v1226
    %v1597 = vpop.permute.xlu0 %1596
    %1599 = vset.pattern.permute.xlu0 2
    %1600 = vperm.xlu0 %1599, %v1227
    %v1601 = vpop.permute.xlu0 %1600
    %1603 = vset.pattern.permute.xlu0 2
    %1604 = vperm.xlu0 %1603, %v1228
    %v1605 = vpop.permute.xlu0 %1604
    %1607 = vset.pattern.permute.xlu0 2
    %1608 = vperm.xlu0 %1607, %v1229
    %v1609 = vpop.permute.xlu0 %1608
    %1611 = vset.pattern.permute.xlu0 2
    %1612 = vperm.xlu0 %1611, %v1230
    %v1613 = vpop.permute.xlu0 %1612
    %v1615 = vadd.f32 %v1521, %v1231
    %v1616 = vadd.f32 %v1525, %v1232
    %v1617 = vadd.f32 %v1529, %v1233
    %v1618 = vadd.f32 %v1533, %v1234
    %v1619 = vadd.f32 %v1537, %v1235
    %v1620 = vadd.f32 %v1541, %v1236
    %v1621 = vadd.f32 %v1545, %v1237
    %v1622 = vadd.f32 %v1549, %v1238
    %v1623 = vadd.f32 %v1553, %v1239
    %v1624 = vadd.f32 %v1557, %v1240
    %v1625 = vadd.f32 %v1561, %v1241
    %v1626 = vadd.f32 %v1565, %v1242
    %v1627 = vadd.f32 %v1569, %v1243
    %v1628 = vadd.f32 %v1573, %v1244
    %v1629 = vadd.f32 %v1577, %v1245
    %v1630 = vadd.f32 %v1581, %v1246
    %v1631 = vadd.f32 %v1585, %v1247
    %v1632 = vadd.f32 %v1589, %v1248
    %v1633 = vadd.f32 %v1593, %v1249
    %v1634 = vadd.f32 %v1597, %v1250
    %v1635 = vadd.f32 %v1601, %v1251
    %v1636 = vadd.f32 %v1605, %v1252
    %v1637 = vadd.f32 %v1609, %v1253
    %v1638 = vadd.f32 %v1613, %v1254
    %1639 = vset.pattern.permute.xlu0 3
    %1640 = vperm.xlu0 %1639, %v1207
    %v1641 = vpop.permute.xlu0 %1640
    %1643 = vset.pattern.permute.xlu0 3
    %1644 = vperm.xlu0 %1643, %v1208
    %v1645 = vpop.permute.xlu0 %1644
    %1647 = vset.pattern.permute.xlu0 3
    %1648 = vperm.xlu0 %1647, %v1209
    %v1649 = vpop.permute.xlu0 %1648
    %1651 = vset.pattern.permute.xlu0 3
    %1652 = vperm.xlu0 %1651, %v1210
    %v1653 = vpop.permute.xlu0 %1652
    %1655 = vset.pattern.permute.xlu0 3
    %1656 = vperm.xlu0 %1655, %v1211
    %v1657 = vpop.permute.xlu0 %1656
    %1659 = vset.pattern.permute.xlu0 3
    %1660 = vperm.xlu0 %1659, %v1212
    %v1661 = vpop.permute.xlu0 %1660
    %1663 = vset.pattern.permute.xlu0 3
    %1664 = vperm.xlu0 %1663, %v1213
    %v1665 = vpop.permute.xlu0 %1664
    %1667 = vset.pattern.permute.xlu0 3
    %1668 = vperm.xlu0 %1667, %v1214
    %v1669 = vpop.permute.xlu0 %1668
    %1671 = vset.pattern.permute.xlu0 3
    %1672 = vperm.xlu0 %1671, %v1215
    %v1673 = vpop.permute.xlu0 %1672
    %1675 = vset.pattern.permute.xlu0 3
    %1676 = vperm.xlu0 %1675, %v1216
    %v1677 = vpop.permute.xlu0 %1676
    %1679 = vset.pattern.permute.xlu0 3
    %1680 = vperm.xlu0 %1679, %v1217
    %v1681 = vpop.permute.xlu0 %1680
    %1683 = vset.pattern.permute.xlu0 3
    %1684 = vperm.xlu0 %1683, %v1218
    %v1685 = vpop.permute.xlu0 %1684
    %1687 = vset.pattern.permute.xlu0 3
    %1688 = vperm.xlu0 %1687, %v1219
    %v1689 = vpop.permute.xlu0 %1688
    %1691 = vset.pattern.permute.xlu0 3
    %1692 = vperm.xlu0 %1691, %v1220
    %v1693 = vpop.permute.xlu0 %1692
    %1695 = vset.pattern.permute.xlu0 3
    %1696 = vperm.xlu0 %1695, %v1221
    %v1697 = vpop.permute.xlu0 %1696
    %1699 = vset.pattern.permute.xlu0 3
    %1700 = vperm.xlu0 %1699, %v1222
    %v1701 = vpop.permute.xlu0 %1700
    %1703 = vset.pattern.permute.xlu0 3
    %1704 = vperm.xlu0 %1703, %v1223
    %v1705 = vpop.permute.xlu0 %1704
    %1707 = vset.pattern.permute.xlu0 3
    %1708 = vperm.xlu0 %1707, %v1224
    %v1709 = vpop.permute.xlu0 %1708
    %1711 = vset.pattern.permute.xlu0 3
    %1712 = vperm.xlu0 %1711, %v1225
    %v1713 = vpop.permute.xlu0 %1712
    %1715 = vset.pattern.permute.xlu0 3
    %1716 = vperm.xlu0 %1715, %v1226
    %v1717 = vpop.permute.xlu0 %1716
    %1719 = vset.pattern.permute.xlu0 3
    %1720 = vperm.xlu0 %1719, %v1227
    %v1721 = vpop.permute.xlu0 %1720
    %1723 = vset.pattern.permute.xlu0 3
    %1724 = vperm.xlu0 %1723, %v1228
    %v1725 = vpop.permute.xlu0 %1724
    %1727 = vset.pattern.permute.xlu0 3
    %1728 = vperm.xlu0 %1727, %v1229
    %v1729 = vpop.permute.xlu0 %1728
    %1731 = vset.pattern.permute.xlu0 3
    %1732 = vperm.xlu0 %1731, %v1230
    %v1733 = vpop.permute.xlu0 %1732
    %v1735 = vadd.f32 %v1641, %v1231
    %v1736 = vadd.f32 %v1645, %v1232
    %v1737 = vadd.f32 %v1649, %v1233
    %v1738 = vadd.f32 %v1653, %v1234
    %v1739 = vadd.f32 %v1657, %v1235
    %v1740 = vadd.f32 %v1661, %v1236
    %v1741 = vadd.f32 %v1665, %v1237
    %v1742 = vadd.f32 %v1669, %v1238
    %v1743 = vadd.f32 %v1673, %v1239
    %v1744 = vadd.f32 %v1677, %v1240
    %v1745 = vadd.f32 %v1681, %v1241
    %v1746 = vadd.f32 %v1685, %v1242
    %v1747 = vadd.f32 %v1689, %v1243
    %v1748 = vadd.f32 %v1693, %v1244
    %v1749 = vadd.f32 %v1697, %v1245
    %v1750 = vadd.f32 %v1701, %v1246
    %v1751 = vadd.f32 %v1705, %v1247
    %v1752 = vadd.f32 %v1709, %v1248
    %v1753 = vadd.f32 %v1713, %v1249
    %v1754 = vadd.f32 %v1717, %v1250
    %v1755 = vadd.f32 %v1721, %v1251
    %v1756 = vadd.f32 %v1725, %v1252
    %v1757 = vadd.f32 %v1729, %v1253
    %v1758 = vadd.f32 %v1733, %v1254
    %1759 = vset.pattern.permute.xlu0 4
    %1760 = vperm.xlu0 %1759, %v1207
    %v1761 = vpop.permute.xlu0 %1760
    %1763 = vset.pattern.permute.xlu0 4
    %1764 = vperm.xlu0 %1763, %v1208
    %v1765 = vpop.permute.xlu0 %1764
    %1767 = vset.pattern.permute.xlu0 4
    %1768 = vperm.xlu0 %1767, %v1209
    %v1769 = vpop.permute.xlu0 %1768
    %1771 = vset.pattern.permute.xlu0 4
    %1772 = vperm.xlu0 %1771, %v1210
    %v1773 = vpop.permute.xlu0 %1772
    %1775 = vset.pattern.permute.xlu0 4
    %1776 = vperm.xlu0 %1775, %v1211
    %v1777 = vpop.permute.xlu0 %1776
    %1779 = vset.pattern.permute.xlu0 4
    %1780 = vperm.xlu0 %1779, %v1212
    %v1781 = vpop.permute.xlu0 %1780
    %1783 = vset.pattern.permute.xlu0 4
    %1784 = vperm.xlu0 %1783, %v1213
    %v1785 = vpop.permute.xlu0 %1784
    %1787 = vset.pattern.permute.xlu0 4
    %1788 = vperm.xlu0 %1787, %v1214
    %v1789 = vpop.permute.xlu0 %1788
    %1791 = vset.pattern.permute.xlu0 4
    %1792 = vperm.xlu0 %1791, %v1215
    %v1793 = vpop.permute.xlu0 %1792
    %1795 = vset.pattern.permute.xlu0 4
    %1796 = vperm.xlu0 %1795, %v1216
    %v1797 = vpop.permute.xlu0 %1796
    %1799 = vset.pattern.permute.xlu0 4
    %1800 = vperm.xlu0 %1799, %v1217
    %v1801 = vpop.permute.xlu0 %1800
    %1803 = vset.pattern.permute.xlu0 4
    %1804 = vperm.xlu0 %1803, %v1218
    %v1805 = vpop.permute.xlu0 %1804
    %1807 = vset.pattern.permute.xlu0 4
    %1808 = vperm.xlu0 %1807, %v1219
    %v1809 = vpop.permute.xlu0 %1808
    %1811 = vset.pattern.permute.xlu0 4
    %1812 = vperm.xlu0 %1811, %v1220
    %v1813 = vpop.permute.xlu0 %1812
    %1815 = vset.pattern.permute.xlu0 4
    %1816 = vperm.xlu0 %1815, %v1221
    %v1817 = vpop.permute.xlu0 %1816
    %1819 = vset.pattern.permute.xlu0 4
    %1820 = vperm.xlu0 %1819, %v1222
    %v1821 = vpop.permute.xlu0 %1820
    %1823 = vset.pattern.permute.xlu0 4
    %1824 = vperm.xlu0 %1823, %v1223
    %v1825 = vpop.permute.xlu0 %1824
    %1827 = vset.pattern.permute.xlu0 4
    %1828 = vperm.xlu0 %1827, %v1224
    %v1829 = vpop.permute.xlu0 %1828
    %1831 = vset.pattern.permute.xlu0 4
    %1832 = vperm.xlu0 %1831, %v1225
    %v1833 = vpop.permute.xlu0 %1832
    %1835 = vset.pattern.permute.xlu0 4
    %1836 = vperm.xlu0 %1835, %v1226
    %v1837 = vpop.permute.xlu0 %1836
    %1839 = vset.pattern.permute.xlu0 4
    %1840 = vperm.xlu0 %1839, %v1227
    %v1841 = vpop.permute.xlu0 %1840
    %1843 = vset.pattern.permute.xlu0 4
    %1844 = vperm.xlu0 %1843, %v1228
    %v1845 = vpop.permute.xlu0 %1844
    %1847 = vset.pattern.permute.xlu0 4
    %1848 = vperm.xlu0 %1847, %v1229
    %v1849 = vpop.permute.xlu0 %1848
    %1851 = vset.pattern.permute.xlu0 4
    %1852 = vperm.xlu0 %1851, %v1230
    %v1853 = vpop.permute.xlu0 %1852
    %v1855 = vadd.f32 %v1761, %v1231
    %v1856 = vadd.f32 %v1765, %v1232
    %v1857 = vadd.f32 %v1769, %v1233
    %v1858 = vadd.f32 %v1773, %v1234
    %v1859 = vadd.f32 %v1777, %v1235
    %v1860 = vadd.f32 %v1781, %v1236
    %v1861 = vadd.f32 %v1785, %v1237
    %v1862 = vadd.f32 %v1789, %v1238
    %v1863 = vadd.f32 %v1793, %v1239
    %v1864 = vadd.f32 %v1797, %v1240
    %v1865 = vadd.f32 %v1801, %v1241
    %v1866 = vadd.f32 %v1805, %v1242
    %v1867 = vadd.f32 %v1809, %v1243
    %v1868 = vadd.f32 %v1813, %v1244
    %v1869 = vadd.f32 %v1817, %v1245
    %v1870 = vadd.f32 %v1821, %v1246
    %v1871 = vadd.f32 %v1825, %v1247
    %v1872 = vadd.f32 %v1829, %v1248
    %v1873 = vadd.f32 %v1833, %v1249
    %v1874 = vadd.f32 %v1837, %v1250
    %v1875 = vadd.f32 %v1841, %v1251
    %v1876 = vadd.f32 %v1845, %v1252
    %v1877 = vadd.f32 %v1849, %v1253
    %v1878 = vadd.f32 %v1853, %v1254
    %1879 = vset.pattern.permute.xlu0 5
    %1880 = vperm.xlu0 %1879, %v1207
    %v1881 = vpop.permute.xlu0 %1880
    %1883 = vset.pattern.permute.xlu0 5
    %1884 = vperm.xlu0 %1883, %v1208
    %v1885 = vpop.permute.xlu0 %1884
    %1887 = vset.pattern.permute.xlu0 5
    %1888 = vperm.xlu0 %1887, %v1209
    %v1889 = vpop.permute.xlu0 %1888
    %1891 = vset.pattern.permute.xlu0 5
    %1892 = vperm.xlu0 %1891, %v1210
    %v1893 = vpop.permute.xlu0 %1892
    %1895 = vset.pattern.permute.xlu0 5
    %1896 = vperm.xlu0 %1895, %v1211
    %v1897 = vpop.permute.xlu0 %1896
    %1899 = vset.pattern.permute.xlu0 5
    %1900 = vperm.xlu0 %1899, %v1212
    %v1901 = vpop.permute.xlu0 %1900
    %1903 = vset.pattern.permute.xlu0 5
    %1904 = vperm.xlu0 %1903, %v1213
    %v1905 = vpop.permute.xlu0 %1904
    %1907 = vset.pattern.permute.xlu0 5
    %1908 = vperm.xlu0 %1907, %v1214
    %v1909 = vpop.permute.xlu0 %1908
    %1911 = vset.pattern.permute.xlu0 5
    %1912 = vperm.xlu0 %1911, %v1215
    %v1913 = vpop.permute.xlu0 %1912
    %1915 = vset.pattern.permute.xlu0 5
    %1916 = vperm.xlu0 %1915, %v1216
    %v1917 = vpop.permute.xlu0 %1916
    %1919 = vset.pattern.permute.xlu0 5
    %1920 = vperm.xlu0 %1919, %v1217
    %v1921 = vpop.permute.xlu0 %1920
    %1923 = vset.pattern.permute.xlu0 5
    %1924 = vperm.xlu0 %1923, %v1218
    %v1925 = vpop.permute.xlu0 %1924
    %1927 = vset.pattern.permute.xlu0 5
    %1928 = vperm.xlu0 %1927, %v1219
    %v1929 = vpop.permute.xlu0 %1928
    %1931 = vset.pattern.permute.xlu0 5
    %1932 = vperm.xlu0 %1931, %v1220
    %v1933 = vpop.permute.xlu0 %1932
    %1935 = vset.pattern.permute.xlu0 5
    %1936 = vperm.xlu0 %1935, %v1221
    %v1937 = vpop.permute.xlu0 %1936
    %1939 = vset.pattern.permute.xlu0 5
    %1940 = vperm.xlu0 %1939, %v1222
    %v1941 = vpop.permute.xlu0 %1940
    %1943 = vset.pattern.permute.xlu0 5
    %1944 = vperm.xlu0 %1943, %v1223
    %v1945 = vpop.permute.xlu0 %1944
    %1947 = vset.pattern.permute.xlu0 5
    %1948 = vperm.xlu0 %1947, %v1224
    %v1949 = vpop.permute.xlu0 %1948
    %1951 = vset.pattern.permute.xlu0 5
    %1952 = vperm.xlu0 %1951, %v1225
    %v1953 = vpop.permute.xlu0 %1952
    %1955 = vset.pattern.permute.xlu0 5
    %1956 = vperm.xlu0 %1955, %v1226
    %v1957 = vpop.permute.xlu0 %1956
    %1959 = vset.pattern.permute.xlu0 5
    %1960 = vperm.xlu0 %1959, %v1227
    %v1961 = vpop.permute.xlu0 %1960
    %1963 = vset.pattern.permute.xlu0 5
    %1964 = vperm.xlu0 %1963, %v1228
    %v1965 = vpop.permute.xlu0 %1964
    %1967 = vset.pattern.permute.xlu0 5
    %1968 = vperm.xlu0 %1967, %v1229
    %v1969 = vpop.permute.xlu0 %1968
    %1971 = vset.pattern.permute.xlu0 5
    %1972 = vperm.xlu0 %1971, %v1230
    %v1973 = vpop.permute.xlu0 %1972
    %v1975 = vadd.f32 %v1881, %v1231
    %v1976 = vadd.f32 %v1885, %v1232
    %v1977 = vadd.f32 %v1889, %v1233
    %v1978 = vadd.f32 %v1893, %v1234
    %v1979 = vadd.f32 %v1897, %v1235
    %v1980 = vadd.f32 %v1901, %v1236
    %v1981 = vadd.f32 %v1905, %v1237
    %v1982 = vadd.f32 %v1909, %v1238
    %v1983 = vadd.f32 %v1913, %v1239
    %v1984 = vadd.f32 %v1917, %v1240
    %v1985 = vadd.f32 %v1921, %v1241
    %v1986 = vadd.f32 %v1925, %v1242
    %v1987 = vadd.f32 %v1929, %v1243
    %v1988 = vadd.f32 %v1933, %v1244
    %v1989 = vadd.f32 %v1937, %v1245
    %v1990 = vadd.f32 %v1941, %v1246
    %v1991 = vadd.f32 %v1945, %v1247
    %v1992 = vadd.f32 %v1949, %v1248
    %v1993 = vadd.f32 %v1953, %v1249
    %v1994 = vadd.f32 %v1957, %v1250
    %v1995 = vadd.f32 %v1961, %v1251
    %v1996 = vadd.f32 %v1965, %v1252
    %v1997 = vadd.f32 %v1969, %v1253
    %v1998 = vadd.f32 %v1973, %v1254
    %1999 = vset.pattern.permute.xlu0 6
    %2000 = vperm.xlu0 %1999, %v1207
    %v2001 = vpop.permute.xlu0 %2000
    %2003 = vset.pattern.permute.xlu0 6
    %2004 = vperm.xlu0 %2003, %v1208
    %v2005 = vpop.permute.xlu0 %2004
    %2007 = vset.pattern.permute.xlu0 6
    %2008 = vperm.xlu0 %2007, %v1209
    %v2009 = vpop.permute.xlu0 %2008
    %2011 = vset.pattern.permute.xlu0 6
    %2012 = vperm.xlu0 %2011, %v1210
    %v2013 = vpop.permute.xlu0 %2012
    %2015 = vset.pattern.permute.xlu0 6
    %2016 = vperm.xlu0 %2015, %v1211
    %v2017 = vpop.permute.xlu0 %2016
    %2019 = vset.pattern.permute.xlu0 6
    %2020 = vperm.xlu0 %2019, %v1212
    %v2021 = vpop.permute.xlu0 %2020
    %2023 = vset.pattern.permute.xlu0 6
    %2024 = vperm.xlu0 %2023, %v1213
    %v2025 = vpop.permute.xlu0 %2024
    %2027 = vset.pattern.permute.xlu0 6
    %2028 = vperm.xlu0 %2027, %v1214
    %v2029 = vpop.permute.xlu0 %2028
    %2031 = vset.pattern.permute.xlu0 6
    %2032 = vperm.xlu0 %2031, %v1215
    %v2033 = vpop.permute.xlu0 %2032
    %2035 = vset.pattern.permute.xlu0 6
    %2036 = vperm.xlu0 %2035, %v1216
    %v2037 = vpop.permute.xlu0 %2036
    %2039 = vset.pattern.permute.xlu0 6
    %2040 = vperm.xlu0 %2039, %v1217
    %v2041 = vpop.permute.xlu0 %2040
    %2043 = vset.pattern.permute.xlu0 6
    %2044 = vperm.xlu0 %2043, %v1218
    %v2045 = vpop.permute.xlu0 %2044
    %2047 = vset.pattern.permute.xlu0 6
    %2048 = vperm.xlu0 %2047, %v1219
    %v2049 = vpop.permute.xlu0 %2048
    %2051 = vset.pattern.permute.xlu0 6
    %2052 = vperm.xlu0 %2051, %v1220
    %v2053 = vpop.permute.xlu0 %2052
    %2055 = vset.pattern.permute.xlu0 6
    %2056 = vperm.xlu0 %2055, %v1221
    %v2057 = vpop.permute.xlu0 %2056
    %2059 = vset.pattern.permute.xlu0 6
    %2060 = vperm.xlu0 %2059, %v1222
    %v2061 = vpop.permute.xlu0 %2060
    %2063 = vset.pattern.permute.xlu0 6
    %2064 = vperm.xlu0 %2063, %v1223
    %v2065 = vpop.permute.xlu0 %2064
    %2067 = vset.pattern.permute.xlu0 6
    %2068 = vperm.xlu0 %2067, %v1224
    %v2069 = vpop.permute.xlu0 %2068
    %2071 = vset.pattern.permute.xlu0 6
    %2072 = vperm.xlu0 %2071, %v1225
    %v2073 = vpop.permute.xlu0 %2072
    %2075 = vset.pattern.permute.xlu0 6
    %2076 = vperm.xlu0 %2075, %v1226
    %v2077 = vpop.permute.xlu0 %2076
    %2079 = vset.pattern.permute.xlu0 6
    %2080 = vperm.xlu0 %2079, %v1227
    %v2081 = vpop.permute.xlu0 %2080
    %2083 = vset.pattern.permute.xlu0 6
    %2084 = vperm.xlu0 %2083, %v1228
    %v2085 = vpop.permute.xlu0 %2084
    %2087 = vset.pattern.permute.xlu0 6
    %2088 = vperm.xlu0 %2087, %v1229
    %v2089 = vpop.permute.xlu0 %2088
    %2091 = vset.pattern.permute.xlu0 6
    %2092 = vperm.xlu0 %2091, %v1230
    %v2093 = vpop.permute.xlu0 %2092
    %v2095 = vadd.f32 %v2001, %v1231
    %v2096 = vadd.f32 %v2005, %v1232
    %v2097 = vadd.f32 %v2009, %v1233
    %v2098 = vadd.f32 %v2013, %v1234
    %v2099 = vadd.f32 %v2017, %v1235
    %v2100 = vadd.f32 %v2021, %v1236
    %v2101 = vadd.f32 %v2025, %v1237
    %v2102 = vadd.f32 %v2029, %v1238
    %v2103 = vadd.f32 %v2033, %v1239
    %v2104 = vadd.f32 %v2037, %v1240
    %v2105 = vadd.f32 %v2041, %v1241
    %v2106 = vadd.f32 %v2045, %v1242
    %v2107 = vadd.f32 %v2049, %v1243
    %v2108 = vadd.f32 %v2053, %v1244
    %v2109 = vadd.f32 %v2057, %v1245
    %v2110 = vadd.f32 %v2061, %v1246
    %v2111 = vadd.f32 %v2065, %v1247
    %v2112 = vadd.f32 %v2069, %v1248
    %v2113 = vadd.f32 %v2073, %v1249
    %v2114 = vadd.f32 %v2077, %v1250
    %v2115 = vadd.f32 %v2081, %v1251
    %v2116 = vadd.f32 %v2085, %v1252
    %v2117 = vadd.f32 %v2089, %v1253
    %v2118 = vadd.f32 %v2093, %v1254
    %2119 = vset.pattern.permute.xlu0 7
    %2120 = vperm.xlu0 %2119, %v1207
    %v2121 = vpop.permute.xlu0 %2120
    %2123 = vset.pattern.permute.xlu0 7
    %2124 = vperm.xlu0 %2123, %v1208
    %v2125 = vpop.permute.xlu0 %2124
    %2127 = vset.pattern.permute.xlu0 7
    %2128 = vperm.xlu0 %2127, %v1209
    %v2129 = vpop.permute.xlu0 %2128
    %2131 = vset.pattern.permute.xlu0 7
    %2132 = vperm.xlu0 %2131, %v1210
    %v2133 = vpop.permute.xlu0 %2132
    %2135 = vset.pattern.permute.xlu0 7
    %2136 = vperm.xlu0 %2135, %v1211
    %v2137 = vpop.permute.xlu0 %2136
    %2139 = vset.pattern.permute.xlu0 7
    %2140 = vperm.xlu0 %2139, %v1212
    %v2141 = vpop.permute.xlu0 %2140
    %2143 = vset.pattern.permute.xlu0 7
    %2144 = vperm.xlu0 %2143, %v1213
    %v2145 = vpop.permute.xlu0 %2144
    %2147 = vset.pattern.permute.xlu0 7
    %2148 = vperm.xlu0 %2147, %v1214
    %v2149 = vpop.permute.xlu0 %2148
    %2151 = vset.pattern.permute.xlu0 7
    %2152 = vperm.xlu0 %2151, %v1215
    %v2153 = vpop.permute.xlu0 %2152
    %2155 = vset.pattern.permute.xlu0 7
    %2156 = vperm.xlu0 %2155, %v1216
    %v2157 = vpop.permute.xlu0 %2156
    %2159 = vset.pattern.permute.xlu0 7
    %2160 = vperm.xlu0 %2159, %v1217
    %v2161 = vpop.permute.xlu0 %2160
    %2163 = vset.pattern.permute.xlu0 7
    %2164 = vperm.xlu0 %2163, %v1218
    %v2165 = vpop.permute.xlu0 %2164
    %2167 = vset.pattern.permute.xlu0 7
    %2168 = vperm.xlu0 %2167, %v1219
    %v2169 = vpop.permute.xlu0 %2168
    %2171 = vset.pattern.permute.xlu0 7
    %2172 = vperm.xlu0 %2171, %v1220
    %v2173 = vpop.permute.xlu0 %2172
    %2175 = vset.pattern.permute.xlu0 7
    %2176 = vperm.xlu0 %2175, %v1221
    %v2177 = vpop.permute.xlu0 %2176
    %2179 = vset.pattern.permute.xlu0 7
    %2180 = vperm.xlu0 %2179, %v1222
    %v2181 = vpop.permute.xlu0 %2180
    %2183 = vset.pattern.permute.xlu0 7
    %2184 = vperm.xlu0 %2183, %v1223
    %v2185 = vpop.permute.xlu0 %2184
    %2187 = vset.pattern.permute.xlu0 7
    %2188 = vperm.xlu0 %2187, %v1224
    %v2189 = vpop.permute.xlu0 %2188
    %2191 = vset.pattern.permute.xlu0 7
    %2192 = vperm.xlu0 %2191, %v1225
    %v2193 = vpop.permute.xlu0 %2192
    %2195 = vset.pattern.permute.xlu0 7
    %2196 = vperm.xlu0 %2195, %v1226
    %v2197 = vpop.permute.xlu0 %2196
    %2199 = vset.pattern.permute.xlu0 7
    %2200 = vperm.xlu0 %2199, %v1227
    %v2201 = vpop.permute.xlu0 %2200
    %2203 = vset.pattern.permute.xlu0 7
    %2204 = vperm.xlu0 %2203, %v1228
    %v2205 = vpop.permute.xlu0 %2204
    %2207 = vset.pattern.permute.xlu0 7
    %2208 = vperm.xlu0 %2207, %v1229
    %v2209 = vpop.permute.xlu0 %2208
    %2211 = vset.pattern.permute.xlu0 7
    %2212 = vperm.xlu0 %2211, %v1230
    %v2213 = vpop.permute.xlu0 %2212
    %v2215 = vadd.f32 %v2121, %v1231
    %v2216 = vadd.f32 %v2125, %v1232
    %v2217 = vadd.f32 %v2129, %v1233
    %v2218 = vadd.f32 %v2133, %v1234
    %v2219 = vadd.f32 %v2137, %v1235
    %v2220 = vadd.f32 %v2141, %v1236
    %v2221 = vadd.f32 %v2145, %v1237
    %v2222 = vadd.f32 %v2149, %v1238
    %v2223 = vadd.f32 %v2153, %v1239
    %v2224 = vadd.f32 %v2157, %v1240
    %v2225 = vadd.f32 %v2161, %v1241
    %v2226 = vadd.f32 %v2165, %v1242
    %v2227 = vadd.f32 %v2169, %v1243
    %v2228 = vadd.f32 %v2173, %v1244
    %v2229 = vadd.f32 %v2177, %v1245
    %v2230 = vadd.f32 %v2181, %v1246
    %v2231 = vadd.f32 %v2185, %v1247
    %v2232 = vadd.f32 %v2189, %v1248
    %v2233 = vadd.f32 %v2193, %v1249
    %v2234 = vadd.f32 %v2197, %v1250
    %v2235 = vadd.f32 %v2201, %v1251
    %v2236 = vadd.f32 %v2205, %v1252
    %v2237 = vadd.f32 %v2209, %v1253
    %v2238 = vadd.f32 %v2213, %v1254
    %2239 = vset.pattern.permute.xlu0 8
    %2240 = vperm.xlu0 %2239, %v1207
    %v2241 = vpop.permute.xlu0 %2240
    %2243 = vset.pattern.permute.xlu0 8
    %2244 = vperm.xlu0 %2243, %v1208
    %v2245 = vpop.permute.xlu0 %2244
    %2247 = vset.pattern.permute.xlu0 8
    %2248 = vperm.xlu0 %2247, %v1209
    %v2249 = vpop.permute.xlu0 %2248
    %2251 = vset.pattern.permute.xlu0 8
    %2252 = vperm.xlu0 %2251, %v1210
    %v2253 = vpop.permute.xlu0 %2252
    %2255 = vset.pattern.permute.xlu0 8
    %2256 = vperm.xlu0 %2255, %v1211
    %v2257 = vpop.permute.xlu0 %2256
    %2259 = vset.pattern.permute.xlu0 8
    %2260 = vperm.xlu0 %2259, %v1212
    %v2261 = vpop.permute.xlu0 %2260
    %2263 = vset.pattern.permute.xlu0 8
    %2264 = vperm.xlu0 %2263, %v1213
    %v2265 = vpop.permute.xlu0 %2264
    %2267 = vset.pattern.permute.xlu0 8
    %2268 = vperm.xlu0 %2267, %v1214
    %v2269 = vpop.permute.xlu0 %2268
    %2271 = vset.pattern.permute.xlu0 8
    %2272 = vperm.xlu0 %2271, %v1215
    %v2273 = vpop.permute.xlu0 %2272
    %2275 = vset.pattern.permute.xlu0 8
    %2276 = vperm.xlu0 %2275, %v1216
    %v2277 = vpop.permute.xlu0 %2276
    %2279 = vset.pattern.permute.xlu0 8
    %2280 = vperm.xlu0 %2279, %v1217
    %v2281 = vpop.permute.xlu0 %2280
    %2283 = vset.pattern.permute.xlu0 8
    %2284 = vperm.xlu0 %2283, %v1218
    %v2285 = vpop.permute.xlu0 %2284
    %2287 = vset.pattern.permute.xlu0 8
    %2288 = vperm.xlu0 %2287, %v1219
    %v2289 = vpop.permute.xlu0 %2288
    %2291 = vset.pattern.permute.xlu0 8
    %2292 = vperm.xlu0 %2291, %v1220
    %v2293 = vpop.permute.xlu0 %2292
    %2295 = vset.pattern.permute.xlu0 8
    %2296 = vperm.xlu0 %2295, %v1221
    %v2297 = vpop.permute.xlu0 %2296
    %2299 = vset.pattern.permute.xlu0 8
    %2300 = vperm.xlu0 %2299, %v1222
    %v2301 = vpop.permute.xlu0 %2300
    %2303 = vset.pattern.permute.xlu0 8
    %2304 = vperm.xlu0 %2303, %v1223
    %v2305 = vpop.permute.xlu0 %2304
    %2307 = vset.pattern.permute.xlu0 8
    %2308 = vperm.xlu0 %2307, %v1224
    %v2309 = vpop.permute.xlu0 %2308
    %2311 = vset.pattern.permute.xlu0 8
    %2312 = vperm.xlu0 %2311, %v1225
    %v2313 = vpop.permute.xlu0 %2312
    %2315 = vset.pattern.permute.xlu0 8
    %2316 = vperm.xlu0 %2315, %v1226
    %v2317 = vpop.permute.xlu0 %2316
    %2319 = vset.pattern.permute.xlu0 8
    %2320 = vperm.xlu0 %2319, %v1227
    %v2321 = vpop.permute.xlu0 %2320
    %2323 = vset.pattern.permute.xlu0 8
    %2324 = vperm.xlu0 %2323, %v1228
    %v2325 = vpop.permute.xlu0 %2324
    %2327 = vset.pattern.permute.xlu0 8
    %2328 = vperm.xlu0 %2327, %v1229
    %v2329 = vpop.permute.xlu0 %2328
    %2331 = vset.pattern.permute.xlu0 8
    %2332 = vperm.xlu0 %2331, %v1230
    %v2333 = vpop.permute.xlu0 %2332
    %v2335 = vadd.f32 %v2241, %v1231
    %v2336 = vadd.f32 %v2245, %v1232
    %v2337 = vadd.f32 %v2249, %v1233
    %v2338 = vadd.f32 %v2253, %v1234
    %v2339 = vadd.f32 %v2257, %v1235
    %v2340 = vadd.f32 %v2261, %v1236
    %v2341 = vadd.f32 %v2265, %v1237
    %v2342 = vadd.f32 %v2269, %v1238
    %v2343 = vadd.f32 %v2273, %v1239
    %v2344 = vadd.f32 %v2277, %v1240
    %v2345 = vadd.f32 %v2281, %v1241
    %v2346 = vadd.f32 %v2285, %v1242
    %v2347 = vadd.f32 %v2289, %v1243
    %v2348 = vadd.f32 %v2293, %v1244
    %v2349 = vadd.f32 %v2297, %v1245
    %v2350 = vadd.f32 %v2301, %v1246
    %v2351 = vadd.f32 %v2305, %v1247
    %v2352 = vadd.f32 %v2309, %v1248
    %v2353 = vadd.f32 %v2313, %v1249
    %v2354 = vadd.f32 %v2317, %v1250
    %v2355 = vadd.f32 %v2321, %v1251
    %v2356 = vadd.f32 %v2325, %v1252
    %v2357 = vadd.f32 %v2329, %v1253
    %v2358 = vadd.f32 %v2333, %v1254
    %2359 = vset.pattern.permute.xlu0 9
    %2360 = vperm.xlu0 %2359, %v1207
    %v2361 = vpop.permute.xlu0 %2360
    %2363 = vset.pattern.permute.xlu0 9
    %2364 = vperm.xlu0 %2363, %v1208
    %v2365 = vpop.permute.xlu0 %2364
    %2367 = vset.pattern.permute.xlu0 9
    %2368 = vperm.xlu0 %2367, %v1209
    %v2369 = vpop.permute.xlu0 %2368
    %2371 = vset.pattern.permute.xlu0 9
    %2372 = vperm.xlu0 %2371, %v1210
    %v2373 = vpop.permute.xlu0 %2372
    %2375 = vset.pattern.permute.xlu0 9
    %2376 = vperm.xlu0 %2375, %v1211
    %v2377 = vpop.permute.xlu0 %2376
    %2379 = vset.pattern.permute.xlu0 9
    %2380 = vperm.xlu0 %2379, %v1212
    %v2381 = vpop.permute.xlu0 %2380
    %2383 = vset.pattern.permute.xlu0 9
    %2384 = vperm.xlu0 %2383, %v1213
    %v2385 = vpop.permute.xlu0 %2384
    %2387 = vset.pattern.permute.xlu0 9
    %2388 = vperm.xlu0 %2387, %v1214
    %v2389 = vpop.permute.xlu0 %2388
    %2391 = vset.pattern.permute.xlu0 9
    %2392 = vperm.xlu0 %2391, %v1215
    %v2393 = vpop.permute.xlu0 %2392
    %2395 = vset.pattern.permute.xlu0 9
    %2396 = vperm.xlu0 %2395, %v1216
    %v2397 = vpop.permute.xlu0 %2396
    %2399 = vset.pattern.permute.xlu0 9
    %2400 = vperm.xlu0 %2399, %v1217
    %v2401 = vpop.permute.xlu0 %2400
    %2403 = vset.pattern.permute.xlu0 9
    %2404 = vperm.xlu0 %2403, %v1218
    %v2405 = vpop.permute.xlu0 %2404
    %2407 = vset.pattern.permute.xlu0 9
    %2408 = vperm.xlu0 %2407, %v1219
    %v2409 = vpop.permute.xlu0 %2408
    %2411 = vset.pattern.permute.xlu0 9
    %2412 = vperm.xlu0 %2411, %v1220
    %v2413 = vpop.permute.xlu0 %2412
    %2415 = vset.pattern.permute.xlu0 9
    %2416 = vperm.xlu0 %2415, %v1221
    %v2417 = vpop.permute.xlu0 %2416
    %2419 = vset.pattern.permute.xlu0 9
    %2420 = vperm.xlu0 %2419, %v1222
    %v2421 = vpop.permute.xlu0 %2420
    %2423 = vset.pattern.permute.xlu0 9
    %2424 = vperm.xlu0 %2423, %v1223
    %v2425 = vpop.permute.xlu0 %2424
    %2427 = vset.pattern.permute.xlu0 9
    %2428 = vperm.xlu0 %2427, %v1224
    %v2429 = vpop.permute.xlu0 %2428
    %2431 = vset.pattern.permute.xlu0 9
    %2432 = vperm.xlu0 %2431, %v1225
    %v2433 = vpop.permute.xlu0 %2432
    %2435 = vset.pattern.permute.xlu0 9
    %2436 = vperm.xlu0 %2435, %v1226
    %v2437 = vpop.permute.xlu0 %2436
    %2439 = vset.pattern.permute.xlu0 9
    %2440 = vperm.xlu0 %2439, %v1227
    %v2441 = vpop.permute.xlu0 %2440
    %2443 = vset.pattern.permute.xlu0 9
    %2444 = vperm.xlu0 %2443, %v1228
    %v2445 = vpop.permute.xlu0 %2444
    %2447 = vset.pattern.permute.xlu0 9
    %2448 = vperm.xlu0 %2447, %v1229
    %v2449 = vpop.permute.xlu0 %2448
    %2451 = vset.pattern.permute.xlu0 9
    %2452 = vperm.xlu0 %2451, %v1230
    %v2453 = vpop.permute.xlu0 %2452
    %v2455 = vadd.f32 %v2361, %v1231
    %v2456 = vadd.f32 %v2365, %v1232
    %v2457 = vadd.f32 %v2369, %v1233
    %v2458 = vadd.f32 %v2373, %v1234
    %v2459 = vadd.f32 %v2377, %v1235
    %v2460 = vadd.f32 %v2381, %v1236
    %v2461 = vadd.f32 %v2385, %v1237
    %v2462 = vadd.f32 %v2389, %v1238
    %v2463 = vadd.f32 %v2393, %v1239
    %v2464 = vadd.f32 %v2397, %v1240
    %v2465 = vadd.f32 %v2401, %v1241
    %v2466 = vadd.f32 %v2405, %v1242
    %v2467 = vadd.f32 %v2409, %v1243
    %v2468 = vadd.f32 %v2413, %v1244
    %v2469 = vadd.f32 %v2417, %v1245
    %v2470 = vadd.f32 %v2421, %v1246
    %v2471 = vadd.f32 %v2425, %v1247
    %v2472 = vadd.f32 %v2429, %v1248
    %v2473 = vadd.f32 %v2433, %v1249
    %v2474 = vadd.f32 %v2437, %v1250
    %v2475 = vadd.f32 %v2441, %v1251
    %v2476 = vadd.f32 %v2445, %v1252
    %v2477 = vadd.f32 %v2449, %v1253
    %v2478 = vadd.f32 %v2453, %v1254
    %2479 = vset.pattern.permute.xlu0 10
    %2480 = vperm.xlu0 %2479, %v1207
    %v2481 = vpop.permute.xlu0 %2480
    %2483 = vset.pattern.permute.xlu0 10
    %2484 = vperm.xlu0 %2483, %v1208
    %v2485 = vpop.permute.xlu0 %2484
    %2487 = vset.pattern.permute.xlu0 10
    %2488 = vperm.xlu0 %2487, %v1209
    %v2489 = vpop.permute.xlu0 %2488
    %2491 = vset.pattern.permute.xlu0 10
    %2492 = vperm.xlu0 %2491, %v1210
    %v2493 = vpop.permute.xlu0 %2492
    %2495 = vset.pattern.permute.xlu0 10
    %2496 = vperm.xlu0 %2495, %v1211
    %v2497 = vpop.permute.xlu0 %2496
    %2499 = vset.pattern.permute.xlu0 10
    %2500 = vperm.xlu0 %2499, %v1212
    %v2501 = vpop.permute.xlu0 %2500
    %2503 = vset.pattern.permute.xlu0 10
    %2504 = vperm.xlu0 %2503, %v1213
    %v2505 = vpop.permute.xlu0 %2504
    %2507 = vset.pattern.permute.xlu0 10
    %2508 = vperm.xlu0 %2507, %v1214
    %v2509 = vpop.permute.xlu0 %2508
    %2511 = vset.pattern.permute.xlu0 10
    %2512 = vperm.xlu0 %2511, %v1215
    %v2513 = vpop.permute.xlu0 %2512
    %2515 = vset.pattern.permute.xlu0 10
    %2516 = vperm.xlu0 %2515, %v1216
    %v2517 = vpop.permute.xlu0 %2516
    %2519 = vset.pattern.permute.xlu0 10
    %2520 = vperm.xlu0 %2519, %v1217
    %v2521 = vpop.permute.xlu0 %2520
    %2523 = vset.pattern.permute.xlu0 10
    %2524 = vperm.xlu0 %2523, %v1218
    %v2525 = vpop.permute.xlu0 %2524
    %2527 = vset.pattern.permute.xlu0 10
    %2528 = vperm.xlu0 %2527, %v1219
    %v2529 = vpop.permute.xlu0 %2528
    %2531 = vset.pattern.permute.xlu0 10
    %2532 = vperm.xlu0 %2531, %v1220
    %v2533 = vpop.permute.xlu0 %2532
    %2535 = vset.pattern.permute.xlu0 10
    %2536 = vperm.xlu0 %2535, %v1221
    %v2537 = vpop.permute.xlu0 %2536
    %2539 = vset.pattern.permute.xlu0 10
    %2540 = vperm.xlu0 %2539, %v1222
    %v2541 = vpop.permute.xlu0 %2540
    %2543 = vset.pattern.permute.xlu0 10
    %2544 = vperm.xlu0 %2543, %v1223
    %v2545 = vpop.permute.xlu0 %2544
    %2547 = vset.pattern.permute.xlu0 10
    %2548 = vperm.xlu0 %2547, %v1224
    %v2549 = vpop.permute.xlu0 %2548
    %2551 = vset.pattern.permute.xlu0 10
    %2552 = vperm.xlu0 %2551, %v1225
    %v2553 = vpop.permute.xlu0 %2552
    %2555 = vset.pattern.permute.xlu0 10
    %2556 = vperm.xlu0 %2555, %v1226
    %v2557 = vpop.permute.xlu0 %2556
    %2559 = vset.pattern.permute.xlu0 10
    %2560 = vperm.xlu0 %2559, %v1227
    %v2561 = vpop.permute.xlu0 %2560
    %2563 = vset.pattern.permute.xlu0 10
    %2564 = vperm.xlu0 %2563, %v1228
    %v2565 = vpop.permute.xlu0 %2564
    %2567 = vset.pattern.permute.xlu0 10
    %2568 = vperm.xlu0 %2567, %v1229
    %v2569 = vpop.permute.xlu0 %2568
    %2571 = vset.pattern.permute.xlu0 10
    %2572 = vperm.xlu0 %2571, %v1230
    %v2573 = vpop.permute.xlu0 %2572
    %v2575 = vadd.f32 %v2481, %v1231
    %v2576 = vadd.f32 %v2485, %v1232
    %v2577 = vadd.f32 %v2489, %v1233
    %v2578 = vadd.f32 %v2493, %v1234
    %v2579 = vadd.f32 %v2497, %v1235
    %v2580 = vadd.f32 %v2501, %v1236
    %v2581 = vadd.f32 %v2505, %v1237
    %v2582 = vadd.f32 %v2509, %v1238
    %v2583 = vadd.f32 %v2513, %v1239
    %v2584 = vadd.f32 %v2517, %v1240
    %v2585 = vadd.f32 %v2521, %v1241
    %v2586 = vadd.f32 %v2525, %v1242
    %v2587 = vadd.f32 %v2529, %v1243
    %v2588 = vadd.f32 %v2533, %v1244
    %v2589 = vadd.f32 %v2537, %v1245
    %v2590 = vadd.f32 %v2541, %v1246
    %v2591 = vadd.f32 %v2545, %v1247
    %v2592 = vadd.f32 %v2549, %v1248
    %v2593 = vadd.f32 %v2553, %v1249
    %v2594 = vadd.f32 %v2557, %v1250
    %v2595 = vadd.f32 %v2561, %v1251
    %v2596 = vadd.f32 %v2565, %v1252
    %v2597 = vadd.f32 %v2569, %v1253
    %v2598 = vadd.f32 %v2573, %v1254
    %2599 = vset.pattern.permute.xlu0 11
    %2600 = vperm.xlu0 %2599, %v1207
    %v2601 = vpop.permute.xlu0 %2600
    %2603 = vset.pattern.permute.xlu0 11
    %2604 = vperm.xlu0 %2603, %v1208
    %v2605 = vpop.permute.xlu0 %2604
    %2607 = vset.pattern.permute.xlu0 11
    %2608 = vperm.xlu0 %2607, %v1209
    %v2609 = vpop.permute.xlu0 %2608
    %2611 = vset.pattern.permute.xlu0 11
    %2612 = vperm.xlu0 %2611, %v1210
    %v2613 = vpop.permute.xlu0 %2612
    %2615 = vset.pattern.permute.xlu0 11
    %2616 = vperm.xlu0 %2615, %v1211
    %v2617 = vpop.permute.xlu0 %2616
    %2619 = vset.pattern.permute.xlu0 11
    %2620 = vperm.xlu0 %2619, %v1212
    %v2621 = vpop.permute.xlu0 %2620
    %2623 = vset.pattern.permute.xlu0 11
    %2624 = vperm.xlu0 %2623, %v1213
    %v2625 = vpop.permute.xlu0 %2624
    %2627 = vset.pattern.permute.xlu0 11
    %2628 = vperm.xlu0 %2627, %v1214
    %v2629 = vpop.permute.xlu0 %2628
    %2631 = vset.pattern.permute.xlu0 11
    %2632 = vperm.xlu0 %2631, %v1215
    %v2633 = vpop.permute.xlu0 %2632
    %2635 = vset.pattern.permute.xlu0 11
    %2636 = vperm.xlu0 %2635, %v1216
    %v2637 = vpop.permute.xlu0 %2636
    %2639 = vset.pattern.permute.xlu0 11
    %2640 = vperm.xlu0 %2639, %v1217
    %v2641 = vpop.permute.xlu0 %2640
    %2643 = vset.pattern.permute.xlu0 11
    %2644 = vperm.xlu0 %2643, %v1218
    %v2645 = vpop.permute.xlu0 %2644
    %2647 = vset.pattern.permute.xlu0 11
    %2648 = vperm.xlu0 %2647, %v1219
    %v2649 = vpop.permute.xlu0 %2648
    %2651 = vset.pattern.permute.xlu0 11
    %2652 = vperm.xlu0 %2651, %v1220
    %v2653 = vpop.permute.xlu0 %2652
    %2655 = vset.pattern.permute.xlu0 11
    %2656 = vperm.xlu0 %2655, %v1221
    %v2657 = vpop.permute.xlu0 %2656
    %2659 = vset.pattern.permute.xlu0 11
    %2660 = vperm.xlu0 %2659, %v1222
    %v2661 = vpop.permute.xlu0 %2660
    %2663 = vset.pattern.permute.xlu0 11
    %2664 = vperm.xlu0 %2663, %v1223
    %v2665 = vpop.permute.xlu0 %2664
    %2667 = vset.pattern.permute.xlu0 11
    %2668 = vperm.xlu0 %2667, %v1224
    %v2669 = vpop.permute.xlu0 %2668
    %2671 = vset.pattern.permute.xlu0 11
    %2672 = vperm.xlu0 %2671, %v1225
    %v2673 = vpop.permute.xlu0 %2672
    %2675 = vset.pattern.permute.xlu0 11
    %2676 = vperm.xlu0 %2675, %v1226
    %v2677 = vpop.permute.xlu0 %2676
    %2679 = vset.pattern.permute.xlu0 11
    %2680 = vperm.xlu0 %2679, %v1227
    %v2681 = vpop.permute.xlu0 %2680
    %2683 = vset.pattern.permute.xlu0 11
    %2684 = vperm.xlu0 %2683, %v1228
    %v2685 = vpop.permute.xlu0 %2684
    %2687 = vset.pattern.permute.xlu0 11
    %2688 = vperm.xlu0 %2687, %v1229
    %v2689 = vpop.permute.xlu0 %2688
    %2691 = vset.pattern.permute.xlu0 11
    %2692 = vperm.xlu0 %2691, %v1230
    %v2693 = vpop.permute.xlu0 %2692
    %v2695 = vadd.f32 %v2601, %v1231
    %v2696 = vadd.f32 %v2605, %v1232
    %v2697 = vadd.f32 %v2609, %v1233
    %v2698 = vadd.f32 %v2613, %v1234
    %v2699 = vadd.f32 %v2617, %v1235
    %v2700 = vadd.f32 %v2621, %v1236
    %v2701 = vadd.f32 %v2625, %v1237
    %v2702 = vadd.f32 %v2629, %v1238
    %v2703 = vadd.f32 %v2633, %v1239
    %v2704 = vadd.f32 %v2637, %v1240
    %v2705 = vadd.f32 %v2641, %v1241
    %v2706 = vadd.f32 %v2645, %v1242
    %v2707 = vadd.f32 %v2649, %v1243
    %v2708 = vadd.f32 %v2653, %v1244
    %v2709 = vadd.f32 %v2657, %v1245
    %v2710 = vadd.f32 %v2661, %v1246
    %v2711 = vadd.f32 %v2665, %v1247
    %v2712 = vadd.f32 %v2669, %v1248
    %v2713 = vadd.f32 %v2673, %v1249
    %v2714 = vadd.f32 %v2677, %v1250
    %v2715 = vadd.f32 %v2681, %v1251
    %v2716 = vadd.f32 %v2685, %v1252
    %v2717 = vadd.f32 %v2689, %v1253
    %v2718 = vadd.f32 %v2693, %v1254
    %2719 = vset.pattern.permute.xlu0 12
    %2720 = vperm.xlu0 %2719, %v1207
    %v2721 = vpop.permute.xlu0 %2720
    %2723 = vset.pattern.permute.xlu0 12
    %2724 = vperm.xlu0 %2723, %v1208
    %v2725 = vpop.permute.xlu0 %2724
    %2727 = vset.pattern.permute.xlu0 12
    %2728 = vperm.xlu0 %2727, %v1209
    %v2729 = vpop.permute.xlu0 %2728
    %2731 = vset.pattern.permute.xlu0 12
    %2732 = vperm.xlu0 %2731, %v1210
    %v2733 = vpop.permute.xlu0 %2732
    %2735 = vset.pattern.permute.xlu0 12
    %2736 = vperm.xlu0 %2735, %v1211
    %v2737 = vpop.permute.xlu0 %2736
    %2739 = vset.pattern.permute.xlu0 12
    %2740 = vperm.xlu0 %2739, %v1212
    %v2741 = vpop.permute.xlu0 %2740
    %2743 = vset.pattern.permute.xlu0 12
    %2744 = vperm.xlu0 %2743, %v1213
    %v2745 = vpop.permute.xlu0 %2744
    %2747 = vset.pattern.permute.xlu0 12
    %2748 = vperm.xlu0 %2747, %v1214
    %v2749 = vpop.permute.xlu0 %2748
    %2751 = vset.pattern.permute.xlu0 12
    %2752 = vperm.xlu0 %2751, %v1215
    %v2753 = vpop.permute.xlu0 %2752
    %2755 = vset.pattern.permute.xlu0 12
    %2756 = vperm.xlu0 %2755, %v1216
    %v2757 = vpop.permute.xlu0 %2756
    %2759 = vset.pattern.permute.xlu0 12
    %2760 = vperm.xlu0 %2759, %v1217
    %v2761 = vpop.permute.xlu0 %2760
    %2763 = vset.pattern.permute.xlu0 12
    %2764 = vperm.xlu0 %2763, %v1218
    %v2765 = vpop.permute.xlu0 %2764
    %2767 = vset.pattern.permute.xlu0 12
    %2768 = vperm.xlu0 %2767, %v1219
    %v2769 = vpop.permute.xlu0 %2768
    %2771 = vset.pattern.permute.xlu0 12
    %2772 = vperm.xlu0 %2771, %v1220
    %v2773 = vpop.permute.xlu0 %2772
    %2775 = vset.pattern.permute.xlu0 12
    %2776 = vperm.xlu0 %2775, %v1221
    %v2777 = vpop.permute.xlu0 %2776
    %2779 = vset.pattern.permute.xlu0 12
    %2780 = vperm.xlu0 %2779, %v1222
    %v2781 = vpop.permute.xlu0 %2780
    %2783 = vset.pattern.permute.xlu0 12
    %2784 = vperm.xlu0 %2783, %v1223
    %v2785 = vpop.permute.xlu0 %2784
    %2787 = vset.pattern.permute.xlu0 12
    %2788 = vperm.xlu0 %2787, %v1224
    %v2789 = vpop.permute.xlu0 %2788
    %2791 = vset.pattern.permute.xlu0 12
    %2792 = vperm.xlu0 %2791, %v1225
    %v2793 = vpop.permute.xlu0 %2792
    %2795 = vset.pattern.permute.xlu0 12
    %2796 = vperm.xlu0 %2795, %v1226
    %v2797 = vpop.permute.xlu0 %2796
    %2799 = vset.pattern.permute.xlu0 12
    %2800 = vperm.xlu0 %2799, %v1227
    %v2801 = vpop.permute.xlu0 %2800
    %2803 = vset.pattern.permute.xlu0 12
    %2804 = vperm.xlu0 %2803, %v1228
    %v2805 = vpop.permute.xlu0 %2804
    %2807 = vset.pattern.permute.xlu0 12
    %2808 = vperm.xlu0 %2807, %v1229
    %v2809 = vpop.permute.xlu0 %2808
    %2811 = vset.pattern.permute.xlu0 12
    %2812 = vperm.xlu0 %2811, %v1230
    %v2813 = vpop.permute.xlu0 %2812
    %v2815 = vadd.f32 %v2721, %v1231
    %v2816 = vadd.f32 %v2725, %v1232
    %v2817 = vadd.f32 %v2729, %v1233
    %v2818 = vadd.f32 %v2733, %v1234
    %v2819 = vadd.f32 %v2737, %v1235
    %v2820 = vadd.f32 %v2741, %v1236
    %v2821 = vadd.f32 %v2745, %v1237
    %v2822 = vadd.f32 %v2749, %v1238
    %v2823 = vadd.f32 %v2753, %v1239
    %v2824 = vadd.f32 %v2757, %v1240
    %v2825 = vadd.f32 %v2761, %v1241
    %v2826 = vadd.f32 %v2765, %v1242
    %v2827 = vadd.f32 %v2769, %v1243
    %v2828 = vadd.f32 %v2773, %v1244
    %v2829 = vadd.f32 %v2777, %v1245
    %v2830 = vadd.f32 %v2781, %v1246
    %v2831 = vadd.f32 %v2785, %v1247
    %v2832 = vadd.f32 %v2789, %v1248
    %v2833 = vadd.f32 %v2793, %v1249
    %v2834 = vadd.f32 %v2797, %v1250
    %v2835 = vadd.f32 %v2801, %v1251
    %v2836 = vadd.f32 %v2805, %v1252
    %v2837 = vadd.f32 %v2809, %v1253
    %v2838 = vadd.f32 %v2813, %v1254
    %2839 = vset.pattern.permute.xlu0 13
    %2840 = vperm.xlu0 %2839, %v1207
    %v2841 = vpop.permute.xlu0 %2840
    %2843 = vset.pattern.permute.xlu0 13
    %2844 = vperm.xlu0 %2843, %v1208
    %v2845 = vpop.permute.xlu0 %2844
    %2847 = vset.pattern.permute.xlu0 13
    %2848 = vperm.xlu0 %2847, %v1209
    %v2849 = vpop.permute.xlu0 %2848
    %2851 = vset.pattern.permute.xlu0 13
    %2852 = vperm.xlu0 %2851, %v1210
    %v2853 = vpop.permute.xlu0 %2852
    %2855 = vset.pattern.permute.xlu0 13
    %2856 = vperm.xlu0 %2855, %v1211
    %v2857 = vpop.permute.xlu0 %2856
    %2859 = vset.pattern.permute.xlu0 13
    %2860 = vperm.xlu0 %2859, %v1212
    %v2861 = vpop.permute.xlu0 %2860
    %2863 = vset.pattern.permute.xlu0 13
    %2864 = vperm.xlu0 %2863, %v1213
    %v2865 = vpop.permute.xlu0 %2864
    %2867 = vset.pattern.permute.xlu0 13
    %2868 = vperm.xlu0 %2867, %v1214
    %v2869 = vpop.permute.xlu0 %2868
    %2871 = vset.pattern.permute.xlu0 13
    %2872 = vperm.xlu0 %2871, %v1215
    %v2873 = vpop.permute.xlu0 %2872
    %2875 = vset.pattern.permute.xlu0 13
    %2876 = vperm.xlu0 %2875, %v1216
    %v2877 = vpop.permute.xlu0 %2876
    %2879 = vset.pattern.permute.xlu0 13
    %2880 = vperm.xlu0 %2879, %v1217
    %v2881 = vpop.permute.xlu0 %2880
    %2883 = vset.pattern.permute.xlu0 13
    %2884 = vperm.xlu0 %2883, %v1218
    %v2885 = vpop.permute.xlu0 %2884
    %2887 = vset.pattern.permute.xlu0 13
    %2888 = vperm.xlu0 %2887, %v1219
    %v2889 = vpop.permute.xlu0 %2888
    %2891 = vset.pattern.permute.xlu0 13
    %2892 = vperm.xlu0 %2891, %v1220
    %v2893 = vpop.permute.xlu0 %2892
    %2895 = vset.pattern.permute.xlu0 13
    %2896 = vperm.xlu0 %2895, %v1221
    %v2897 = vpop.permute.xlu0 %2896
    %2899 = vset.pattern.permute.xlu0 13
    %2900 = vperm.xlu0 %2899, %v1222
    %v2901 = vpop.permute.xlu0 %2900
    %2903 = vset.pattern.permute.xlu0 13
    %2904 = vperm.xlu0 %2903, %v1223
    %v2905 = vpop.permute.xlu0 %2904
    %2907 = vset.pattern.permute.xlu0 13
    %2908 = vperm.xlu0 %2907, %v1224
    %v2909 = vpop.permute.xlu0 %2908
    %2911 = vset.pattern.permute.xlu0 13
    %2912 = vperm.xlu0 %2911, %v1225
    %v2913 = vpop.permute.xlu0 %2912
    %2915 = vset.pattern.permute.xlu0 13
    %2916 = vperm.xlu0 %2915, %v1226
    %v2917 = vpop.permute.xlu0 %2916
    %2919 = vset.pattern.permute.xlu0 13
    %2920 = vperm.xlu0 %2919, %v1227
    %v2921 = vpop.permute.xlu0 %2920
    %2923 = vset.pattern.permute.xlu0 13
    %2924 = vperm.xlu0 %2923, %v1228
    %v2925 = vpop.permute.xlu0 %2924
    %2927 = vset.pattern.permute.xlu0 13
    %2928 = vperm.xlu0 %2927, %v1229
    %v2929 = vpop.permute.xlu0 %2928
    %2931 = vset.pattern.permute.xlu0 13
    %2932 = vperm.xlu0 %2931, %v1230
    %v2933 = vpop.permute.xlu0 %2932
    %v2935 = vadd.f32 %v2841, %v1231
    %v2936 = vadd.f32 %v2845, %v1232
    %v2937 = vadd.f32 %v2849, %v1233
    %v2938 = vadd.f32 %v2853, %v1234
    %v2939 = vadd.f32 %v2857, %v1235
    %v2940 = vadd.f32 %v2861, %v1236
    %v2941 = vadd.f32 %v2865, %v1237
    %v2942 = vadd.f32 %v2869, %v1238
    %v2943 = vadd.f32 %v2873, %v1239
    %v2944 = vadd.f32 %v2877, %v1240
    %v2945 = vadd.f32 %v2881, %v1241
    %v2946 = vadd.f32 %v2885, %v1242
    %v2947 = vadd.f32 %v2889, %v1243
    %v2948 = vadd.f32 %v2893, %v1244
    %v2949 = vadd.f32 %v2897, %v1245
    %v2950 = vadd.f32 %v2901, %v1246
    %v2951 = vadd.f32 %v2905, %v1247
    %v2952 = vadd.f32 %v2909, %v1248
    %v2953 = vadd.f32 %v2913, %v1249
    %v2954 = vadd.f32 %v2917, %v1250
    %v2955 = vadd.f32 %v2921, %v1251
    %v2956 = vadd.f32 %v2925, %v1252
    %v2957 = vadd.f32 %v2929, %v1253
    %v2958 = vadd.f32 %v2933, %v1254
    %2959 = vset.pattern.permute.xlu0 14
    %2960 = vperm.xlu0 %2959, %v1207
    %v2961 = vpop.permute.xlu0 %2960
    %2963 = vset.pattern.permute.xlu0 14
    %2964 = vperm.xlu0 %2963, %v1208
    %v2965 = vpop.permute.xlu0 %2964
    %2967 = vset.pattern.permute.xlu0 14
    %2968 = vperm.xlu0 %2967, %v1209
    %v2969 = vpop.permute.xlu0 %2968
    %2971 = vset.pattern.permute.xlu0 14
    %2972 = vperm.xlu0 %2971, %v1210
    %v2973 = vpop.permute.xlu0 %2972
    %2975 = vset.pattern.permute.xlu0 14
    %2976 = vperm.xlu0 %2975, %v1211
    %v2977 = vpop.permute.xlu0 %2976
    %2979 = vset.pattern.permute.xlu0 14
    %2980 = vperm.xlu0 %2979, %v1212
    %v2981 = vpop.permute.xlu0 %2980
    %2983 = vset.pattern.permute.xlu0 14
    %2984 = vperm.xlu0 %2983, %v1213
    %v2985 = vpop.permute.xlu0 %2984
    %2987 = vset.pattern.permute.xlu0 14
    %2988 = vperm.xlu0 %2987, %v1214
    %v2989 = vpop.permute.xlu0 %2988
    %2991 = vset.pattern.permute.xlu0 14
    %2992 = vperm.xlu0 %2991, %v1215
    %v2993 = vpop.permute.xlu0 %2992
    %2995 = vset.pattern.permute.xlu0 14
    %2996 = vperm.xlu0 %2995, %v1216
    %v2997 = vpop.permute.xlu0 %2996
    %2999 = vset.pattern.permute.xlu0 14
    %3000 = vperm.xlu0 %2999, %v1217
    %v3001 = vpop.permute.xlu0 %3000
    %3003 = vset.pattern.permute.xlu0 14
    %3004 = vperm.xlu0 %3003, %v1218
    %v3005 = vpop.permute.xlu0 %3004
    %3007 = vset.pattern.permute.xlu0 14
    %3008 = vperm.xlu0 %3007, %v1219
    %v3009 = vpop.permute.xlu0 %3008
    %3011 = vset.pattern.permute.xlu0 14
    %3012 = vperm.xlu0 %3011, %v1220
    %v3013 = vpop.permute.xlu0 %3012
    %3015 = vset.pattern.permute.xlu0 14
    %3016 = vperm.xlu0 %3015, %v1221
    %v3017 = vpop.permute.xlu0 %3016
    %3019 = vset.pattern.permute.xlu0 14
    %3020 = vperm.xlu0 %3019, %v1222
    %v3021 = vpop.permute.xlu0 %3020
    %3023 = vset.pattern.permute.xlu0 14
    %3024 = vperm.xlu0 %3023, %v1223
    %v3025 = vpop.permute.xlu0 %3024
    %3027 = vset.pattern.permute.xlu0 14
    %3028 = vperm.xlu0 %3027, %v1224
    %v3029 = vpop.permute.xlu0 %3028
    %3031 = vset.pattern.permute.xlu0 14
    %3032 = vperm.xlu0 %3031, %v1225
    %v3033 = vpop.permute.xlu0 %3032
    %3035 = vset.pattern.permute.xlu0 14
    %3036 = vperm.xlu0 %3035, %v1226
    %v3037 = vpop.permute.xlu0 %3036
    %3039 = vset.pattern.permute.xlu0 14
    %3040 = vperm.xlu0 %3039, %v1227
    %v3041 = vpop.permute.xlu0 %3040
    %3043 = vset.pattern.permute.xlu0 14
    %3044 = vperm.xlu0 %3043, %v1228
    %v3045 = vpop.permute.xlu0 %3044
    %3047 = vset.pattern.permute.xlu0 14
    %3048 = vperm.xlu0 %3047, %v1229
    %v3049 = vpop.permute.xlu0 %3048
    %3051 = vset.pattern.permute.xlu0 14
    %3052 = vperm.xlu0 %3051, %v1230
    %v3053 = vpop.permute.xlu0 %3052
    %v3055 = vadd.f32 %v2961, %v1231
    %v3056 = vadd.f32 %v2965, %v1232
    %v3057 = vadd.f32 %v2969, %v1233
    %v3058 = vadd.f32 %v2973, %v1234
    %v3059 = vadd.f32 %v2977, %v1235
    %v3060 = vadd.f32 %v2981, %v1236
    %v3061 = vadd.f32 %v2985, %v1237
    %v3062 = vadd.f32 %v2989, %v1238
    %v3063 = vadd.f32 %v2993, %v1239
    %v3064 = vadd.f32 %v2997, %v1240
    %v3065 = vadd.f32 %v3001, %v1241
    %v3066 = vadd.f32 %v3005, %v1242
    %v3067 = vadd.f32 %v3009, %v1243
    %v3068 = vadd.f32 %v3013, %v1244
    %v3069 = vadd.f32 %v3017, %v1245
    %v3070 = vadd.f32 %v3021, %v1246
    %v3071 = vadd.f32 %v3025, %v1247
    %v3072 = vadd.f32 %v3029, %v1248
    %v3073 = vadd.f32 %v3033, %v1249
    %v3074 = vadd.f32 %v3037, %v1250
    %v3075 = vadd.f32 %v3041, %v1251
    %v3076 = vadd.f32 %v3045, %v1252
    %v3077 = vadd.f32 %v3049, %v1253
    %v3078 = vadd.f32 %v3053, %v1254
    %3079 = vset.pattern.permute.xlu0 15
    %3080 = vperm.xlu0 %3079, %v1207
    %v3081 = vpop.permute.xlu0 %3080
    %3083 = vset.pattern.permute.xlu0 15
    %3084 = vperm.xlu0 %3083, %v1208
    %v3085 = vpop.permute.xlu0 %3084
    %3087 = vset.pattern.permute.xlu0 15
    %3088 = vperm.xlu0 %3087, %v1209
    %v3089 = vpop.permute.xlu0 %3088
    %3091 = vset.pattern.permute.xlu0 15
    %3092 = vperm.xlu0 %3091, %v1210
    %v3093 = vpop.permute.xlu0 %3092
    %3095 = vset.pattern.permute.xlu0 15
    %3096 = vperm.xlu0 %3095, %v1211
    %v3097 = vpop.permute.xlu0 %3096
    %3099 = vset.pattern.permute.xlu0 15
    %3100 = vperm.xlu0 %3099, %v1212
    %v3101 = vpop.permute.xlu0 %3100
    %3103 = vset.pattern.permute.xlu0 15
    %3104 = vperm.xlu0 %3103, %v1213
    %v3105 = vpop.permute.xlu0 %3104
    %3107 = vset.pattern.permute.xlu0 15
    %3108 = vperm.xlu0 %3107, %v1214
    %v3109 = vpop.permute.xlu0 %3108
    %3111 = vset.pattern.permute.xlu0 15
    %3112 = vperm.xlu0 %3111, %v1215
    %v3113 = vpop.permute.xlu0 %3112
    %3115 = vset.pattern.permute.xlu0 15
    %3116 = vperm.xlu0 %3115, %v1216
    %v3117 = vpop.permute.xlu0 %3116
    %3119 = vset.pattern.permute.xlu0 15
    %3120 = vperm.xlu0 %3119, %v1217
    %v3121 = vpop.permute.xlu0 %3120
    %3123 = vset.pattern.permute.xlu0 15
    %3124 = vperm.xlu0 %3123, %v1218
    %v3125 = vpop.permute.xlu0 %3124
    %3127 = vset.pattern.permute.xlu0 15
    %3128 = vperm.xlu0 %3127, %v1219
    %v3129 = vpop.permute.xlu0 %3128
    %3131 = vset.pattern.permute.xlu0 15
    %3132 = vperm.xlu0 %3131, %v1220
    %v3133 = vpop.permute.xlu0 %3132
    %3135 = vset.pattern.permute.xlu0 15
    %3136 = vperm.xlu0 %3135, %v1221
    %v3137 = vpop.permute.xlu0 %3136
    %3139 = vset.pattern.permute.xlu0 15
    %3140 = vperm.xlu0 %3139, %v1222
    %v3141 = vpop.permute.xlu0 %3140
    %3143 = vset.pattern.permute.xlu0 15
    %3144 = vperm.xlu0 %3143, %v1223
    %v3145 = vpop.permute.xlu0 %3144
    %3147 = vset.pattern.permute.xlu0 15
    %3148 = vperm.xlu0 %3147, %v1224
    %v3149 = vpop.permute.xlu0 %3148
    %3151 = vset.pattern.permute.xlu0 15
    %3152 = vperm.xlu0 %3151, %v1225
    %v3153 = vpop.permute.xlu0 %3152
    %3155 = vset.pattern.permute.xlu0 15
    %3156 = vperm.xlu0 %3155, %v1226
    %v3157 = vpop.permute.xlu0 %3156
    %3159 = vset.pattern.permute.xlu0 15
    %3160 = vperm.xlu0 %3159, %v1227
    %v3161 = vpop.permute.xlu0 %3160
    %3163 = vset.pattern.permute.xlu0 15
    %3164 = vperm.xlu0 %3163, %v1228
    %v3165 = vpop.permute.xlu0 %3164
    %3167 = vset.pattern.permute.xlu0 15
    %3168 = vperm.xlu0 %3167, %v1229
    %v3169 = vpop.permute.xlu0 %3168
    %3171 = vset.pattern.permute.xlu0 15
    %3172 = vperm.xlu0 %3171, %v1230
    %v3173 = vpop.permute.xlu0 %3172
    %v3175 = vadd.f32 %v3081, %v1231
    %v3176 = vadd.f32 %v3085, %v1232
    %v3177 = vadd.f32 %v3089, %v1233
    %v3178 = vadd.f32 %v3093, %v1234
    %v3179 = vadd.f32 %v3097, %v1235
    %v3180 = vadd.f32 %v3101, %v1236
    %v3181 = vadd.f32 %v3105, %v1237
    %v3182 = vadd.f32 %v3109, %v1238
    %v3183 = vadd.f32 %v3113, %v1239
    %v3184 = vadd.f32 %v3117, %v1240
    %v3185 = vadd.f32 %v3121, %v1241
    %v3186 = vadd.f32 %v3125, %v1242
    %v3187 = vadd.f32 %v3129, %v1243
    %v3188 = vadd.f32 %v3133, %v1244
    %v3189 = vadd.f32 %v3137, %v1245
    %v3190 = vadd.f32 %v3141, %v1246
    %v3191 = vadd.f32 %v3145, %v1247
    %v3192 = vadd.f32 %v3149, %v1248
    %v3193 = vadd.f32 %v3153, %v1249
    %v3194 = vadd.f32 %v3157, %v1250
    %v3195 = vadd.f32 %v3161, %v1251
    %v3196 = vadd.f32 %v3165, %v1252
    %v3197 = vadd.f32 %v3169, %v1253
    %v3198 = vadd.f32 %v3173, %v1254
    %v3223 = vrot.slane %v1376, 7
    %v3224 = vsel %vm474, %v3223, %v1375
    %v3225 = vrot.slane %v1377, 6
    %v3226 = vsel %vm476, %v3225, %v3224
    %v3227 = vrot.slane %v1378, 5
    %v3228 = vsel %vm478, %v3227, %v3226
    %v3229 = vrot.slane %v1379, 4
    %v3230 = vsel %vm480, %v3229, %v3228
    %v3231 = vrot.slane %v1380, 3
    %v3232 = vsel %vm482, %v3231, %v3230
    %v3233 = vrot.slane %v1381, 2
    %v3234 = vsel %vm484, %v3233, %v3232
    %v3235 = vrot.slane %v1382, 1
    %v3236 = vsel %vm486, %v3235, %v3234
    %v3237 = vrot.slane %v1384, 7
    %v3238 = vsel %vm474, %v3237, %v1383
    %v3239 = vrot.slane %v1385, 6
    %v3240 = vsel %vm476, %v3239, %v3238
    %v3241 = vrot.slane %v1386, 5
    %v3242 = vsel %vm478, %v3241, %v3240
    %v3243 = vrot.slane %v1388, 7
    %v3244 = vsel %vm474, %v3243, %v1387
    %v3245 = vrot.slane %v1389, 6
    %v3246 = vsel %vm476, %v3245, %v3244
    %v3247 = vrot.slane %v1390, 5
    %v3248 = vsel %vm478, %v3247, %v3246
    %v3249 = vrot.slane %v1391, 4
    %v3250 = vsel %vm480, %v3249, %v3248
    %v3251 = vrot.slane %v1392, 3
    %v3252 = vsel %vm482, %v3251, %v3250
    %v3253 = vrot.slane %v1393, 2
    %v3254 = vsel %vm484, %v3253, %v3252
    %v3255 = vrot.slane %v1394, 1
    %v3256 = vsel %vm486, %v3255, %v3254
    %v3257 = vrot.slane %v1396, 7
    %v3258 = vsel %vm474, %v3257, %v1395
    %v3259 = vrot.slane %v1397, 6
    %v3260 = vsel %vm476, %v3259, %v3258
    %v3261 = vrot.slane %v1398, 5
    %v3262 = vsel %vm478, %v3261, %v3260
    %v3291 = vrot.slane %v1496, 7
    %v3292 = vsel %vm474, %v3291, %v1495
    %v3293 = vrot.slane %v1497, 6
    %v3294 = vsel %vm476, %v3293, %v3292
    %v3295 = vrot.slane %v1498, 5
    %v3296 = vsel %vm478, %v3295, %v3294
    %v3297 = vrot.slane %v1499, 4
    %v3298 = vsel %vm480, %v3297, %v3296
    %v3299 = vrot.slane %v1500, 3
    %v3300 = vsel %vm482, %v3299, %v3298
    %v3301 = vrot.slane %v1501, 2
    %v3302 = vsel %vm484, %v3301, %v3300
    %v3303 = vrot.slane %v1502, 1
    %v3304 = vsel %vm486, %v3303, %v3302
    %v3305 = vrot.slane %v1504, 7
    %v3306 = vsel %vm474, %v3305, %v1503
    %v3307 = vrot.slane %v1505, 6
    %v3308 = vsel %vm476, %v3307, %v3306
    %v3309 = vrot.slane %v1506, 5
    %v3310 = vsel %vm478, %v3309, %v3308
    %v3311 = vrot.slane %v1508, 7
    %v3312 = vsel %vm474, %v3311, %v1507
    %v3313 = vrot.slane %v1509, 6
    %v3314 = vsel %vm476, %v3313, %v3312
    %v3315 = vrot.slane %v1510, 5
    %v3316 = vsel %vm478, %v3315, %v3314
    %v3317 = vrot.slane %v1511, 4
    %v3318 = vsel %vm480, %v3317, %v3316
    %v3319 = vrot.slane %v1512, 3
    %v3320 = vsel %vm482, %v3319, %v3318
    %v3321 = vrot.slane %v1513, 2
    %v3322 = vsel %vm484, %v3321, %v3320
    %v3323 = vrot.slane %v1514, 1
    %v3324 = vsel %vm486, %v3323, %v3322
    %v3325 = vrot.slane %v1516, 7
    %v3326 = vsel %vm474, %v3325, %v1515
    %v3327 = vrot.slane %v1517, 6
    %v3328 = vsel %vm476, %v3327, %v3326
    %v3329 = vrot.slane %v1518, 5
    %v3330 = vsel %vm478, %v3329, %v3328
    %3331 = vrot.lane.b32.xlu0 %v3304, 16
    %v3332 = vpop.permute.xlu0 %3331
    %3333 = vrot.lane.b32.xlu0 %v3310, 16
    %v3334 = vpop.permute.xlu0 %3333
    %3335 = vrot.lane.b32.xlu0 %v3324, 16
    %v3336 = vpop.permute.xlu0 %3335
    %3337 = vrot.lane.b32.xlu0 %v3330, 16
    %v3338 = vpop.permute.xlu0 %3337
    %v3367 = vrot.slane %v1616, 7
    %v3368 = vsel %vm474, %v3367, %v1615
    %v3369 = vrot.slane %v1617, 6
    %v3370 = vsel %vm476, %v3369, %v3368
    %v3371 = vrot.slane %v1618, 5
    %v3372 = vsel %vm478, %v3371, %v3370
    %v3373 = vrot.slane %v1619, 4
    %v3374 = vsel %vm480, %v3373, %v3372
    %v3375 = vrot.slane %v1620, 3
    %v3376 = vsel %vm482, %v3375, %v3374
    %v3377 = vrot.slane %v1621, 2
    %v3378 = vsel %vm484, %v3377, %v3376
    %v3379 = vrot.slane %v1622, 1
    %v3380 = vsel %vm486, %v3379, %v3378
    %v3381 = vrot.slane %v1624, 7
    %v3382 = vsel %vm474, %v3381, %v1623
    %v3383 = vrot.slane %v1625, 6
    %v3384 = vsel %vm476, %v3383, %v3382
    %v3385 = vrot.slane %v1626, 5
    %v3386 = vsel %vm478, %v3385, %v3384
    %v3387 = vrot.slane %v1628, 7
    %v3388 = vsel %vm474, %v3387, %v1627
    %v3389 = vrot.slane %v1629, 6
    %v3390 = vsel %vm476, %v3389, %v3388
    %v3391 = vrot.slane %v1630, 5
    %v3392 = vsel %vm478, %v3391, %v3390
    %v3393 = vrot.slane %v1631, 4
    %v3394 = vsel %vm480, %v3393, %v3392
    %v3395 = vrot.slane %v1632, 3
    %v3396 = vsel %vm482, %v3395, %v3394
    %v3397 = vrot.slane %v1633, 2
    %v3398 = vsel %vm484, %v3397, %v3396
    %v3399 = vrot.slane %v1634, 1
    %v3400 = vsel %vm486, %v3399, %v3398
    %v3401 = vrot.slane %v1636, 7
    %v3402 = vsel %vm474, %v3401, %v1635
    %v3403 = vrot.slane %v1637, 6
    %v3404 = vsel %vm476, %v3403, %v3402
    %v3405 = vrot.slane %v1638, 5
    %v3406 = vsel %vm478, %v3405, %v3404
    %3407 = vrot.lane.b32.xlu0 %v3380, 32
    %v3408 = vpop.permute.xlu0 %3407
    %3409 = vrot.lane.b32.xlu0 %v3386, 32
    %v3410 = vpop.permute.xlu0 %3409
    %3411 = vrot.lane.b32.xlu0 %v3400, 32
    %v3412 = vpop.permute.xlu0 %3411
    %3413 = vrot.lane.b32.xlu0 %v3406, 32
    %v3414 = vpop.permute.xlu0 %3413
    %v3443 = vrot.slane %v1736, 7
    %v3444 = vsel %vm474, %v3443, %v1735
    %v3445 = vrot.slane %v1737, 6
    %v3446 = vsel %vm476, %v3445, %v3444
    %v3447 = vrot.slane %v1738, 5
    %v3448 = vsel %vm478, %v3447, %v3446
    %v3449 = vrot.slane %v1739, 4
    %v3450 = vsel %vm480, %v3449, %v3448
    %v3451 = vrot.slane %v1740, 3
    %v3452 = vsel %vm482, %v3451, %v3450
    %v3453 = vrot.slane %v1741, 2
    %v3454 = vsel %vm484, %v3453, %v3452
    %v3455 = vrot.slane %v1742, 1
    %v3456 = vsel %vm486, %v3455, %v3454
    %v3457 = vrot.slane %v1744, 7
    %v3458 = vsel %vm474, %v3457, %v1743
    %v3459 = vrot.slane %v1745, 6
    %v3460 = vsel %vm476, %v3459, %v3458
    %v3461 = vrot.slane %v1746, 5
    %v3462 = vsel %vm478, %v3461, %v3460
    %v3463 = vrot.slane %v1748, 7
    %v3464 = vsel %vm474, %v3463, %v1747
    %v3465 = vrot.slane %v1749, 6
    %v3466 = vsel %vm476, %v3465, %v3464
    %v3467 = vrot.slane %v1750, 5
    %v3468 = vsel %vm478, %v3467, %v3466
    %v3469 = vrot.slane %v1751, 4
    %v3470 = vsel %vm480, %v3469, %v3468
    %v3471 = vrot.slane %v1752, 3
    %v3472 = vsel %vm482, %v3471, %v3470
    %v3473 = vrot.slane %v1753, 2
    %v3474 = vsel %vm484, %v3473, %v3472
    %v3475 = vrot.slane %v1754, 1
    %v3476 = vsel %vm486, %v3475, %v3474
    %v3477 = vrot.slane %v1756, 7
    %v3478 = vsel %vm474, %v3477, %v1755
    %v3479 = vrot.slane %v1757, 6
    %v3480 = vsel %vm476, %v3479, %v3478
    %v3481 = vrot.slane %v1758, 5
    %v3482 = vsel %vm478, %v3481, %v3480
    %3483 = vrot.lane.b32.xlu0 %v3456, 48
    %v3484 = vpop.permute.xlu0 %3483
    %3485 = vrot.lane.b32.xlu0 %v3462, 48
    %v3486 = vpop.permute.xlu0 %3485
    %3487 = vrot.lane.b32.xlu0 %v3476, 48
    %v3488 = vpop.permute.xlu0 %3487
    %3489 = vrot.lane.b32.xlu0 %v3482, 48
    %v3490 = vpop.permute.xlu0 %3489
    %v3519 = vrot.slane %v1856, 7
    %v3520 = vsel %vm474, %v3519, %v1855
    %v3521 = vrot.slane %v1857, 6
    %v3522 = vsel %vm476, %v3521, %v3520
    %v3523 = vrot.slane %v1858, 5
    %v3524 = vsel %vm478, %v3523, %v3522
    %v3525 = vrot.slane %v1859, 4
    %v3526 = vsel %vm480, %v3525, %v3524
    %v3527 = vrot.slane %v1860, 3
    %v3528 = vsel %vm482, %v3527, %v3526
    %v3529 = vrot.slane %v1861, 2
    %v3530 = vsel %vm484, %v3529, %v3528
    %v3531 = vrot.slane %v1862, 1
    %v3532 = vsel %vm486, %v3531, %v3530
    %v3533 = vrot.slane %v1864, 7
    %v3534 = vsel %vm474, %v3533, %v1863
    %v3535 = vrot.slane %v1865, 6
    %v3536 = vsel %vm476, %v3535, %v3534
    %v3537 = vrot.slane %v1866, 5
    %v3538 = vsel %vm478, %v3537, %v3536
    %v3539 = vrot.slane %v1868, 7
    %v3540 = vsel %vm474, %v3539, %v1867
    %v3541 = vrot.slane %v1869, 6
    %v3542 = vsel %vm476, %v3541, %v3540
    %v3543 = vrot.slane %v1870, 5
    %v3544 = vsel %vm478, %v3543, %v3542
    %v3545 = vrot.slane %v1871, 4
    %v3546 = vsel %vm480, %v3545, %v3544
    %v3547 = vrot.slane %v1872, 3
    %v3548 = vsel %vm482, %v3547, %v3546
    %v3549 = vrot.slane %v1873, 2
    %v3550 = vsel %vm484, %v3549, %v3548
    %v3551 = vrot.slane %v1874, 1
    %v3552 = vsel %vm486, %v3551, %v3550
    %v3553 = vrot.slane %v1876, 7
    %v3554 = vsel %vm474, %v3553, %v1875
    %v3555 = vrot.slane %v1877, 6
    %v3556 = vsel %vm476, %v3555, %v3554
    %v3557 = vrot.slane %v1878, 5
    %v3558 = vsel %vm478, %v3557, %v3556
    %3559 = vrot.lane.b32.xlu0 %v3532, 64
    %v3560 = vpop.permute.xlu0 %3559
    %3561 = vrot.lane.b32.xlu0 %v3538, 64
    %v3562 = vpop.permute.xlu0 %3561
    %3563 = vrot.lane.b32.xlu0 %v3552, 64
    %v3564 = vpop.permute.xlu0 %3563
    %3565 = vrot.lane.b32.xlu0 %v3558, 64
    %v3566 = vpop.permute.xlu0 %3565
    %v3595 = vrot.slane %v1976, 7
    %v3596 = vsel %vm474, %v3595, %v1975
    %v3597 = vrot.slane %v1977, 6
    %v3598 = vsel %vm476, %v3597, %v3596
    %v3599 = vrot.slane %v1978, 5
    %v3600 = vsel %vm478, %v3599, %v3598
    %v3601 = vrot.slane %v1979, 4
    %v3602 = vsel %vm480, %v3601, %v3600
    %v3603 = vrot.slane %v1980, 3
    %v3604 = vsel %vm482, %v3603, %v3602
    %v3605 = vrot.slane %v1981, 2
    %v3606 = vsel %vm484, %v3605, %v3604
    %v3607 = vrot.slane %v1982, 1
    %v3608 = vsel %vm486, %v3607, %v3606
    %v3609 = vrot.slane %v1984, 7
    %v3610 = vsel %vm474, %v3609, %v1983
    %v3611 = vrot.slane %v1985, 6
    %v3612 = vsel %vm476, %v3611, %v3610
    %v3613 = vrot.slane %v1986, 5
    %v3614 = vsel %vm478, %v3613, %v3612
    %v3615 = vrot.slane %v1988, 7
    %v3616 = vsel %vm474, %v3615, %v1987
    %v3617 = vrot.slane %v1989, 6
    %v3618 = vsel %vm476, %v3617, %v3616
    %v3619 = vrot.slane %v1990, 5
    %v3620 = vsel %vm478, %v3619, %v3618
    %v3621 = vrot.slane %v1991, 4
    %v3622 = vsel %vm480, %v3621, %v3620
    %v3623 = vrot.slane %v1992, 3
    %v3624 = vsel %vm482, %v3623, %v3622
    %v3625 = vrot.slane %v1993, 2
    %v3626 = vsel %vm484, %v3625, %v3624
    %v3627 = vrot.slane %v1994, 1
    %v3628 = vsel %vm486, %v3627, %v3626
    %v3629 = vrot.slane %v1996, 7
    %v3630 = vsel %vm474, %v3629, %v1995
    %v3631 = vrot.slane %v1997, 6
    %v3632 = vsel %vm476, %v3631, %v3630
    %v3633 = vrot.slane %v1998, 5
    %v3634 = vsel %vm478, %v3633, %v3632
    %3635 = vrot.lane.b32.xlu0 %v3608, 80
    %v3636 = vpop.permute.xlu0 %3635
    %3637 = vrot.lane.b32.xlu0 %v3614, 80
    %v3638 = vpop.permute.xlu0 %3637
    %3639 = vrot.lane.b32.xlu0 %v3628, 80
    %v3640 = vpop.permute.xlu0 %3639
    %3641 = vrot.lane.b32.xlu0 %v3634, 80
    %v3642 = vpop.permute.xlu0 %3641
    %v3671 = vrot.slane %v2096, 7
    %v3672 = vsel %vm474, %v3671, %v2095
    %v3673 = vrot.slane %v2097, 6
    %v3674 = vsel %vm476, %v3673, %v3672
    %v3675 = vrot.slane %v2098, 5
    %v3676 = vsel %vm478, %v3675, %v3674
    %v3677 = vrot.slane %v2099, 4
    %v3678 = vsel %vm480, %v3677, %v3676
    %v3679 = vrot.slane %v2100, 3
    %v3680 = vsel %vm482, %v3679, %v3678
    %v3681 = vrot.slane %v2101, 2
    %v3682 = vsel %vm484, %v3681, %v3680
    %v3683 = vrot.slane %v2102, 1
    %v3684 = vsel %vm486, %v3683, %v3682
    %v3685 = vrot.slane %v2104, 7
    %v3686 = vsel %vm474, %v3685, %v2103
    %v3687 = vrot.slane %v2105, 6
    %v3688 = vsel %vm476, %v3687, %v3686
    %v3689 = vrot.slane %v2106, 5
    %v3690 = vsel %vm478, %v3689, %v3688
    %v3691 = vrot.slane %v2108, 7
    %v3692 = vsel %vm474, %v3691, %v2107
    %v3693 = vrot.slane %v2109, 6
    %v3694 = vsel %vm476, %v3693, %v3692
    %v3695 = vrot.slane %v2110, 5
    %v3696 = vsel %vm478, %v3695, %v3694
    %v3697 = vrot.slane %v2111, 4
    %v3698 = vsel %vm480, %v3697, %v3696
    %v3699 = vrot.slane %v2112, 3
    %v3700 = vsel %vm482, %v3699, %v3698
    %v3701 = vrot.slane %v2113, 2
    %v3702 = vsel %vm484, %v3701, %v3700
    %v3703 = vrot.slane %v2114, 1
    %v3704 = vsel %vm486, %v3703, %v3702
    %v3705 = vrot.slane %v2116, 7
    %v3706 = vsel %vm474, %v3705, %v2115
    %v3707 = vrot.slane %v2117, 6
    %v3708 = vsel %vm476, %v3707, %v3706
    %v3709 = vrot.slane %v2118, 5
    %v3710 = vsel %vm478, %v3709, %v3708
    %3711 = vrot.lane.b32.xlu0 %v3684, 96
    %v3712 = vpop.permute.xlu0 %3711
    %3713 = vrot.lane.b32.xlu0 %v3690, 96
    %v3714 = vpop.permute.xlu0 %3713
    %3715 = vrot.lane.b32.xlu0 %v3704, 96
    %v3716 = vpop.permute.xlu0 %3715
    %3717 = vrot.lane.b32.xlu0 %v3710, 96
    %v3718 = vpop.permute.xlu0 %3717
    %v3747 = vrot.slane %v2216, 7
    %v3748 = vsel %vm474, %v3747, %v2215
    %v3749 = vrot.slane %v2217, 6
    %v3750 = vsel %vm476, %v3749, %v3748
    %v3751 = vrot.slane %v2218, 5
    %v3752 = vsel %vm478, %v3751, %v3750
    %v3753 = vrot.slane %v2219, 4
    %v3754 = vsel %vm480, %v3753, %v3752
    %v3755 = vrot.slane %v2220, 3
    %v3756 = vsel %vm482, %v3755, %v3754
    %v3757 = vrot.slane %v2221, 2
    %v3758 = vsel %vm484, %v3757, %v3756
    %v3759 = vrot.slane %v2222, 1
    %v3760 = vsel %vm486, %v3759, %v3758
    %v3761 = vrot.slane %v2224, 7
    %v3762 = vsel %vm474, %v3761, %v2223
    %v3763 = vrot.slane %v2225, 6
    %v3764 = vsel %vm476, %v3763, %v3762
    %v3765 = vrot.slane %v2226, 5
    %v3766 = vsel %vm478, %v3765, %v3764
    %v3767 = vrot.slane %v2228, 7
    %v3768 = vsel %vm474, %v3767, %v2227
    %v3769 = vrot.slane %v2229, 6
    %v3770 = vsel %vm476, %v3769, %v3768
    %v3771 = vrot.slane %v2230, 5
    %v3772 = vsel %vm478, %v3771, %v3770
    %v3773 = vrot.slane %v2231, 4
    %v3774 = vsel %vm480, %v3773, %v3772
    %v3775 = vrot.slane %v2232, 3
    %v3776 = vsel %vm482, %v3775, %v3774
    %v3777 = vrot.slane %v2233, 2
    %v3778 = vsel %vm484, %v3777, %v3776
    %v3779 = vrot.slane %v2234, 1
    %v3780 = vsel %vm486, %v3779, %v3778
    %v3781 = vrot.slane %v2236, 7
    %v3782 = vsel %vm474, %v3781, %v2235
    %v3783 = vrot.slane %v2237, 6
    %v3784 = vsel %vm476, %v3783, %v3782
    %v3785 = vrot.slane %v2238, 5
    %v3786 = vsel %vm478, %v3785, %v3784
    %3787 = vrot.lane.b32.xlu0 %v3760, 112
    %v3788 = vpop.permute.xlu0 %3787
    %3789 = vrot.lane.b32.xlu0 %v3766, 112
    %v3790 = vpop.permute.xlu0 %3789
    %3791 = vrot.lane.b32.xlu0 %v3780, 112
    %v3792 = vpop.permute.xlu0 %3791
    %3793 = vrot.lane.b32.xlu0 %v3786, 112
    %v3794 = vpop.permute.xlu0 %3793
    %v3823 = vrot.slane %v2336, 7
    %v3824 = vsel %vm474, %v3823, %v2335
    %v3825 = vrot.slane %v2337, 6
    %v3826 = vsel %vm476, %v3825, %v3824
    %v3827 = vrot.slane %v2338, 5
    %v3828 = vsel %vm478, %v3827, %v3826
    %v3829 = vrot.slane %v2339, 4
    %v3830 = vsel %vm480, %v3829, %v3828
    %v3831 = vrot.slane %v2340, 3
    %v3832 = vsel %vm482, %v3831, %v3830
    %v3833 = vrot.slane %v2341, 2
    %v3834 = vsel %vm484, %v3833, %v3832
    %v3835 = vrot.slane %v2342, 1
    %v3836 = vsel %vm486, %v3835, %v3834
    %v3837 = vrot.slane %v2344, 7
    %v3838 = vsel %vm474, %v3837, %v2343
    %v3839 = vrot.slane %v2345, 6
    %v3840 = vsel %vm476, %v3839, %v3838
    %v3841 = vrot.slane %v2346, 5
    %v3842 = vsel %vm478, %v3841, %v3840
    %v3843 = vrot.slane %v2348, 7
    %v3844 = vsel %vm474, %v3843, %v2347
    %v3845 = vrot.slane %v2349, 6
    %v3846 = vsel %vm476, %v3845, %v3844
    %v3847 = vrot.slane %v2350, 5
    %v3848 = vsel %vm478, %v3847, %v3846
    %v3849 = vrot.slane %v2351, 4
    %v3850 = vsel %vm480, %v3849, %v3848
    %v3851 = vrot.slane %v2352, 3
    %v3852 = vsel %vm482, %v3851, %v3850
    %v3853 = vrot.slane %v2353, 2
    %v3854 = vsel %vm484, %v3853, %v3852
    %v3855 = vrot.slane %v2354, 1
    %v3856 = vsel %vm486, %v3855, %v3854
    %v3857 = vrot.slane %v2356, 7
    %v3858 = vsel %vm474, %v3857, %v2355
    %v3859 = vrot.slane %v2357, 6
    %v3860 = vsel %vm476, %v3859, %v3858
    %v3861 = vrot.slane %v2358, 5
    %v3862 = vsel %vm478, %v3861, %v3860
    %v3891 = vrot.slane %v2456, 7
    %v3892 = vsel %vm474, %v3891, %v2455
    %v3893 = vrot.slane %v2457, 6
    %v3894 = vsel %vm476, %v3893, %v3892
    %v3895 = vrot.slane %v2458, 5
    %v3896 = vsel %vm478, %v3895, %v3894
    %v3897 = vrot.slane %v2459, 4
    %v3898 = vsel %vm480, %v3897, %v3896
    %v3899 = vrot.slane %v2460, 3
    %v3900 = vsel %vm482, %v3899, %v3898
    %v3901 = vrot.slane %v2461, 2
    %v3902 = vsel %vm484, %v3901, %v3900
    %v3903 = vrot.slane %v2462, 1
    %v3904 = vsel %vm486, %v3903, %v3902
    %v3905 = vrot.slane %v2464, 7
    %v3906 = vsel %vm474, %v3905, %v2463
    %v3907 = vrot.slane %v2465, 6
    %v3908 = vsel %vm476, %v3907, %v3906
    %v3909 = vrot.slane %v2466, 5
    %v3910 = vsel %vm478, %v3909, %v3908
    %v3911 = vrot.slane %v2468, 7
    %v3912 = vsel %vm474, %v3911, %v2467
    %v3913 = vrot.slane %v2469, 6
    %v3914 = vsel %vm476, %v3913, %v3912
    %v3915 = vrot.slane %v2470, 5
    %v3916 = vsel %vm478, %v3915, %v3914
    %v3917 = vrot.slane %v2471, 4
    %v3918 = vsel %vm480, %v3917, %v3916
    %v3919 = vrot.slane %v2472, 3
    %v3920 = vsel %vm482, %v3919, %v3918
    %v3921 = vrot.slane %v2473, 2
    %v3922 = vsel %vm484, %v3921, %v3920
    %v3923 = vrot.slane %v2474, 1
    %v3924 = vsel %vm486, %v3923, %v3922
    %v3925 = vrot.slane %v2476, 7
    %v3926 = vsel %vm474, %v3925, %v2475
    %v3927 = vrot.slane %v2477, 6
    %v3928 = vsel %vm476, %v3927, %v3926
    %v3929 = vrot.slane %v2478, 5
    %v3930 = vsel %vm478, %v3929, %v3928
    %3931 = vrot.lane.b32.xlu0 %v3904, 16
    %v3932 = vpop.permute.xlu0 %3931
    %3933 = vrot.lane.b32.xlu0 %v3910, 16
    %v3934 = vpop.permute.xlu0 %3933
    %3935 = vrot.lane.b32.xlu0 %v3924, 16
    %v3936 = vpop.permute.xlu0 %3935
    %3937 = vrot.lane.b32.xlu0 %v3930, 16
    %v3938 = vpop.permute.xlu0 %3937
    %v3967 = vrot.slane %v2576, 7
    %v3968 = vsel %vm474, %v3967, %v2575
    %v3969 = vrot.slane %v2577, 6
    %v3970 = vsel %vm476, %v3969, %v3968
    %v3971 = vrot.slane %v2578, 5
    %v3972 = vsel %vm478, %v3971, %v3970
    %v3973 = vrot.slane %v2579, 4
    %v3974 = vsel %vm480, %v3973, %v3972
    %v3975 = vrot.slane %v2580, 3
    %v3976 = vsel %vm482, %v3975, %v3974
    %v3977 = vrot.slane %v2581, 2
    %v3978 = vsel %vm484, %v3977, %v3976
    %v3979 = vrot.slane %v2582, 1
    %v3980 = vsel %vm486, %v3979, %v3978
    %v3981 = vrot.slane %v2584, 7
    %v3982 = vsel %vm474, %v3981, %v2583
    %v3983 = vrot.slane %v2585, 6
    %v3984 = vsel %vm476, %v3983, %v3982
    %v3985 = vrot.slane %v2586, 5
    %v3986 = vsel %vm478, %v3985, %v3984
    %v3987 = vrot.slane %v2588, 7
    %v3988 = vsel %vm474, %v3987, %v2587
    %v3989 = vrot.slane %v2589, 6
    %v3990 = vsel %vm476, %v3989, %v3988
    %v3991 = vrot.slane %v2590, 5
    %v3992 = vsel %vm478, %v3991, %v3990
    %v3993 = vrot.slane %v2591, 4
    %v3994 = vsel %vm480, %v3993, %v3992
    %v3995 = vrot.slane %v2592, 3
    %v3996 = vsel %vm482, %v3995, %v3994
    %v3997 = vrot.slane %v2593, 2
    %v3998 = vsel %vm484, %v3997, %v3996
    %v3999 = vrot.slane %v2594, 1
    %v4000 = vsel %vm486, %v3999, %v3998
    %v4001 = vrot.slane %v2596, 7
    %v4002 = vsel %vm474, %v4001, %v2595
    %v4003 = vrot.slane %v2597, 6
    %v4004 = vsel %vm476, %v4003, %v4002
    %v4005 = vrot.slane %v2598, 5
    %v4006 = vsel %vm478, %v4005, %v4004
    %4007 = vrot.lane.b32.xlu0 %v3980, 32
    %v4008 = vpop.permute.xlu0 %4007
    %4009 = vrot.lane.b32.xlu0 %v3986, 32
    %v4010 = vpop.permute.xlu0 %4009
    %4011 = vrot.lane.b32.xlu0 %v4000, 32
    %v4012 = vpop.permute.xlu0 %4011
    %4013 = vrot.lane.b32.xlu0 %v4006, 32
    %v4014 = vpop.permute.xlu0 %4013
    %v4043 = vrot.slane %v2696, 7
    %v4044 = vsel %vm474, %v4043, %v2695
    %v4045 = vrot.slane %v2697, 6
    %v4046 = vsel %vm476, %v4045, %v4044
    %v4047 = vrot.slane %v2698, 5
    %v4048 = vsel %vm478, %v4047, %v4046
    %v4049 = vrot.slane %v2699, 4
    %v4050 = vsel %vm480, %v4049, %v4048
    %v4051 = vrot.slane %v2700, 3
    %v4052 = vsel %vm482, %v4051, %v4050
    %v4053 = vrot.slane %v2701, 2
    %v4054 = vsel %vm484, %v4053, %v4052
    %v4055 = vrot.slane %v2702, 1
    %v4056 = vsel %vm486, %v4055, %v4054
    %v4057 = vrot.slane %v2704, 7
    %v4058 = vsel %vm474, %v4057, %v2703
    %v4059 = vrot.slane %v2705, 6
    %v4060 = vsel %vm476, %v4059, %v4058
    %v4061 = vrot.slane %v2706, 5
    %v4062 = vsel %vm478, %v4061, %v4060
    %v4063 = vrot.slane %v2708, 7
    %v4064 = vsel %vm474, %v4063, %v2707
    %v4065 = vrot.slane %v2709, 6
    %v4066 = vsel %vm476, %v4065, %v4064
    %v4067 = vrot.slane %v2710, 5
    %v4068 = vsel %vm478, %v4067, %v4066
    %v4069 = vrot.slane %v2711, 4
    %v4070 = vsel %vm480, %v4069, %v4068
    %v4071 = vrot.slane %v2712, 3
    %v4072 = vsel %vm482, %v4071, %v4070
    %v4073 = vrot.slane %v2713, 2
    %v4074 = vsel %vm484, %v4073, %v4072
    %v4075 = vrot.slane %v2714, 1
    %v4076 = vsel %vm486, %v4075, %v4074
    %v4077 = vrot.slane %v2716, 7
    %v4078 = vsel %vm474, %v4077, %v2715
    %v4079 = vrot.slane %v2717, 6
    %v4080 = vsel %vm476, %v4079, %v4078
    %v4081 = vrot.slane %v2718, 5
    %v4082 = vsel %vm478, %v4081, %v4080
    %4083 = vrot.lane.b32.xlu0 %v4056, 48
    %v4084 = vpop.permute.xlu0 %4083
    %4085 = vrot.lane.b32.xlu0 %v4062, 48
    %v4086 = vpop.permute.xlu0 %4085
    %4087 = vrot.lane.b32.xlu0 %v4076, 48
    %v4088 = vpop.permute.xlu0 %4087
    %4089 = vrot.lane.b32.xlu0 %v4082, 48
    %v4090 = vpop.permute.xlu0 %4089
    %v4119 = vrot.slane %v2816, 7
    %v4120 = vsel %vm474, %v4119, %v2815
    %v4121 = vrot.slane %v2817, 6
    %v4122 = vsel %vm476, %v4121, %v4120
    %v4123 = vrot.slane %v2818, 5
    %v4124 = vsel %vm478, %v4123, %v4122
    %v4125 = vrot.slane %v2819, 4
    %v4126 = vsel %vm480, %v4125, %v4124
    %v4127 = vrot.slane %v2820, 3
    %v4128 = vsel %vm482, %v4127, %v4126
    %v4129 = vrot.slane %v2821, 2
    %v4130 = vsel %vm484, %v4129, %v4128
    %v4131 = vrot.slane %v2822, 1
    %v4132 = vsel %vm486, %v4131, %v4130
    %v4133 = vrot.slane %v2824, 7
    %v4134 = vsel %vm474, %v4133, %v2823
    %v4135 = vrot.slane %v2825, 6
    %v4136 = vsel %vm476, %v4135, %v4134
    %v4137 = vrot.slane %v2826, 5
    %v4138 = vsel %vm478, %v4137, %v4136
    %v4139 = vrot.slane %v2828, 7
    %v4140 = vsel %vm474, %v4139, %v2827
    %v4141 = vrot.slane %v2829, 6
    %v4142 = vsel %vm476, %v4141, %v4140
    %v4143 = vrot.slane %v2830, 5
    %v4144 = vsel %vm478, %v4143, %v4142
    %v4145 = vrot.slane %v2831, 4
    %v4146 = vsel %vm480, %v4145, %v4144
    %v4147 = vrot.slane %v2832, 3
    %v4148 = vsel %vm482, %v4147, %v4146
    %v4149 = vrot.slane %v2833, 2
    %v4150 = vsel %vm484, %v4149, %v4148
    %v4151 = vrot.slane %v2834, 1
    %v4152 = vsel %vm486, %v4151, %v4150
    %v4153 = vrot.slane %v2836, 7
    %v4154 = vsel %vm474, %v4153, %v2835
    %v4155 = vrot.slane %v2837, 6
    %v4156 = vsel %vm476, %v4155, %v4154
    %v4157 = vrot.slane %v2838, 5
    %v4158 = vsel %vm478, %v4157, %v4156
    %4159 = vrot.lane.b32.xlu0 %v4132, 64
    %v4160 = vpop.permute.xlu0 %4159
    %4161 = vrot.lane.b32.xlu0 %v4138, 64
    %v4162 = vpop.permute.xlu0 %4161
    %4163 = vrot.lane.b32.xlu0 %v4152, 64
    %v4164 = vpop.permute.xlu0 %4163
    %4165 = vrot.lane.b32.xlu0 %v4158, 64
    %v4166 = vpop.permute.xlu0 %4165
    %v4195 = vrot.slane %v2936, 7
    %v4196 = vsel %vm474, %v4195, %v2935
    %v4197 = vrot.slane %v2937, 6
    %v4198 = vsel %vm476, %v4197, %v4196
    %v4199 = vrot.slane %v2938, 5
    %v4200 = vsel %vm478, %v4199, %v4198
    %v4201 = vrot.slane %v2939, 4
    %v4202 = vsel %vm480, %v4201, %v4200
    %v4203 = vrot.slane %v2940, 3
    %v4204 = vsel %vm482, %v4203, %v4202
    %v4205 = vrot.slane %v2941, 2
    %v4206 = vsel %vm484, %v4205, %v4204
    %v4207 = vrot.slane %v2942, 1
    %v4208 = vsel %vm486, %v4207, %v4206
    %v4209 = vrot.slane %v2944, 7
    %v4210 = vsel %vm474, %v4209, %v2943
    %v4211 = vrot.slane %v2945, 6
    %v4212 = vsel %vm476, %v4211, %v4210
    %v4213 = vrot.slane %v2946, 5
    %v4214 = vsel %vm478, %v4213, %v4212
    %v4215 = vrot.slane %v2948, 7
    %v4216 = vsel %vm474, %v4215, %v2947
    %v4217 = vrot.slane %v2949, 6
    %v4218 = vsel %vm476, %v4217, %v4216
    %v4219 = vrot.slane %v2950, 5
    %v4220 = vsel %vm478, %v4219, %v4218
    %v4221 = vrot.slane %v2951, 4
    %v4222 = vsel %vm480, %v4221, %v4220
    %v4223 = vrot.slane %v2952, 3
    %v4224 = vsel %vm482, %v4223, %v4222
    %v4225 = vrot.slane %v2953, 2
    %v4226 = vsel %vm484, %v4225, %v4224
    %v4227 = vrot.slane %v2954, 1
    %v4228 = vsel %vm486, %v4227, %v4226
    %v4229 = vrot.slane %v2956, 7
    %v4230 = vsel %vm474, %v4229, %v2955
    %v4231 = vrot.slane %v2957, 6
    %v4232 = vsel %vm476, %v4231, %v4230
    %v4233 = vrot.slane %v2958, 5
    %v4234 = vsel %vm478, %v4233, %v4232
    %4235 = vrot.lane.b32.xlu0 %v4208, 80
    %v4236 = vpop.permute.xlu0 %4235
    %4237 = vrot.lane.b32.xlu0 %v4214, 80
    %v4238 = vpop.permute.xlu0 %4237
    %4239 = vrot.lane.b32.xlu0 %v4228, 80
    %v4240 = vpop.permute.xlu0 %4239
    %4241 = vrot.lane.b32.xlu0 %v4234, 80
    %v4242 = vpop.permute.xlu0 %4241
    %v4271 = vrot.slane %v3056, 7
    %v4272 = vsel %vm474, %v4271, %v3055
    %v4273 = vrot.slane %v3057, 6
    %v4274 = vsel %vm476, %v4273, %v4272
    %v4275 = vrot.slane %v3058, 5
    %v4276 = vsel %vm478, %v4275, %v4274
    %v4277 = vrot.slane %v3059, 4
    %v4278 = vsel %vm480, %v4277, %v4276
    %v4279 = vrot.slane %v3060, 3
    %v4280 = vsel %vm482, %v4279, %v4278
    %v4281 = vrot.slane %v3061, 2
    %v4282 = vsel %vm484, %v4281, %v4280
    %v4283 = vrot.slane %v3062, 1
    %v4284 = vsel %vm486, %v4283, %v4282
    %v4285 = vrot.slane %v3064, 7
    %v4286 = vsel %vm474, %v4285, %v3063
    %v4287 = vrot.slane %v3065, 6
    %v4288 = vsel %vm476, %v4287, %v4286
    %v4289 = vrot.slane %v3066, 5
    %v4290 = vsel %vm478, %v4289, %v4288
    %v4291 = vrot.slane %v3068, 7
    %v4292 = vsel %vm474, %v4291, %v3067
    %v4293 = vrot.slane %v3069, 6
    %v4294 = vsel %vm476, %v4293, %v4292
    %v4295 = vrot.slane %v3070, 5
    %v4296 = vsel %vm478, %v4295, %v4294
    %v4297 = vrot.slane %v3071, 4
    %v4298 = vsel %vm480, %v4297, %v4296
    %v4299 = vrot.slane %v3072, 3
    %v4300 = vsel %vm482, %v4299, %v4298
    %v4301 = vrot.slane %v3073, 2
    %v4302 = vsel %vm484, %v4301, %v4300
    %v4303 = vrot.slane %v3074, 1
    %v4304 = vsel %vm486, %v4303, %v4302
    %v4305 = vrot.slane %v3076, 7
    %v4306 = vsel %vm474, %v4305, %v3075
    %v4307 = vrot.slane %v3077, 6
    %v4308 = vsel %vm476, %v4307, %v4306
    %v4309 = vrot.slane %v3078, 5
    %v4310 = vsel %vm478, %v4309, %v4308
    %4311 = vrot.lane.b32.xlu0 %v4284, 96
    %v4312 = vpop.permute.xlu0 %4311
    %4313 = vrot.lane.b32.xlu0 %v4290, 96
    %v4314 = vpop.permute.xlu0 %4313
    %4315 = vrot.lane.b32.xlu0 %v4304, 96
    %v4316 = vpop.permute.xlu0 %4315
    %4317 = vrot.lane.b32.xlu0 %v4310, 96
    %v4318 = vpop.permute.xlu0 %4317
    %v4347 = vrot.slane %v3176, 7
    %v4348 = vsel %vm474, %v4347, %v3175
    %v4349 = vrot.slane %v3177, 6
    %v4350 = vsel %vm476, %v4349, %v4348
    %v4351 = vrot.slane %v3178, 5
    %v4352 = vsel %vm478, %v4351, %v4350
    %v4353 = vrot.slane %v3179, 4
    %v4354 = vsel %vm480, %v4353, %v4352
    %v4355 = vrot.slane %v3180, 3
    %v4356 = vsel %vm482, %v4355, %v4354
    %v4357 = vrot.slane %v3181, 2
    %v4358 = vsel %vm484, %v4357, %v4356
    %v4359 = vrot.slane %v3182, 1
    %v4360 = vsel %vm486, %v4359, %v4358
    %v4361 = vrot.slane %v3184, 7
    %v4362 = vsel %vm474, %v4361, %v3183
    %v4363 = vrot.slane %v3185, 6
    %v4364 = vsel %vm476, %v4363, %v4362
    %v4365 = vrot.slane %v3186, 5
    %v4366 = vsel %vm478, %v4365, %v4364
    %v4367 = vrot.slane %v3188, 7
    %v4368 = vsel %vm474, %v4367, %v3187
    %v4369 = vrot.slane %v3189, 6
    %v4370 = vsel %vm476, %v4369, %v4368
    %v4371 = vrot.slane %v3190, 5
    %v4372 = vsel %vm478, %v4371, %v4370
    %v4373 = vrot.slane %v3191, 4
    %v4374 = vsel %vm480, %v4373, %v4372
    %v4375 = vrot.slane %v3192, 3
    %v4376 = vsel %vm482, %v4375, %v4374
    %v4377 = vrot.slane %v3193, 2
    %v4378 = vsel %vm484, %v4377, %v4376
    %v4379 = vrot.slane %v3194, 1
    %v4380 = vsel %vm486, %v4379, %v4378
    %v4381 = vrot.slane %v3196, 7
    %v4382 = vsel %vm474, %v4381, %v3195
    %v4383 = vrot.slane %v3197, 6
    %v4384 = vsel %vm476, %v4383, %v4382
    %v4385 = vrot.slane %v3198, 5
    %v4386 = vsel %vm478, %v4385, %v4384
    %4387 = vrot.lane.b32.xlu0 %v4360, 112
    %v4388 = vpop.permute.xlu0 %4387
    %4389 = vrot.lane.b32.xlu0 %v4366, 112
    %v4390 = vpop.permute.xlu0 %4389
    %4391 = vrot.lane.b32.xlu0 %v4380, 112
    %v4392 = vpop.permute.xlu0 %4391
    %4393 = vrot.lane.b32.xlu0 %v4386, 112
    %v4394 = vpop.permute.xlu0 %4393
    %v4399 = vsel %vm84, %v3236, %v3332
    %v4400 = vsel %vm84, %v3242, %v3334
    %v4401 = vsel %vm84, %v3256, %v3336
    %v4402 = vsel %vm84, %v3262, %v3338
    %vm4403 = vcmask 261120
    %v4404 = vsel %vm4403, %v4399, %v3408
    %v4405 = vsel %vm4403, %v4400, %v3410
    %v4406 = vsel %vm4403, %v4401, %v3412
    %v4407 = vsel %vm4403, %v4402, %v3414
    %vm4408 = vcmask 392192
    %v4409 = vsel %vm4408, %v4404, %v3484
    %v4410 = vsel %vm4408, %v4405, %v3486
    %v4411 = vsel %vm4408, %v4406, %v3488
    %v4412 = vsel %vm4408, %v4407, %v3490
    %vm4413 = vcmask 523264
    %v4414 = vsel %vm4413, %v4409, %v3560
    %v4415 = vsel %vm4413, %v4410, %v3562
    %v4416 = vsel %vm4413, %v4411, %v3564
    %v4417 = vsel %vm4413, %v4412, %v3566
    %vm4418 = vcmask 654336
    %v4419 = vsel %vm4418, %v4414, %v3636
    %v4420 = vsel %vm4418, %v4415, %v3638
    %v4421 = vsel %vm4418, %v4416, %v3640
    %v4422 = vsel %vm4418, %v4417, %v3642
    %vm4423 = vcmask 785408
    %v4424 = vsel %vm4423, %v4419, %v3712
    %v4425 = vsel %vm4423, %v4420, %v3714
    %v4426 = vsel %vm4423, %v4421, %v3716
    %v4427 = vsel %vm4423, %v4422, %v3718
    %vm4428 = vcmask 916480
    %v4429 = vsel %vm4428, %v4424, %v3788
    %v4430 = vsel %vm4428, %v4425, %v3790
    %v4431 = vsel %vm4428, %v4426, %v3792
    %v4432 = vsel %vm4428, %v4427, %v3794
    %v4433 = vsel %vm84, %v3836, %v3932
    %v4434 = vsel %vm84, %v3842, %v3934
    %v4435 = vsel %vm84, %v3856, %v3936
    %v4436 = vsel %vm84, %v3862, %v3938
    %v4437 = vsel %vm4403, %v4433, %v4008
    %v4438 = vsel %vm4403, %v4434, %v4010
    %v4439 = vsel %vm4403, %v4435, %v4012
    %v4440 = vsel %vm4403, %v4436, %v4014
    %v4441 = vsel %vm4408, %v4437, %v4084
    %v4442 = vsel %vm4408, %v4438, %v4086
    %v4443 = vsel %vm4408, %v4439, %v4088
    %v4444 = vsel %vm4408, %v4440, %v4090
    %v4445 = vsel %vm4413, %v4441, %v4160
    %v4446 = vsel %vm4413, %v4442, %v4162
    %v4447 = vsel %vm4413, %v4443, %v4164
    %v4448 = vsel %vm4413, %v4444, %v4166
    %v4449 = vsel %vm4418, %v4445, %v4236
    %v4450 = vsel %vm4418, %v4446, %v4238
    %v4451 = vsel %vm4418, %v4447, %v4240
    %v4452 = vsel %vm4418, %v4448, %v4242
    %v4453 = vsel %vm4423, %v4449, %v4312
    %v4454 = vsel %vm4423, %v4450, %v4314
    %v4455 = vsel %vm4423, %v4451, %v4316
    %v4456 = vsel %vm4423, %v4452, %v4318
    %v4457 = vsel %vm4428, %v4453, %v4388
    %v4458 = vsel %vm4428, %v4454, %v4390
    %v4459 = vsel %vm4428, %v4455, %v4392
    %v4460 = vsel %vm4428, %v4456, %v4394
    %4461 = vst [vmem:[%s2] sm:$0xff] %v4429
    %4462 = vst [vmem:[%s2 + $0x8] sm:$0xff] %v4457
    %4463 = vst [vmem:[%s2 + $0x10] sm:$0xf] %v4430
    %4464 = vst [vmem:[%s2 + $0x18] sm:$0xf] %v4458
    %4465 = vst [vmem:[%s2 + $0x20] sm:$0xff] %v4431
    %4466 = vst [vmem:[%s2 + $0x28] sm:$0xff] %v4459
    %4467 = vst [vmem:[%s2 + $0x30] sm:$0xf] %v4432
    %4468 = vst [vmem:[%s2 + $0x38] sm:$0xf] %v4460
    // Predicated region
    $region14: #{relation_awareness.1} parent=1 // pred_check
      _
    $region15: #{relation_awareness.1} parent=1 // pred_check_branch
      %4470 = sbr.rel (0) target = $region17
    $region16: #{relation_awareness.1} parent=1 // pred_region
      _
    $region17: #{relation_awareness.1} parent=1 // pred_fallthru
      _
    // Predicated region
    $region18: #{relation_awareness.1} parent=1 // pred_check
      _
    $region19: #{relation_awareness.1} parent=1 // pred_check_branch
      %4472 = sbr.rel (0) target = $region21
    $region20: #{relation_awareness.1} parent=1 // pred_region
      _
    $region21: #{relation_awareness.1} parent=1 // pred_fallthru
      _
    %4473 = vsyncpa [#allocation3], 1

</llo_original>
